<compile_context>
chip_gen: v7x
topology: tpu7x:2x2x1
jax: 0.10.0
libtpu: 0.0.40
codegen_flags: <defaults>
</compile_context>

<pallas_src>
import jax
import jax.numpy as jnp
from jax.experimental import pallas as pl
from jax.experimental.pallas import tpu as pltpu

IN_DIM = 8
HID_DIM = 1231                                        # hidden width of the "wide" layer
CHUNK = 128                                           # hidden-dim chunk per inner step
HID_PAD = ((HID_DIM + CHUNK - 1) // CHUNK) * CHUNK    # 1280 = 10 * 128
NUM_CHUNKS = HID_PAD // CHUNK                         # 10
TILE_N = 512                                          # batch rows per grid step (lane axis)


def _wide_deep_kernel(x_ref, w1_ref, b1_ref, w2_ref, b2_ref, w3_ref, b3_ref, o_ref):
    # Batch lives on the 128-lane axis everywhere -> lane-dense loads/stores.
    x = x_ref[...]                                                        # (IN_DIM, TILE_N)

    # Layer 1: Linear(8,1) + sigmoid.  w1/b1 are pre-scaled by 0.5 on the host,
    # so sigmoid(x@w1.T + b1) == 0.5*tanh(x@w1' + b1') + 0.5.
    z1 = jnp.sum(x * w1_ref[...], axis=0, keepdims=True) + b1_ref[...]    # (1, TILE_N)
    h1 = 0.5 * jnp.tanh(z1) + 0.5                                         # (1, TILE_N)

    # Layers 2 + 3 fused, chunked over the hidden axis.  Host-side folding:
    #   w2' = 0.5*w2, b2' = 0.5*b2, w3'' = 0.25*w3, b3'' = 0.5*b3 + 0.25*sum(w3)
    # so per hidden unit the kernel does: mul, add, tanh, mul (3 VPU + 1 EUP).
    # Padded hidden units have w2'=b2'=w3''=0 -> tanh(0)*0 == exact 0 contribution.
    acc = jnp.zeros((1, TILE_N), jnp.float32)
    for c in range(NUM_CHUNKS):
        lo = c * CHUNK
        w2c = w2_ref[lo:lo + CHUNK, :]                                    # (CHUNK, 1)
        b2c = b2_ref[lo:lo + CHUNK, :]                                    # (CHUNK, 1)
        w3c = w3_ref[lo:lo + CHUNK, :]                                    # (CHUNK, 1)
        t = jnp.tanh(w2c * h1 + b2c)                                      # (CHUNK, TILE_N)
        acc = acc + jnp.sum(t * w3c, axis=0, keepdims=True)               # (1, TILE_N)

    # Final sigmoid: its 0.5 pre-scale is already folded into w3''/b3''.
    y = 0.5 * jnp.tanh(acc + b3_ref[...]) + 0.5                           # (1, TILE_N)
    o_ref[...] = y[None].astype(o_ref.dtype)                              # (1, 1, TILE_N)


def wide_deep_forward(x, w1, b1, w2, b2, w3, b3):
    """Forward pass matching the PyTorch module.

    x : (N, 8) float32
    w1: (1, 8)     b1: (1,)       -- l1 = Linear(8, 1)
    w2: (1231, 1)  b2: (1231,)    -- l2 = Linear(1, 1231)
    w3: (1, 1231)  b3: (1,)       -- l3 = Linear(1231, 1)
    returns (N, 1) float32
    """
    n = x.shape[0]
    grid_n = -(-n // TILE_N)
    n_pad = grid_n * TILE_N

    # Lane-dense activations: batch on the lane axis, zero-padded to a tile multiple.
    xt = jnp.zeros((IN_DIM, n_pad), jnp.float32).at[:, :n].set(x.astype(jnp.float32).T)

    # Column-vector weight packing; hidden axis zero-padded to a multiple of 128.
    # Sigmoid's tanh-identity scale factors are folded in here (free on host).
    def pad_col(v, scale):
        return jnp.zeros((HID_PAD, 1), jnp.float32).at[:HID_DIM, 0].set(
            scale * v.astype(jnp.float32).reshape(-1))

    w1f = w1.astype(jnp.float32)
    b1f = b1.astype(jnp.float32)
    w3f = w3.astype(jnp.float32)
    b3f = b3.astype(jnp.float32)

    w1c = 0.5 * w1f.reshape(IN_DIM, 1)
    b1c = 0.5 * b1f.reshape(1, 1)
    w2c = pad_col(w2, 0.5)
    b2c = pad_col(b2, 0.5)
    w3c = pad_col(w3, 0.25)
    b3c = (0.5 * b3f.reshape(()) + 0.25 * jnp.sum(w3f)).reshape(1, 1)

    cost = pl.CostEstimate(
        flops=n_pad * (4 * HID_PAD + 2 * IN_DIM + 8),
        transcendentals=n_pad * (HID_PAD + 2),
        bytes_accessed=4 * (n_pad * (IN_DIM + 1) + 3 * HID_PAD + IN_DIM + 2),
    )

    out = pl.pallas_call(
        _wide_deep_kernel,
        out_shape=jax.ShapeDtypeStruct((grid_n, 1, TILE_N), jnp.float32),
        grid=(grid_n,),
        in_specs=[
            pl.BlockSpec((IN_DIM, TILE_N), lambda i: (0, i)),   # x tile (streamed per step)
            pl.BlockSpec((IN_DIM, 1), lambda i: (0, 0)),        # w1 (VMEM-resident)
            pl.BlockSpec((1, 1), lambda i: (0, 0)),             # b1
            pl.BlockSpec((HID_PAD, 1), lambda i: (0, 0)),       # w2
            pl.BlockSpec((HID_PAD, 1), lambda i: (0, 0)),       # b2
            pl.BlockSpec((HID_PAD, 1), lambda i: (0, 0)),       # w3
            pl.BlockSpec((1, 1), lambda i: (0, 0)),             # b3
        ],
        out_specs=pl.BlockSpec((1, 1, TILE_N), lambda i: (i, 0, 0)),
        compiler_params=pltpu.CompilerParams(
            dimension_semantics=("parallel",)),
        cost_estimate=cost,
    )(xt, w1c, b1c, w2c, b2c, w3c, b3c)

    return out.reshape(-1, 1)[:n]


def init_params(key):
    """Deterministic init mimicking torch.nn.Linear: U(-1/sqrt(fan_in), +1/sqrt(fan_in))."""
    k1, k2, k3, k4, k5, k6 = jax.random.split(key, 6)

    def unif(k, shape, fan_in):
        bound = 1.0 / (fan_in ** 0.5)
        return jax.random.uniform(k, shape, jnp.float32, -bound, bound)

    w1 = unif(k1, (1, IN_DIM), IN_DIM)       # l1.weight (1, 8)
    b1 = unif(k2, (1,), IN_DIM)              # l1.bias   (1,)
    w2 = unif(k3, (HID_DIM, 1), 1)           # l2.weight (1231, 1)
    b2 = unif(k4, (HID_DIM,), 1)             # l2.bias   (1231,)
    w3 = unif(k5, (1, HID_DIM), HID_DIM)     # l3.weight (1, 1231)
    b3 = unif(k6, (1,), HID_DIM)             # l3.bias   (1,)
    return w1, b1, w2, b2, w3, b3


def reference_forward(x, w1, b1, w2, b2, w3, b3):
    """Pure-JAX reference with identical semantics to the PyTorch module."""
    h1 = jax.nn.sigmoid(x @ w1.T + b1)       # (N, 1)
    h2 = jax.nn.sigmoid(h1 @ w2.T + b2)      # (N, 1231)
    return jax.nn.sigmoid(h2 @ w3.T + b3)    # (N, 1)


if __name__ == "__main__":
    key = jax.random.PRNGKey(0)
    kx, kp = jax.random.split(key)
    params = init_params(kp)

    # small single-tile case + a multi-tile, non-multiple-of-TILE_N case
    for batch in (8, 600):
        x = jax.random.normal(jax.random.fold_in(kx, batch), (batch, IN_DIM), jnp.float32)
        y = wide_deep_forward(x, *params)
        jax.block_until_ready(y)
        y_ref = reference_forward(x, *params)
        assert y.shape == (batch, 1)
        assert jnp.allclose(y, y_ref, atol=1e-5, rtol=1e-5), f"mismatch vs reference (batch={batch})"

    print("KERNEL_OK")
</pallas_src>

<mosaic_0001>
module attributes {stable_mosaic.version = 11 : i64} {
  func.func @_wide_deep_kernel(%arg0: i32, %arg1: memref<8x512xf32, #tpu.memory_space<vmem>>, %arg2: memref<8x1xf32, #tpu.memory_space<vmem>>, %arg3: memref<1x1xf32, #tpu.memory_space<vmem>>, %arg4: memref<1280x1xf32, #tpu.memory_space<vmem>>, %arg5: memref<1280x1xf32, #tpu.memory_space<vmem>>, %arg6: memref<1280x1xf32, #tpu.memory_space<vmem>>, %arg7: memref<1x1xf32, #tpu.memory_space<vmem>>, %arg8: memref<1x1x512xf32, #tpu.memory_space<vmem>>) attributes {dimension_semantics = [#tpu.dimension_semantics<parallel>], iteration_bounds = array<i64: 1>, scalar_prefetch = 0 : i64, scratch_operands = 0 : i64, tpu.core_type = #tpu.core_type<tc>, window_params = [{transform_indices = @transform_0, window_bounds = array<i64: 8, 512>}, {pipeline_mode = #tpu.pipeline_mode<synchronous>, transform_indices = @transform_1, window_bounds = array<i64: 8, 1>}, {pipeline_mode = #tpu.pipeline_mode<synchronous>, transform_indices = @transform_2, window_bounds = array<i64: 1, 1>}, {pipeline_mode = #tpu.pipeline_mode<synchronous>, transform_indices = @transform_3, window_bounds = array<i64: 1280, 1>}, {pipeline_mode = #tpu.pipeline_mode<synchronous>, transform_indices = @transform_4, window_bounds = array<i64: 1280, 1>}, {pipeline_mode = #tpu.pipeline_mode<synchronous>, transform_indices = @transform_5, window_bounds = array<i64: 1280, 1>}, {pipeline_mode = #tpu.pipeline_mode<synchronous>, transform_indices = @transform_6, window_bounds = array<i64: 1, 1>}, {transform_indices = @transform_7, window_bounds = array<i64: 1, 1, 512>}]} {
    %c0 = arith.constant 0 : index
    %c0_0 = arith.constant 0 : index
    %0 = vector.load %arg1[%c0, %c0_0] : memref<8x512xf32, #tpu.memory_space<vmem>>, vector<8x512xf32>
    %c0_1 = arith.constant 0 : index
    %c0_2 = arith.constant 0 : index
    %1 = vector.load %arg2[%c0_1, %c0_2] : memref<8x1xf32, #tpu.memory_space<vmem>>, vector<8x1xf32>
    %2 = vector.broadcast %1 : vector<8x1xf32> to vector<8x512xf32>
    %3 = arith.mulf %0, %2 : vector<8x512xf32>
    %cst = arith.constant dense<0.000000e+00> : vector<512xf32>
    %4 = vector.multi_reduction <add>, %3, %cst [0] : vector<8x512xf32> to vector<512xf32>
    %5 = vector.shape_cast %4 : vector<512xf32> to vector<1x512xf32>
    %c0_3 = arith.constant 0 : index
    %c0_4 = arith.constant 0 : index
    %6 = vector.load %arg3[%c0_3, %c0_4] : memref<1x1xf32, #tpu.memory_space<vmem>>, vector<1x1xf32>
    %7 = vector.broadcast %6 : vector<1x1xf32> to vector<1x512xf32>
    %8 = arith.addf %5, %7 : vector<1x512xf32>
    %9 = math.tanh %8 : vector<1x512xf32>
    %cst_5 = arith.constant 5.000000e-01 : f32
    %10 = vector.broadcast %cst_5 : f32 to vector<1x512xf32>
    %11 = arith.mulf %10, %9 : vector<1x512xf32>
    %cst_6 = arith.constant 5.000000e-01 : f32
    %12 = vector.broadcast %cst_6 : f32 to vector<1x512xf32>
    %13 = arith.addf %11, %12 : vector<1x512xf32>
    %cst_7 = arith.constant 0.000000e+00 : f32
    %14 = vector.broadcast %cst_7 : f32 to vector<1x512xf32>
    %c0_8 = arith.constant 0 : index
    %c0_9 = arith.constant 0 : index
    %15 = vector.load %arg4[%c0_8, %c0_9] : memref<1280x1xf32, #tpu.memory_space<vmem>>, vector<128x1xf32>
    %c0_10 = arith.constant 0 : index
    %c0_11 = arith.constant 0 : index
    %16 = vector.load %arg5[%c0_10, %c0_11] : memref<1280x1xf32, #tpu.memory_space<vmem>>, vector<128x1xf32>
    %c0_12 = arith.constant 0 : index
    %c0_13 = arith.constant 0 : index
    %17 = vector.load %arg6[%c0_12, %c0_13] : memref<1280x1xf32, #tpu.memory_space<vmem>>, vector<128x1xf32>
    %18 = vector.broadcast %15 : vector<128x1xf32> to vector<128x512xf32>
    %19 = vector.broadcast %13 : vector<1x512xf32> to vector<128x512xf32>
    %20 = arith.mulf %18, %19 : vector<128x512xf32>
    %21 = vector.broadcast %16 : vector<128x1xf32> to vector<128x512xf32>
    %22 = arith.addf %20, %21 : vector<128x512xf32>
    %23 = math.tanh %22 : vector<128x512xf32>
    %24 = vector.broadcast %17 : vector<128x1xf32> to vector<128x512xf32>
    %25 = arith.mulf %23, %24 : vector<128x512xf32>
    %cst_14 = arith.constant dense<0.000000e+00> : vector<512xf32>
    %26 = vector.multi_reduction <add>, %25, %cst_14 [0] : vector<128x512xf32> to vector<512xf32>
    %27 = vector.shape_cast %26 : vector<512xf32> to vector<1x512xf32>
    %28 = arith.addf %14, %27 : vector<1x512xf32>
    %c128 = arith.constant 128 : index
    %c0_15 = arith.constant 0 : index
    %29 = vector.load %arg4[%c128, %c0_15] : memref<1280x1xf32, #tpu.memory_space<vmem>>, vector<128x1xf32>
    %c128_16 = arith.constant 128 : index
    %c0_17 = arith.constant 0 : index
    %30 = vector.load %arg5[%c128_16, %c0_17] : memref<1280x1xf32, #tpu.memory_space<vmem>>, vector<128x1xf32>
    %c128_18 = arith.constant 128 : index
    %c0_19 = arith.constant 0 : index
    %31 = vector.load %arg6[%c128_18, %c0_19] : memref<1280x1xf32, #tpu.memory_space<vmem>>, vector<128x1xf32>
    %32 = vector.broadcast %29 : vector<128x1xf32> to vector<128x512xf32>
    %33 = vector.broadcast %13 : vector<1x512xf32> to vector<128x512xf32>
    %34 = arith.mulf %32, %33 : vector<128x512xf32>
    %35 = vector.broadcast %30 : vector<128x1xf32> to vector<128x512xf32>
    %36 = arith.addf %34, %35 : vector<128x512xf32>
    %37 = math.tanh %36 : vector<128x512xf32>
    %38 = vector.broadcast %31 : vector<128x1xf32> to vector<128x512xf32>
    %39 = arith.mulf %37, %38 : vector<128x512xf32>
    %cst_20 = arith.constant dense<0.000000e+00> : vector<512xf32>
    %40 = vector.multi_reduction <add>, %39, %cst_20 [0] : vector<128x512xf32> to vector<512xf32>
    %41 = vector.shape_cast %40 : vector<512xf32> to vector<1x512xf32>
    %42 = arith.addf %28, %41 : vector<1x512xf32>
    %c256 = arith.constant 256 : index
    %c0_21 = arith.constant 0 : index
    %43 = vector.load %arg4[%c256, %c0_21] : memref<1280x1xf32, #tpu.memory_space<vmem>>, vector<128x1xf32>
    %c256_22 = arith.constant 256 : index
    %c0_23 = arith.constant 0 : index
    %44 = vector.load %arg5[%c256_22, %c0_23] : memref<1280x1xf32, #tpu.memory_space<vmem>>, vector<128x1xf32>
    %c256_24 = arith.constant 256 : index
    %c0_25 = arith.constant 0 : index
    %45 = vector.load %arg6[%c256_24, %c0_25] : memref<1280x1xf32, #tpu.memory_space<vmem>>, vector<128x1xf32>
    %46 = vector.broadcast %43 : vector<128x1xf32> to vector<128x512xf32>
    %47 = vector.broadcast %13 : vector<1x512xf32> to vector<128x512xf32>
    %48 = arith.mulf %46, %47 : vector<128x512xf32>
    %49 = vector.broadcast %44 : vector<128x1xf32> to vector<128x512xf32>
    %50 = arith.addf %48, %49 : vector<128x512xf32>
    %51 = math.tanh %50 : vector<128x512xf32>
    %52 = vector.broadcast %45 : vector<128x1xf32> to vector<128x512xf32>
    %53 = arith.mulf %51, %52 : vector<128x512xf32>
    %cst_26 = arith.constant dense<0.000000e+00> : vector<512xf32>
    %54 = vector.multi_reduction <add>, %53, %cst_26 [0] : vector<128x512xf32> to vector<512xf32>
    %55 = vector.shape_cast %54 : vector<512xf32> to vector<1x512xf32>
    %56 = arith.addf %42, %55 : vector<1x512xf32>
    %c384 = arith.constant 384 : index
    %c0_27 = arith.constant 0 : index
    %57 = vector.load %arg4[%c384, %c0_27] : memref<1280x1xf32, #tpu.memory_space<vmem>>, vector<128x1xf32>
    %c384_28 = arith.constant 384 : index
    %c0_29 = arith.constant 0 : index
    %58 = vector.load %arg5[%c384_28, %c0_29] : memref<1280x1xf32, #tpu.memory_space<vmem>>, vector<128x1xf32>
    %c384_30 = arith.constant 384 : index
    %c0_31 = arith.constant 0 : index
    %59 = vector.load %arg6[%c384_30, %c0_31] : memref<1280x1xf32, #tpu.memory_space<vmem>>, vector<128x1xf32>
    %60 = vector.broadcast %57 : vector<128x1xf32> to vector<128x512xf32>
    %61 = vector.broadcast %13 : vector<1x512xf32> to vector<128x512xf32>
    %62 = arith.mulf %60, %61 : vector<128x512xf32>
    %63 = vector.broadcast %58 : vector<128x1xf32> to vector<128x512xf32>
    %64 = arith.addf %62, %63 : vector<128x512xf32>
    %65 = math.tanh %64 : vector<128x512xf32>
    %66 = vector.broadcast %59 : vector<128x1xf32> to vector<128x512xf32>
    %67 = arith.mulf %65, %66 : vector<128x512xf32>
    %cst_32 = arith.constant dense<0.000000e+00> : vector<512xf32>
    %68 = vector.multi_reduction <add>, %67, %cst_32 [0] : vector<128x512xf32> to vector<512xf32>
    %69 = vector.shape_cast %68 : vector<512xf32> to vector<1x512xf32>
    %70 = arith.addf %56, %69 : vector<1x512xf32>
    %c512 = arith.constant 512 : index
    %c0_33 = arith.constant 0 : index
    %71 = vector.load %arg4[%c512, %c0_33] : memref<1280x1xf32, #tpu.memory_space<vmem>>, vector<128x1xf32>
    %c512_34 = arith.constant 512 : index
    %c0_35 = arith.constant 0 : index
    %72 = vector.load %arg5[%c512_34, %c0_35] : memref<1280x1xf32, #tpu.memory_space<vmem>>, vector<128x1xf32>
    %c512_36 = arith.constant 512 : index
    %c0_37 = arith.constant 0 : index
    %73 = vector.load %arg6[%c512_36, %c0_37] : memref<1280x1xf32, #tpu.memory_space<vmem>>, vector<128x1xf32>
    %74 = vector.broadcast %71 : vector<128x1xf32> to vector<128x512xf32>
    %75 = vector.broadcast %13 : vector<1x512xf32> to vector<128x512xf32>
    %76 = arith.mulf %74, %75 : vector<128x512xf32>
    %77 = vector.broadcast %72 : vector<128x1xf32> to vector<128x512xf32>
    %78 = arith.addf %76, %77 : vector<128x512xf32>
    %79 = math.tanh %78 : vector<128x512xf32>
    %80 = vector.broadcast %73 : vector<128x1xf32> to vector<128x512xf32>
    %81 = arith.mulf %79, %80 : vector<128x512xf32>
    %cst_38 = arith.constant dense<0.000000e+00> : vector<512xf32>
    %82 = vector.multi_reduction <add>, %81, %cst_38 [0] : vector<128x512xf32> to vector<512xf32>
    %83 = vector.shape_cast %82 : vector<512xf32> to vector<1x512xf32>
    %84 = arith.addf %70, %83 : vector<1x512xf32>
    %c640 = arith.constant 640 : index
    %c0_39 = arith.constant 0 : index
    %85 = vector.load %arg4[%c640, %c0_39] : memref<1280x1xf32, #tpu.memory_space<vmem>>, vector<128x1xf32>
    %c640_40 = arith.constant 640 : index
    %c0_41 = arith.constant 0 : index
    %86 = vector.load %arg5[%c640_40, %c0_41] : memref<1280x1xf32, #tpu.memory_space<vmem>>, vector<128x1xf32>
    %c640_42 = arith.constant 640 : index
    %c0_43 = arith.constant 0 : index
    %87 = vector.load %arg6[%c640_42, %c0_43] : memref<1280x1xf32, #tpu.memory_space<vmem>>, vector<128x1xf32>
    %88 = vector.broadcast %85 : vector<128x1xf32> to vector<128x512xf32>
    %89 = vector.broadcast %13 : vector<1x512xf32> to vector<128x512xf32>
    %90 = arith.mulf %88, %89 : vector<128x512xf32>
    %91 = vector.broadcast %86 : vector<128x1xf32> to vector<128x512xf32>
    %92 = arith.addf %90, %91 : vector<128x512xf32>
    %93 = math.tanh %92 : vector<128x512xf32>
    %94 = vector.broadcast %87 : vector<128x1xf32> to vector<128x512xf32>
    %95 = arith.mulf %93, %94 : vector<128x512xf32>
    %cst_44 = arith.constant dense<0.000000e+00> : vector<512xf32>
    %96 = vector.multi_reduction <add>, %95, %cst_44 [0] : vector<128x512xf32> to vector<512xf32>
    %97 = vector.shape_cast %96 : vector<512xf32> to vector<1x512xf32>
    %98 = arith.addf %84, %97 : vector<1x512xf32>
    %c768 = arith.constant 768 : index
    %c0_45 = arith.constant 0 : index
    %99 = vector.load %arg4[%c768, %c0_45] : memref<1280x1xf32, #tpu.memory_space<vmem>>, vector<128x1xf32>
    %c768_46 = arith.constant 768 : index
    %c0_47 = arith.constant 0 : index
    %100 = vector.load %arg5[%c768_46, %c0_47] : memref<1280x1xf32, #tpu.memory_space<vmem>>, vector<128x1xf32>
    %c768_48 = arith.constant 768 : index
    %c0_49 = arith.constant 0 : index
    %101 = vector.load %arg6[%c768_48, %c0_49] : memref<1280x1xf32, #tpu.memory_space<vmem>>, vector<128x1xf32>
    %102 = vector.broadcast %99 : vector<128x1xf32> to vector<128x512xf32>
    %103 = vector.broadcast %13 : vector<1x512xf32> to vector<128x512xf32>
    %104 = arith.mulf %102, %103 : vector<128x512xf32>
    %105 = vector.broadcast %100 : vector<128x1xf32> to vector<128x512xf32>
    %106 = arith.addf %104, %105 : vector<128x512xf32>
    %107 = math.tanh %106 : vector<128x512xf32>
    %108 = vector.broadcast %101 : vector<128x1xf32> to vector<128x512xf32>
    %109 = arith.mulf %107, %108 : vector<128x512xf32>
    %cst_50 = arith.constant dense<0.000000e+00> : vector<512xf32>
    %110 = vector.multi_reduction <add>, %109, %cst_50 [0] : vector<128x512xf32> to vector<512xf32>
    %111 = vector.shape_cast %110 : vector<512xf32> to vector<1x512xf32>
    %112 = arith.addf %98, %111 : vector<1x512xf32>
    %c896 = arith.constant 896 : index
    %c0_51 = arith.constant 0 : index
    %113 = vector.load %arg4[%c896, %c0_51] : memref<1280x1xf32, #tpu.memory_space<vmem>>, vector<128x1xf32>
    %c896_52 = arith.constant 896 : index
    %c0_53 = arith.constant 0 : index
    %114 = vector.load %arg5[%c896_52, %c0_53] : memref<1280x1xf32, #tpu.memory_space<vmem>>, vector<128x1xf32>
    %c896_54 = arith.constant 896 : index
    %c0_55 = arith.constant 0 : index
    %115 = vector.load %arg6[%c896_54, %c0_55] : memref<1280x1xf32, #tpu.memory_space<vmem>>, vector<128x1xf32>
    %116 = vector.broadcast %113 : vector<128x1xf32> to vector<128x512xf32>
    %117 = vector.broadcast %13 : vector<1x512xf32> to vector<128x512xf32>
    %118 = arith.mulf %116, %117 : vector<128x512xf32>
    %119 = vector.broadcast %114 : vector<128x1xf32> to vector<128x512xf32>
    %120 = arith.addf %118, %119 : vector<128x512xf32>
    %121 = math.tanh %120 : vector<128x512xf32>
    %122 = vector.broadcast %115 : vector<128x1xf32> to vector<128x512xf32>
    %123 = arith.mulf %121, %122 : vector<128x512xf32>
    %cst_56 = arith.constant dense<0.000000e+00> : vector<512xf32>
    %124 = vector.multi_reduction <add>, %123, %cst_56 [0] : vector<128x512xf32> to vector<512xf32>
    %125 = vector.shape_cast %124 : vector<512xf32> to vector<1x512xf32>
    %126 = arith.addf %112, %125 : vector<1x512xf32>
    %c1024 = arith.constant 1024 : index
    %c0_57 = arith.constant 0 : index
    %127 = vector.load %arg4[%c1024, %c0_57] : memref<1280x1xf32, #tpu.memory_space<vmem>>, vector<128x1xf32>
    %c1024_58 = arith.constant 1024 : index
    %c0_59 = arith.constant 0 : index
    %128 = vector.load %arg5[%c1024_58, %c0_59] : memref<1280x1xf32, #tpu.memory_space<vmem>>, vector<128x1xf32>
    %c1024_60 = arith.constant 1024 : index
    %c0_61 = arith.constant 0 : index
    %129 = vector.load %arg6[%c1024_60, %c0_61] : memref<1280x1xf32, #tpu.memory_space<vmem>>, vector<128x1xf32>
    %130 = vector.broadcast %127 : vector<128x1xf32> to vector<128x512xf32>
    %131 = vector.broadcast %13 : vector<1x512xf32> to vector<128x512xf32>
    %132 = arith.mulf %130, %131 : vector<128x512xf32>
    %133 = vector.broadcast %128 : vector<128x1xf32> to vector<128x512xf32>
    %134 = arith.addf %132, %133 : vector<128x512xf32>
    %135 = math.tanh %134 : vector<128x512xf32>
    %136 = vector.broadcast %129 : vector<128x1xf32> to vector<128x512xf32>
    %137 = arith.mulf %135, %136 : vector<128x512xf32>
    %cst_62 = arith.constant dense<0.000000e+00> : vector<512xf32>
    %138 = vector.multi_reduction <add>, %137, %cst_62 [0] : vector<128x512xf32> to vector<512xf32>
    %139 = vector.shape_cast %138 : vector<512xf32> to vector<1x512xf32>
    %140 = arith.addf %126, %139 : vector<1x512xf32>
    %c1152 = arith.constant 1152 : index
    %c0_63 = arith.constant 0 : index
    %141 = vector.load %arg4[%c1152, %c0_63] : memref<1280x1xf32, #tpu.memory_space<vmem>>, vector<128x1xf32>
    %c1152_64 = arith.constant 1152 : index
    %c0_65 = arith.constant 0 : index
    %142 = vector.load %arg5[%c1152_64, %c0_65] : memref<1280x1xf32, #tpu.memory_space<vmem>>, vector<128x1xf32>
    %c1152_66 = arith.constant 1152 : index
    %c0_67 = arith.constant 0 : index
    %143 = vector.load %arg6[%c1152_66, %c0_67] : memref<1280x1xf32, #tpu.memory_space<vmem>>, vector<128x1xf32>
    %144 = vector.broadcast %141 : vector<128x1xf32> to vector<128x512xf32>
    %145 = vector.broadcast %13 : vector<1x512xf32> to vector<128x512xf32>
    %146 = arith.mulf %144, %145 : vector<128x512xf32>
    %147 = vector.broadcast %142 : vector<128x1xf32> to vector<128x512xf32>
    %148 = arith.addf %146, %147 : vector<128x512xf32>
    %149 = math.tanh %148 : vector<128x512xf32>
    %150 = vector.broadcast %143 : vector<128x1xf32> to vector<128x512xf32>
    %151 = arith.mulf %149, %150 : vector<128x512xf32>
    %cst_68 = arith.constant dense<0.000000e+00> : vector<512xf32>
    %152 = vector.multi_reduction <add>, %151, %cst_68 [0] : vector<128x512xf32> to vector<512xf32>
    %153 = vector.shape_cast %152 : vector<512xf32> to vector<1x512xf32>
    %154 = arith.addf %140, %153 : vector<1x512xf32>
    %c0_69 = arith.constant 0 : index
    %c0_70 = arith.constant 0 : index
    %155 = vector.load %arg7[%c0_69, %c0_70] : memref<1x1xf32, #tpu.memory_space<vmem>>, vector<1x1xf32>
    %156 = vector.broadcast %155 : vector<1x1xf32> to vector<1x512xf32>
    %157 = arith.addf %154, %156 : vector<1x512xf32>
    %158 = math.tanh %157 : vector<1x512xf32>
    %cst_71 = arith.constant 5.000000e-01 : f32
    %159 = vector.broadcast %cst_71 : f32 to vector<1x512xf32>
    %160 = arith.mulf %159, %158 : vector<1x512xf32>
    %cst_72 = arith.constant 5.000000e-01 : f32
    %161 = vector.broadcast %cst_72 : f32 to vector<1x512xf32>
    %162 = arith.addf %160, %161 : vector<1x512xf32>
    %163 = vector.shape_cast %162 : vector<1x512xf32> to vector<1x1x512xf32>
    %c0_73 = arith.constant 0 : index
    %c0_74 = arith.constant 0 : index
    %c0_75 = arith.constant 0 : index
    %164 = vector.load %arg8[%c0_73, %c0_74, %c0_75] : memref<1x1x512xf32, #tpu.memory_space<vmem>>, vector<1x1x512xf32>
    tpu.vector_store %arg8[%c0_73, %c0_74, %c0_75], %163 {strides = array<i32>} : memref<1x1x512xf32, #tpu.memory_space<vmem>>, vector<1x1x512xf32>,
    return
  }
  func.func @transform_0(%arg0: i32) -> (i32, i32) {
    %c0_i32 = arith.constant 0 : i32
    %c0_i32_0 = arith.constant 0 : i32
    return %c0_i32, %arg0 : i32, i32
  }
  func.func @transform_1(%arg0: i32) -> (i32, i32) {
    %c0_i32 = arith.constant 0 : i32
    %c0_i32_0 = arith.constant 0 : i32
    %c0_i32_1 = arith.constant 0 : i32
    return %c0_i32, %c0_i32_0 : i32, i32
  }
  func.func @transform_2(%arg0: i32) -> (i32, i32) {
    %c0_i32 = arith.constant 0 : i32
    %c0_i32_0 = arith.constant 0 : i32
    %c0_i32_1 = arith.constant 0 : i32
    return %c0_i32, %c0_i32_0 : i32, i32
  }
  func.func @transform_3(%arg0: i32) -> (i32, i32) {
    %c0_i32 = arith.constant 0 : i32
    %c0_i32_0 = arith.constant 0 : i32
    %c0_i32_1 = arith.constant 0 : i32
    return %c0_i32, %c0_i32_0 : i32, i32
  }
  func.func @transform_4(%arg0: i32) -> (i32, i32) {
    %c0_i32 = arith.constant 0 : i32
    %c0_i32_0 = arith.constant 0 : i32
    %c0_i32_1 = arith.constant 0 : i32
    return %c0_i32, %c0_i32_0 : i32, i32
  }
  func.func @transform_5(%arg0: i32) -> (i32, i32) {
    %c0_i32 = arith.constant 0 : i32
    %c0_i32_0 = arith.constant 0 : i32
    %c0_i32_1 = arith.constant 0 : i32
    return %c0_i32, %c0_i32_0 : i32, i32
  }
  func.func @transform_6(%arg0: i32) -> (i32, i32) {
    %c0_i32 = arith.constant 0 : i32
    %c0_i32_0 = arith.constant 0 : i32
    %c0_i32_1 = arith.constant 0 : i32
    return %c0_i32, %c0_i32_0 : i32, i32
  }
  func.func @transform_7(%arg0: i32) -> (i32, i32, i32) {
    %c0_i32 = arith.constant 0 : i32
    %c0_i32_0 = arith.constant 0 : i32
    %c0_i32_1 = arith.constant 0 : i32
    return %arg0, %c0_i32, %c0_i32_0 : i32, i32, i32
  }
}

</mosaic_0001>

<llo_original>
// kernel: tpu_custom_call.1
$region0: #{tpu_custom_call.1}
  #allocation0 [shape = 'u32[]', space=smem, size = 0x4, offset = 0x4, fixed_abs, tag = 'smem constant byte address 0x4 - core index']
  #allocation1 [shape = 'u32[144,128]{1,0:T(1,128)}', space=vmem, size = 0x12000, scoped, tag = 'internal scratch']
  #allocation2 [shape = 'f32[1,1]{1,0:T(1,128)S(1)}', space=vmem, size = 0x200, scoped, tag = 'scoped memory for tpu_custom_call.1']
  #allocation3 [shape = 'f32[1,1]{1,0:T(1,128)S(1)}', space=vmem, size = 0x200, scoped, tag = 'scoped memory for tpu_custom_call.1']
  %s0 = inlined_call_operand.vmem [shape: f32[8,512], index: 0, kind: input, shape index: {}]
  %s1 = inlined_call_operand.vmem [shape: f32[8,1], index: 1, kind: input, shape index: {}]
  %s2 = inlined_call_operand.<no memory space> [shape: f32[1,1], index: 2, kind: input, shape index: {}]
  %s3 = inlined_call_operand.vmem [shape: f32[1280,1], index: 3, kind: input, shape index: {}]
  %s4 = inlined_call_operand.vmem [shape: f32[1280,1], index: 4, kind: input, shape index: {}]
  %s5 = inlined_call_operand.vmem [shape: f32[1280,1], index: 5, kind: input, shape index: {}]
  %s6 = inlined_call_operand.<no memory space> [shape: f32[1,1], index: 6, kind: input, shape index: {}]
  %s7 = inlined_call_operand.hbm [shape: f32[1,1,512], index: 7, kind: output, shape index: {}]
  %s8 = sld [smem:[#allocation0]]
  $region38: #{tpu_custom_call.1} parent=0
    _
  %s10 = ssub.s32 1, %s8
  %s11 = scalar_select 0, %s10, %s8
  %v12 = vstv %s2
  %13 = vst [vmem:[#allocation2] sm:$0x1] %v12
  %v14 = vstv %s6
  %15 = vst [vmem:[#allocation3] sm:$0x1] %v14
  $region1: #{tpu_custom_call.1} parent=0
    #allocation4 [shape = 'u8[2048]{0}', space=vmem, size = 0x800, scoped, tag = 'output window, operand 0, single buffered']
    #allocation5 [shape = 's32[1]{0}', space=sflag, size = 0x4, scoped, tag = 'scoped memory for tpu_custom_call.1']
    %16 = vsyncpa [#allocation5], 0
    // Predicated region
    $region2: #{tpu_custom_call.1} parent=1 // pred_check
      _
    $region3: #{tpu_custom_call.1} parent=1 // pred_check_branch
      %18 = sbr.rel (0) target = $region5
    $region4: #{tpu_custom_call.1} parent=1 // pred_region
      _
    $region5: #{tpu_custom_call.1} parent=1 // pred_fallthru
      _
    // Predicated region
    $region6: #{tpu_custom_call.1} parent=1 // pred_check
      _
    $region7: #{tpu_custom_call.1} parent=1 // pred_check_branch
      %20 = sbr.rel (0) target = $region9
    $region8: #{tpu_custom_call.1} parent=1 // pred_region
      _
    $region9: #{tpu_custom_call.1} parent=1 // pred_fallthru
      _
    // Predicated region
    $region10: #{tpu_custom_call.1} parent=1 // pred_check
      _
    $region11: #{tpu_custom_call.1} parent=1 // pred_check_branch
      %22 = sbr.rel (0) target = $region13
    $region12: #{tpu_custom_call.1} parent=1 // pred_region
      _
    $region13: #{tpu_custom_call.1} parent=1 // pred_fallthru
      _
    // Predicated region
    $region14: #{tpu_custom_call.1} parent=1 // pred_check
      _
    $region15: #{tpu_custom_call.1} parent=1 // pred_check_branch
      %24 = sbr.rel (0) target = $region17
    $region16: #{tpu_custom_call.1} parent=1 // pred_region
      _
    $region17: #{tpu_custom_call.1} parent=1 // pred_fallthru
      _
    // Predicated region
    $region18: #{tpu_custom_call.1} parent=1 // pred_check
      _
    $region19: #{tpu_custom_call.1} parent=1 // pred_check_branch
      %26 = sbr.rel (0) target = $region21
    $region20: #{tpu_custom_call.1} parent=1 // pred_region
      _
    $region21: #{tpu_custom_call.1} parent=1 // pred_fallthru
      _
    // Predicated region
    $region22: #{tpu_custom_call.1} parent=1 // pred_check
      _
    $region23: #{tpu_custom_call.1} parent=1 // pred_check_branch
      %28 = sbr.rel (0) target = $region25
    $region24: #{tpu_custom_call.1} parent=1 // pred_region
      _
    $region25: #{tpu_custom_call.1} parent=1 // pred_fallthru
      _
    // Predicated region
    $region26: #{tpu_custom_call.1} parent=1 // pred_check
      _
    $region27: #{tpu_custom_call.1} parent=1 // pred_check_branch
      %30 = sbr.rel (0) target = $region29
    $region28: #{tpu_custom_call.1} parent=1 // pred_region
      _
    $region29: #{tpu_custom_call.1} parent=1 // pred_fallthru
      _
    %v31 = vld [vmem:[%s0] sm:$0xff]
    %v32 = vld [vmem:[%s0 + $0x8] sm:$0xff]
    %v33 = vld [vmem:[%s0 + $0x10] sm:$0xff]
    %v34 = vld [vmem:[%s0 + $0x18] sm:$0xff]
    %v35 = vld [vmem:[%s1] sm:$0xff]
    %37 = vset.pattern.permute.xlu0 0
    %38 = vperm.xlu0 %37, %v35
    %v39 = vpop.permute.xlu0 %38
    %v41 = vmul.f32 %v31, %v39
    %v42 = vmul.f32 %v32, %v39
    %v43 = vmul.f32 %v33, %v39
    %v44 = vmul.f32 %v34, %v39
    %v45 = vrot.slane %v41, 4
    %v46 = vadd.f32 %v41, %v45
    %v47 = vrot.slane %v46, 2
    %v48 = vadd.f32 %v46, %v47
    %v49 = vrot.slane %v48, 1
    %v50 = vadd.f32 %v48, %v49
    %v51 = vrot.slane %v42, 4
    %v52 = vadd.f32 %v42, %v51
    %v53 = vrot.slane %v52, 2
    %v54 = vadd.f32 %v52, %v53
    %v55 = vrot.slane %v54, 1
    %v56 = vadd.f32 %v54, %v55
    %v57 = vrot.slane %v43, 4
    %v58 = vadd.f32 %v43, %v57
    %v59 = vrot.slane %v58, 2
    %v60 = vadd.f32 %v58, %v59
    %v61 = vrot.slane %v60, 1
    %v62 = vadd.f32 %v60, %v61
    %v63 = vrot.slane %v44, 4
    %v64 = vadd.f32 %v44, %v63
    %v65 = vrot.slane %v64, 2
    %v66 = vadd.f32 %v64, %v65
    %v67 = vrot.slane %v66, 1
    %v68 = vadd.f32 %v66, %v67
    %v69 = vld [vmem:[#allocation2] sm:$0x1]
    %71 = vset.pattern.permute.xlu0 0
    %72 = vperm.xlu0 %71, %v69
    %v73 = vpop.permute.xlu0 %72
    %v75 = vlaneseq
    %v76 = vshrl.u32 %v75, 7
    %v77 = vsub.s32 0, %v76
    %v78 = vrot.slane %v73, %v77
    %v79 = vadd.f32 %v50, %v78
    %v80 = vadd.f32 %v56, %v78
    %v81 = vadd.f32 %v62, %v78
    %v82 = vadd.f32 %v68, %v78
    %v83 = vtanh.pop %v79
    %v84 = vtanh.pop %v80
    %v85 = vtanh.pop %v81
    %v86 = vtanh.pop %v82
    %v87 = vmul.f32 %v83, 0.5
    %v88 = vmul.f32 %v84, 0.5
    %v89 = vmul.f32 %v85, 0.5
    %v90 = vmul.f32 %v86, 0.5
    %v91 = vadd.f32 %v87, 0.5
    %v92 = vadd.f32 %v88, 0.5
    %v93 = vadd.f32 %v89, 0.5
    %v94 = vadd.f32 %v90, 0.5
    %v95 = vld [vmem:[%s3] sm:$0xff]
    %v96 = vld [vmem:[%s3 + $0x8] sm:$0xff]
    %v97 = vld [vmem:[%s3 + $0x10] sm:$0xff]
    %v98 = vld [vmem:[%s3 + $0x18] sm:$0xff]
    %v99 = vld [vmem:[%s3 + $0x20] sm:$0xff]
    %v100 = vld [vmem:[%s3 + $0x28] sm:$0xff]
    %v101 = vld [vmem:[%s3 + $0x30] sm:$0xff]
    %v102 = vld [vmem:[%s3 + $0x38] sm:$0xff]
    %v103 = vld [vmem:[%s3 + $0x40] sm:$0xff]
    %v104 = vld [vmem:[%s3 + $0x48] sm:$0xff]
    %v105 = vld [vmem:[%s3 + $0x50] sm:$0xff]
    %v106 = vld [vmem:[%s3 + $0x58] sm:$0xff]
    %v107 = vld [vmem:[%s3 + $0x60] sm:$0xff]
    %v108 = vld [vmem:[%s3 + $0x68] sm:$0xff]
    %v109 = vld [vmem:[%s3 + $0x70] sm:$0xff]
    %v110 = vld [vmem:[%s3 + $0x78] sm:$0xff]
    %v111 = vld [vmem:[%s4] sm:$0xff]
    %v112 = vld [vmem:[%s4 + $0x8] sm:$0xff]
    %v113 = vld [vmem:[%s4 + $0x10] sm:$0xff]
    %v114 = vld [vmem:[%s4 + $0x18] sm:$0xff]
    %v115 = vld [vmem:[%s4 + $0x20] sm:$0xff]
    %v116 = vld [vmem:[%s4 + $0x28] sm:$0xff]
    %v117 = vld [vmem:[%s4 + $0x30] sm:$0xff]
    %v118 = vld [vmem:[%s4 + $0x38] sm:$0xff]
    %v119 = vld [vmem:[%s4 + $0x40] sm:$0xff]
    %v120 = vld [vmem:[%s4 + $0x48] sm:$0xff]
    %v121 = vld [vmem:[%s4 + $0x50] sm:$0xff]
    %v122 = vld [vmem:[%s4 + $0x58] sm:$0xff]
    %v123 = vld [vmem:[%s4 + $0x60] sm:$0xff]
    %v124 = vld [vmem:[%s4 + $0x68] sm:$0xff]
    %v125 = vld [vmem:[%s4 + $0x70] sm:$0xff]
    %v126 = vld [vmem:[%s4 + $0x78] sm:$0xff]
    %v127 = vld [vmem:[%s5] sm:$0xff]
    %v128 = vld [vmem:[%s5 + $0x8] sm:$0xff]
    %v129 = vld [vmem:[%s5 + $0x10] sm:$0xff]
    %v130 = vld [vmem:[%s5 + $0x18] sm:$0xff]
    %v131 = vld [vmem:[%s5 + $0x20] sm:$0xff]
    %v132 = vld [vmem:[%s5 + $0x28] sm:$0xff]
    %v133 = vld [vmem:[%s5 + $0x30] sm:$0xff]
    %v134 = vld [vmem:[%s5 + $0x38] sm:$0xff]
    %v135 = vld [vmem:[%s5 + $0x40] sm:$0xff]
    %v136 = vld [vmem:[%s5 + $0x48] sm:$0xff]
    %v137 = vld [vmem:[%s5 + $0x50] sm:$0xff]
    %v138 = vld [vmem:[%s5 + $0x58] sm:$0xff]
    %v139 = vld [vmem:[%s5 + $0x60] sm:$0xff]
    %v140 = vld [vmem:[%s5 + $0x68] sm:$0xff]
    %v141 = vld [vmem:[%s5 + $0x70] sm:$0xff]
    %v142 = vld [vmem:[%s5 + $0x78] sm:$0xff]
    %144 = vset.pattern.permute.xlu0 0
    %145 = vperm.xlu0 %144, %v95
    %v146 = vpop.permute.xlu0 %145
    %149 = vset.pattern.permute.xlu0 0
    %150 = vperm.xlu0 %149, %v96
    %v151 = vpop.permute.xlu0 %150
    %154 = vset.pattern.permute.xlu0 0
    %155 = vperm.xlu0 %154, %v97
    %v156 = vpop.permute.xlu0 %155
    %159 = vset.pattern.permute.xlu0 0
    %160 = vperm.xlu0 %159, %v98
    %v161 = vpop.permute.xlu0 %160
    %164 = vset.pattern.permute.xlu0 0
    %165 = vperm.xlu0 %164, %v99
    %v166 = vpop.permute.xlu0 %165
    %169 = vset.pattern.permute.xlu0 0
    %170 = vperm.xlu0 %169, %v100
    %v171 = vpop.permute.xlu0 %170
    %174 = vset.pattern.permute.xlu0 0
    %175 = vperm.xlu0 %174, %v101
    %v176 = vpop.permute.xlu0 %175
    %179 = vset.pattern.permute.xlu0 0
    %180 = vperm.xlu0 %179, %v102
    %v181 = vpop.permute.xlu0 %180
    %184 = vset.pattern.permute.xlu0 0
    %185 = vperm.xlu0 %184, %v103
    %v186 = vpop.permute.xlu0 %185
    %189 = vset.pattern.permute.xlu0 0
    %190 = vperm.xlu0 %189, %v104
    %v191 = vpop.permute.xlu0 %190
    %194 = vset.pattern.permute.xlu0 0
    %195 = vperm.xlu0 %194, %v105
    %v196 = vpop.permute.xlu0 %195
    %199 = vset.pattern.permute.xlu0 0
    %200 = vperm.xlu0 %199, %v106
    %v201 = vpop.permute.xlu0 %200
    %204 = vset.pattern.permute.xlu0 0
    %205 = vperm.xlu0 %204, %v107
    %v206 = vpop.permute.xlu0 %205
    %209 = vset.pattern.permute.xlu0 0
    %210 = vperm.xlu0 %209, %v108
    %v211 = vpop.permute.xlu0 %210
    %214 = vset.pattern.permute.xlu0 0
    %215 = vperm.xlu0 %214, %v109
    %v216 = vpop.permute.xlu0 %215
    %219 = vset.pattern.permute.xlu0 0
    %220 = vperm.xlu0 %219, %v110
    %v221 = vpop.permute.xlu0 %220
    %v223 = vmul.f32 %v146, %v91
    %v224 = vmul.f32 %v146, %v92
    %v225 = vmul.f32 %v146, %v93
    %v226 = vmul.f32 %v146, %v94
    %v227 = vmul.f32 %v151, %v91
    %v228 = vmul.f32 %v151, %v92
    %v229 = vmul.f32 %v151, %v93
    %v230 = vmul.f32 %v151, %v94
    %v231 = vmul.f32 %v156, %v91
    %v232 = vmul.f32 %v156, %v92
    %v233 = vmul.f32 %v156, %v93
    %v234 = vmul.f32 %v156, %v94
    %v235 = vmul.f32 %v161, %v91
    %v236 = vmul.f32 %v161, %v92
    %v237 = vmul.f32 %v161, %v93
    %v238 = vmul.f32 %v161, %v94
    %v239 = vmul.f32 %v166, %v91
    %v240 = vmul.f32 %v166, %v92
    %v241 = vmul.f32 %v166, %v93
    %v242 = vmul.f32 %v166, %v94
    %v243 = vmul.f32 %v171, %v91
    %v244 = vmul.f32 %v171, %v92
    %v245 = vmul.f32 %v171, %v93
    %v246 = vmul.f32 %v171, %v94
    %v247 = vmul.f32 %v176, %v91
    %v248 = vmul.f32 %v176, %v92
    %v249 = vmul.f32 %v176, %v93
    %v250 = vmul.f32 %v176, %v94
    %v251 = vmul.f32 %v181, %v91
    %v252 = vmul.f32 %v181, %v92
    %v253 = vmul.f32 %v181, %v93
    %v254 = vmul.f32 %v181, %v94
    %v255 = vmul.f32 %v186, %v91
    %v256 = vmul.f32 %v186, %v92
    %v257 = vmul.f32 %v186, %v93
    %v258 = vmul.f32 %v186, %v94
    %v259 = vmul.f32 %v191, %v91
    %v260 = vmul.f32 %v191, %v92
    %v261 = vmul.f32 %v191, %v93
    %v262 = vmul.f32 %v191, %v94
    %v263 = vmul.f32 %v196, %v91
    %v264 = vmul.f32 %v196, %v92
    %v265 = vmul.f32 %v196, %v93
    %v266 = vmul.f32 %v196, %v94
    %v267 = vmul.f32 %v201, %v91
    %v268 = vmul.f32 %v201, %v92
    %v269 = vmul.f32 %v201, %v93
    %v270 = vmul.f32 %v201, %v94
    %v271 = vmul.f32 %v206, %v91
    %v272 = vmul.f32 %v206, %v92
    %v273 = vmul.f32 %v206, %v93
    %v274 = vmul.f32 %v206, %v94
    %v275 = vmul.f32 %v211, %v91
    %v276 = vmul.f32 %v211, %v92
    %v277 = vmul.f32 %v211, %v93
    %v278 = vmul.f32 %v211, %v94
    %v279 = vmul.f32 %v216, %v91
    %v280 = vmul.f32 %v216, %v92
    %v281 = vmul.f32 %v216, %v93
    %v282 = vmul.f32 %v216, %v94
    %v283 = vmul.f32 %v221, %v91
    %v284 = vmul.f32 %v221, %v92
    %v285 = vmul.f32 %v221, %v93
    %v286 = vmul.f32 %v221, %v94
    %288 = vset.pattern.permute.xlu0 0
    %289 = vperm.xlu0 %288, %v111
    %v290 = vpop.permute.xlu0 %289
    %293 = vset.pattern.permute.xlu0 0
    %294 = vperm.xlu0 %293, %v112
    %v295 = vpop.permute.xlu0 %294
    %298 = vset.pattern.permute.xlu0 0
    %299 = vperm.xlu0 %298, %v113
    %v300 = vpop.permute.xlu0 %299
    %303 = vset.pattern.permute.xlu0 0
    %304 = vperm.xlu0 %303, %v114
    %v305 = vpop.permute.xlu0 %304
    %308 = vset.pattern.permute.xlu0 0
    %309 = vperm.xlu0 %308, %v115
    %v310 = vpop.permute.xlu0 %309
    %313 = vset.pattern.permute.xlu0 0
    %314 = vperm.xlu0 %313, %v116
    %v315 = vpop.permute.xlu0 %314
    %318 = vset.pattern.permute.xlu0 0
    %319 = vperm.xlu0 %318, %v117
    %v320 = vpop.permute.xlu0 %319
    %323 = vset.pattern.permute.xlu0 0
    %324 = vperm.xlu0 %323, %v118
    %v325 = vpop.permute.xlu0 %324
    %328 = vset.pattern.permute.xlu0 0
    %329 = vperm.xlu0 %328, %v119
    %v330 = vpop.permute.xlu0 %329
    %333 = vset.pattern.permute.xlu0 0
    %334 = vperm.xlu0 %333, %v120
    %v335 = vpop.permute.xlu0 %334
    %338 = vset.pattern.permute.xlu0 0
    %339 = vperm.xlu0 %338, %v121
    %v340 = vpop.permute.xlu0 %339
    %343 = vset.pattern.permute.xlu0 0
    %344 = vperm.xlu0 %343, %v122
    %v345 = vpop.permute.xlu0 %344
    %348 = vset.pattern.permute.xlu0 0
    %349 = vperm.xlu0 %348, %v123
    %v350 = vpop.permute.xlu0 %349
    %353 = vset.pattern.permute.xlu0 0
    %354 = vperm.xlu0 %353, %v124
    %v355 = vpop.permute.xlu0 %354
    %358 = vset.pattern.permute.xlu0 0
    %359 = vperm.xlu0 %358, %v125
    %v360 = vpop.permute.xlu0 %359
    %363 = vset.pattern.permute.xlu0 0
    %364 = vperm.xlu0 %363, %v126
    %v365 = vpop.permute.xlu0 %364
    %v367 = vadd.f32 %v223, %v290
    %v368 = vadd.f32 %v224, %v290
    %v369 = vadd.f32 %v225, %v290
    %v370 = vadd.f32 %v226, %v290
    %v371 = vadd.f32 %v227, %v295
    %v372 = vadd.f32 %v228, %v295
    %v373 = vadd.f32 %v229, %v295
    %v374 = vadd.f32 %v230, %v295
    %v375 = vadd.f32 %v231, %v300
    %v376 = vadd.f32 %v232, %v300
    %v377 = vadd.f32 %v233, %v300
    %v378 = vadd.f32 %v234, %v300
    %v379 = vadd.f32 %v235, %v305
    %v380 = vadd.f32 %v236, %v305
    %v381 = vadd.f32 %v237, %v305
    %v382 = vadd.f32 %v238, %v305
    %v383 = vadd.f32 %v239, %v310
    %v384 = vadd.f32 %v240, %v310
    %v385 = vadd.f32 %v241, %v310
    %v386 = vadd.f32 %v242, %v310
    %v387 = vadd.f32 %v243, %v315
    %v388 = vadd.f32 %v244, %v315
    %v389 = vadd.f32 %v245, %v315
    %v390 = vadd.f32 %v246, %v315
    %v391 = vadd.f32 %v247, %v320
    %v392 = vadd.f32 %v248, %v320
    %v393 = vadd.f32 %v249, %v320
    %v394 = vadd.f32 %v250, %v320
    %v395 = vadd.f32 %v251, %v325
    %v396 = vadd.f32 %v252, %v325
    %v397 = vadd.f32 %v253, %v325
    %v398 = vadd.f32 %v254, %v325
    %v399 = vadd.f32 %v255, %v330
    %v400 = vadd.f32 %v256, %v330
    %v401 = vadd.f32 %v257, %v330
    %v402 = vadd.f32 %v258, %v330
    %v403 = vadd.f32 %v259, %v335
    %v404 = vadd.f32 %v260, %v335
    %v405 = vadd.f32 %v261, %v335
    %v406 = vadd.f32 %v262, %v335
    %v407 = vadd.f32 %v263, %v340
    %v408 = vadd.f32 %v264, %v340
    %v409 = vadd.f32 %v265, %v340
    %v410 = vadd.f32 %v266, %v340
    %v411 = vadd.f32 %v267, %v345
    %v412 = vadd.f32 %v268, %v345
    %v413 = vadd.f32 %v269, %v345
    %v414 = vadd.f32 %v270, %v345
    %v415 = vadd.f32 %v271, %v350
    %v416 = vadd.f32 %v272, %v350
    %v417 = vadd.f32 %v273, %v350
    %v418 = vadd.f32 %v274, %v350
    %v419 = vadd.f32 %v275, %v355
    %v420 = vadd.f32 %v276, %v355
    %v421 = vadd.f32 %v277, %v355
    %v422 = vadd.f32 %v278, %v355
    %v423 = vadd.f32 %v279, %v360
    %v424 = vadd.f32 %v280, %v360
    %v425 = vadd.f32 %v281, %v360
    %v426 = vadd.f32 %v282, %v360
    %v427 = vadd.f32 %v283, %v365
    %v428 = vadd.f32 %v284, %v365
    %v429 = vadd.f32 %v285, %v365
    %v430 = vadd.f32 %v286, %v365
    %v431 = vtanh.pop %v367
    %v432 = vtanh.pop %v368
    %v433 = vtanh.pop %v369
    %v434 = vtanh.pop %v370
    %v435 = vtanh.pop %v371
    %v436 = vtanh.pop %v372
    %v437 = vtanh.pop %v373
    %v438 = vtanh.pop %v374
    %v439 = vtanh.pop %v375
    %v440 = vtanh.pop %v376
    %v441 = vtanh.pop %v377
    %v442 = vtanh.pop %v378
    %v443 = vtanh.pop %v379
    %v444 = vtanh.pop %v380
    %v445 = vtanh.pop %v381
    %v446 = vtanh.pop %v382
    %v447 = vtanh.pop %v383
    %v448 = vtanh.pop %v384
    %v449 = vtanh.pop %v385
    %v450 = vtanh.pop %v386
    %v451 = vtanh.pop %v387
    %v452 = vtanh.pop %v388
    %v453 = vtanh.pop %v389
    %v454 = vtanh.pop %v390
    %v455 = vtanh.pop %v391
    %v456 = vtanh.pop %v392
    %v457 = vtanh.pop %v393
    %v458 = vtanh.pop %v394
    %v459 = vtanh.pop %v395
    %v460 = vtanh.pop %v396
    %v461 = vtanh.pop %v397
    %v462 = vtanh.pop %v398
    %v463 = vtanh.pop %v399
    %v464 = vtanh.pop %v400
    %v465 = vtanh.pop %v401
    %v466 = vtanh.pop %v402
    %v467 = vtanh.pop %v403
    %v468 = vtanh.pop %v404
    %v469 = vtanh.pop %v405
    %v470 = vtanh.pop %v406
    %v471 = vtanh.pop %v407
    %v472 = vtanh.pop %v408
    %v473 = vtanh.pop %v409
    %v474 = vtanh.pop %v410
    %v475 = vtanh.pop %v411
    %v476 = vtanh.pop %v412
    %v477 = vtanh.pop %v413
    %v478 = vtanh.pop %v414
    %v479 = vtanh.pop %v415
    %v480 = vtanh.pop %v416
    %v481 = vtanh.pop %v417
    %v482 = vtanh.pop %v418
    %v483 = vtanh.pop %v419
    %v484 = vtanh.pop %v420
    %v485 = vtanh.pop %v421
    %v486 = vtanh.pop %v422
    %v487 = vtanh.pop %v423
    %v488 = vtanh.pop %v424
    %v489 = vtanh.pop %v425
    %v490 = vtanh.pop %v426
    %v491 = vtanh.pop %v427
    %v492 = vtanh.pop %v428
    %v493 = vtanh.pop %v429
    %v494 = vtanh.pop %v430
    %496 = vset.pattern.permute.xlu0 0
    %497 = vperm.xlu0 %496, %v127
    %v498 = vpop.permute.xlu0 %497
    %501 = vset.pattern.permute.xlu0 0
    %502 = vperm.xlu0 %501, %v128
    %v503 = vpop.permute.xlu0 %502
    %506 = vset.pattern.permute.xlu0 0
    %507 = vperm.xlu0 %506, %v129
    %v508 = vpop.permute.xlu0 %507
    %511 = vset.pattern.permute.xlu0 0
    %512 = vperm.xlu0 %511, %v130
    %v513 = vpop.permute.xlu0 %512
    %516 = vset.pattern.permute.xlu0 0
    %517 = vperm.xlu0 %516, %v131
    %v518 = vpop.permute.xlu0 %517
    %521 = vset.pattern.permute.xlu0 0
    %522 = vperm.xlu0 %521, %v132
    %v523 = vpop.permute.xlu0 %522
    %526 = vset.pattern.permute.xlu0 0
    %527 = vperm.xlu0 %526, %v133
    %v528 = vpop.permute.xlu0 %527
    %531 = vset.pattern.permute.xlu0 0
    %532 = vperm.xlu0 %531, %v134
    %v533 = vpop.permute.xlu0 %532
    %536 = vset.pattern.permute.xlu0 0
    %537 = vperm.xlu0 %536, %v135
    %v538 = vpop.permute.xlu0 %537
    %541 = vset.pattern.permute.xlu0 0
    %542 = vperm.xlu0 %541, %v136
    %v543 = vpop.permute.xlu0 %542
    %546 = vset.pattern.permute.xlu0 0
    %547 = vperm.xlu0 %546, %v137
    %v548 = vpop.permute.xlu0 %547
    %551 = vset.pattern.permute.xlu0 0
    %552 = vperm.xlu0 %551, %v138
    %v553 = vpop.permute.xlu0 %552
    %556 = vset.pattern.permute.xlu0 0
    %557 = vperm.xlu0 %556, %v139
    %v558 = vpop.permute.xlu0 %557
    %561 = vset.pattern.permute.xlu0 0
    %562 = vperm.xlu0 %561, %v140
    %v563 = vpop.permute.xlu0 %562
    %566 = vset.pattern.permute.xlu0 0
    %567 = vperm.xlu0 %566, %v141
    %v568 = vpop.permute.xlu0 %567
    %571 = vset.pattern.permute.xlu0 0
    %572 = vperm.xlu0 %571, %v142
    %v573 = vpop.permute.xlu0 %572
    %v575 = vmul.f32 %v431, %v498
    %v576 = vmul.f32 %v432, %v498
    %v577 = vmul.f32 %v433, %v498
    %v578 = vmul.f32 %v434, %v498
    %v579 = vmul.f32 %v435, %v503
    %v580 = vmul.f32 %v436, %v503
    %v581 = vmul.f32 %v437, %v503
    %v582 = vmul.f32 %v438, %v503
    %v583 = vmul.f32 %v439, %v508
    %v584 = vmul.f32 %v440, %v508
    %v585 = vmul.f32 %v441, %v508
    %v586 = vmul.f32 %v442, %v508
    %v587 = vmul.f32 %v443, %v513
    %v588 = vmul.f32 %v444, %v513
    %v589 = vmul.f32 %v445, %v513
    %v590 = vmul.f32 %v446, %v513
    %v591 = vmul.f32 %v447, %v518
    %v592 = vmul.f32 %v448, %v518
    %v593 = vmul.f32 %v449, %v518
    %v594 = vmul.f32 %v450, %v518
    %v595 = vmul.f32 %v451, %v523
    %v596 = vmul.f32 %v452, %v523
    %v597 = vmul.f32 %v453, %v523
    %v598 = vmul.f32 %v454, %v523
    %v599 = vmul.f32 %v455, %v528
    %v600 = vmul.f32 %v456, %v528
    %v601 = vmul.f32 %v457, %v528
    %v602 = vmul.f32 %v458, %v528
    %v603 = vmul.f32 %v459, %v533
    %v604 = vmul.f32 %v460, %v533
    %v605 = vmul.f32 %v461, %v533
    %v606 = vmul.f32 %v462, %v533
    %v607 = vmul.f32 %v463, %v538
    %v608 = vmul.f32 %v464, %v538
    %v609 = vmul.f32 %v465, %v538
    %v610 = vmul.f32 %v466, %v538
    %v611 = vmul.f32 %v467, %v543
    %v612 = vmul.f32 %v468, %v543
    %v613 = vmul.f32 %v469, %v543
    %v614 = vmul.f32 %v470, %v543
    %v615 = vmul.f32 %v471, %v548
    %v616 = vmul.f32 %v472, %v548
    %v617 = vmul.f32 %v473, %v548
    %v618 = vmul.f32 %v474, %v548
    %v619 = vmul.f32 %v475, %v553
    %v620 = vmul.f32 %v476, %v553
    %v621 = vmul.f32 %v477, %v553
    %v622 = vmul.f32 %v478, %v553
    %v623 = vmul.f32 %v479, %v558
    %v624 = vmul.f32 %v480, %v558
    %v625 = vmul.f32 %v481, %v558
    %v626 = vmul.f32 %v482, %v558
    %v627 = vmul.f32 %v483, %v563
    %v628 = vmul.f32 %v484, %v563
    %v629 = vmul.f32 %v485, %v563
    %v630 = vmul.f32 %v486, %v563
    %v631 = vmul.f32 %v487, %v568
    %v632 = vmul.f32 %v488, %v568
    %v633 = vmul.f32 %v489, %v568
    %v634 = vmul.f32 %v490, %v568
    %v635 = vmul.f32 %v491, %v573
    %v636 = vmul.f32 %v492, %v573
    %v637 = vmul.f32 %v493, %v573
    %v638 = vmul.f32 %v494, %v573
    %v639 = vadd.f32 %v575, %v579
    %v640 = vadd.f32 %v639, %v583
    %v641 = vadd.f32 %v640, %v587
    %v642 = vadd.f32 %v641, %v591
    %v643 = vadd.f32 %v642, %v595
    %v644 = vadd.f32 %v643, %v599
    %v645 = vadd.f32 %v644, %v603
    %v646 = vadd.f32 %v645, %v607
    %v647 = vadd.f32 %v646, %v611
    %v648 = vadd.f32 %v647, %v615
    %v649 = vadd.f32 %v648, %v619
    %v650 = vadd.f32 %v649, %v623
    %v651 = vadd.f32 %v650, %v627
    %v652 = vadd.f32 %v651, %v631
    %v653 = vadd.f32 %v652, %v635
    %v654 = vrot.slane %v653, 4
    %v655 = vadd.f32 %v653, %v654
    %v656 = vrot.slane %v655, 2
    %v657 = vadd.f32 %v655, %v656
    %v658 = vrot.slane %v657, 1
    %v659 = vadd.f32 %v657, %v658
    %v660 = vadd.f32 %v576, %v580
    %v661 = vadd.f32 %v660, %v584
    %v662 = vadd.f32 %v661, %v588
    %v663 = vadd.f32 %v662, %v592
    %v664 = vadd.f32 %v663, %v596
    %v665 = vadd.f32 %v664, %v600
    %v666 = vadd.f32 %v665, %v604
    %v667 = vadd.f32 %v666, %v608
    %v668 = vadd.f32 %v667, %v612
    %v669 = vadd.f32 %v668, %v616
    %v670 = vadd.f32 %v669, %v620
    %v671 = vadd.f32 %v670, %v624
    %v672 = vadd.f32 %v671, %v628
    %v673 = vadd.f32 %v672, %v632
    %v674 = vadd.f32 %v673, %v636
    %v675 = vrot.slane %v674, 4
    %v676 = vadd.f32 %v674, %v675
    %v677 = vrot.slane %v676, 2
    %v678 = vadd.f32 %v676, %v677
    %v679 = vrot.slane %v678, 1
    %v680 = vadd.f32 %v678, %v679
    %v681 = vadd.f32 %v577, %v581
    %v682 = vadd.f32 %v681, %v585
    %v683 = vadd.f32 %v682, %v589
    %v684 = vadd.f32 %v683, %v593
    %v685 = vadd.f32 %v684, %v597
    %v686 = vadd.f32 %v685, %v601
    %v687 = vadd.f32 %v686, %v605
    %v688 = vadd.f32 %v687, %v609
    %v689 = vadd.f32 %v688, %v613
    %v690 = vadd.f32 %v689, %v617
    %v691 = vadd.f32 %v690, %v621
    %v692 = vadd.f32 %v691, %v625
    %v693 = vadd.f32 %v692, %v629
    %v694 = vadd.f32 %v693, %v633
    %v695 = vadd.f32 %v694, %v637
    %v696 = vrot.slane %v695, 4
    %v697 = vadd.f32 %v695, %v696
    %v698 = vrot.slane %v697, 2
    %v699 = vadd.f32 %v697, %v698
    %v700 = vrot.slane %v699, 1
    %v701 = vadd.f32 %v699, %v700
    %v702 = vadd.f32 %v578, %v582
    %v703 = vadd.f32 %v702, %v586
    %v704 = vadd.f32 %v703, %v590
    %v705 = vadd.f32 %v704, %v594
    %v706 = vadd.f32 %v705, %v598
    %v707 = vadd.f32 %v706, %v602
    %v708 = vadd.f32 %v707, %v606
    %v709 = vadd.f32 %v708, %v610
    %v710 = vadd.f32 %v709, %v614
    %v711 = vadd.f32 %v710, %v618
    %v712 = vadd.f32 %v711, %v622
    %v713 = vadd.f32 %v712, %v626
    %v714 = vadd.f32 %v713, %v630
    %v715 = vadd.f32 %v714, %v634
    %v716 = vadd.f32 %v715, %v638
    %v717 = vrot.slane %v716, 4
    %v718 = vadd.f32 %v716, %v717
    %v719 = vrot.slane %v718, 2
    %v720 = vadd.f32 %v718, %v719
    %v721 = vrot.slane %v720, 1
    %v722 = vadd.f32 %v720, %v721
    %v723 = vadd.f32 %v659, 0.0
    %v724 = vadd.f32 %v680, 0.0
    %v725 = vadd.f32 %v701, 0.0
    %v726 = vadd.f32 %v722, 0.0
    %v727 = vld [vmem:[%s3 + $0x80] sm:$0xff]
    %v728 = vld [vmem:[%s3 + $0x88] sm:$0xff]
    %v729 = vld [vmem:[%s3 + $0x90] sm:$0xff]
    %v730 = vld [vmem:[%s3 + $0x98] sm:$0xff]
    %v731 = vld [vmem:[%s3 + $0xa0] sm:$0xff]
    %v732 = vld [vmem:[%s3 + $0xa8] sm:$0xff]
    %v733 = vld [vmem:[%s3 + $0xb0] sm:$0xff]
    %v734 = vld [vmem:[%s3 + $0xb8] sm:$0xff]
    %v735 = vld [vmem:[%s3 + $0xc0] sm:$0xff]
    %v736 = vld [vmem:[%s3 + $0xc8] sm:$0xff]
    %v737 = vld [vmem:[%s3 + $0xd0] sm:$0xff]
    %v738 = vld [vmem:[%s3 + $0xd8] sm:$0xff]
    %v739 = vld [vmem:[%s3 + $0xe0] sm:$0xff]
    %v740 = vld [vmem:[%s3 + $0xe8] sm:$0xff]
    %v741 = vld [vmem:[%s3 + $0xf0] sm:$0xff]
    %v742 = vld [vmem:[%s3 + $0xf8] sm:$0xff]
    %v743 = vld [vmem:[%s4 + $0x80] sm:$0xff]
    %v744 = vld [vmem:[%s4 + $0x88] sm:$0xff]
    %v745 = vld [vmem:[%s4 + $0x90] sm:$0xff]
    %v746 = vld [vmem:[%s4 + $0x98] sm:$0xff]
    %v747 = vld [vmem:[%s4 + $0xa0] sm:$0xff]
    %v748 = vld [vmem:[%s4 + $0xa8] sm:$0xff]
    %v749 = vld [vmem:[%s4 + $0xb0] sm:$0xff]
    %v750 = vld [vmem:[%s4 + $0xb8] sm:$0xff]
    %v751 = vld [vmem:[%s4 + $0xc0] sm:$0xff]
    %v752 = vld [vmem:[%s4 + $0xc8] sm:$0xff]
    %v753 = vld [vmem:[%s4 + $0xd0] sm:$0xff]
    %v754 = vld [vmem:[%s4 + $0xd8] sm:$0xff]
    %v755 = vld [vmem:[%s4 + $0xe0] sm:$0xff]
    %v756 = vld [vmem:[%s4 + $0xe8] sm:$0xff]
    %v757 = vld [vmem:[%s4 + $0xf0] sm:$0xff]
    %v758 = vld [vmem:[%s4 + $0xf8] sm:$0xff]
    %v759 = vld [vmem:[%s5 + $0x80] sm:$0xff]
    %v760 = vld [vmem:[%s5 + $0x88] sm:$0xff]
    %v761 = vld [vmem:[%s5 + $0x90] sm:$0xff]
    %v762 = vld [vmem:[%s5 + $0x98] sm:$0xff]
    %v763 = vld [vmem:[%s5 + $0xa0] sm:$0xff]
    %v764 = vld [vmem:[%s5 + $0xa8] sm:$0xff]
    %v765 = vld [vmem:[%s5 + $0xb0] sm:$0xff]
    %v766 = vld [vmem:[%s5 + $0xb8] sm:$0xff]
    %v767 = vld [vmem:[%s5 + $0xc0] sm:$0xff]
    %v768 = vld [vmem:[%s5 + $0xc8] sm:$0xff]
    %v769 = vld [vmem:[%s5 + $0xd0] sm:$0xff]
    %v770 = vld [vmem:[%s5 + $0xd8] sm:$0xff]
    %v771 = vld [vmem:[%s5 + $0xe0] sm:$0xff]
    %v772 = vld [vmem:[%s5 + $0xe8] sm:$0xff]
    %v773 = vld [vmem:[%s5 + $0xf0] sm:$0xff]
    %v774 = vld [vmem:[%s5 + $0xf8] sm:$0xff]
    %776 = vset.pattern.permute.xlu0 0
    %777 = vperm.xlu0 %776, %v727
    %v778 = vpop.permute.xlu0 %777
    %781 = vset.pattern.permute.xlu0 0
    %782 = vperm.xlu0 %781, %v728
    %v783 = vpop.permute.xlu0 %782
    %786 = vset.pattern.permute.xlu0 0
    %787 = vperm.xlu0 %786, %v729
    %v788 = vpop.permute.xlu0 %787
    %791 = vset.pattern.permute.xlu0 0
    %792 = vperm.xlu0 %791, %v730
    %v793 = vpop.permute.xlu0 %792
    %796 = vset.pattern.permute.xlu0 0
    %797 = vperm.xlu0 %796, %v731
    %v798 = vpop.permute.xlu0 %797
    %801 = vset.pattern.permute.xlu0 0
    %802 = vperm.xlu0 %801, %v732
    %v803 = vpop.permute.xlu0 %802
    %806 = vset.pattern.permute.xlu0 0
    %807 = vperm.xlu0 %806, %v733
    %v808 = vpop.permute.xlu0 %807
    %811 = vset.pattern.permute.xlu0 0
    %812 = vperm.xlu0 %811, %v734
    %v813 = vpop.permute.xlu0 %812
    %816 = vset.pattern.permute.xlu0 0
    %817 = vperm.xlu0 %816, %v735
    %v818 = vpop.permute.xlu0 %817
    %821 = vset.pattern.permute.xlu0 0
    %822 = vperm.xlu0 %821, %v736
    %v823 = vpop.permute.xlu0 %822
    %826 = vset.pattern.permute.xlu0 0
    %827 = vperm.xlu0 %826, %v737
    %v828 = vpop.permute.xlu0 %827
    %831 = vset.pattern.permute.xlu0 0
    %832 = vperm.xlu0 %831, %v738
    %v833 = vpop.permute.xlu0 %832
    %836 = vset.pattern.permute.xlu0 0
    %837 = vperm.xlu0 %836, %v739
    %v838 = vpop.permute.xlu0 %837
    %841 = vset.pattern.permute.xlu0 0
    %842 = vperm.xlu0 %841, %v740
    %v843 = vpop.permute.xlu0 %842
    %846 = vset.pattern.permute.xlu0 0
    %847 = vperm.xlu0 %846, %v741
    %v848 = vpop.permute.xlu0 %847
    %851 = vset.pattern.permute.xlu0 0
    %852 = vperm.xlu0 %851, %v742
    %v853 = vpop.permute.xlu0 %852
    %v855 = vmul.f32 %v778, %v91
    %v856 = vmul.f32 %v778, %v92
    %v857 = vmul.f32 %v778, %v93
    %v858 = vmul.f32 %v778, %v94
    %v859 = vmul.f32 %v783, %v91
    %v860 = vmul.f32 %v783, %v92
    %v861 = vmul.f32 %v783, %v93
    %v862 = vmul.f32 %v783, %v94
    %v863 = vmul.f32 %v788, %v91
    %v864 = vmul.f32 %v788, %v92
    %v865 = vmul.f32 %v788, %v93
    %v866 = vmul.f32 %v788, %v94
    %v867 = vmul.f32 %v793, %v91
    %v868 = vmul.f32 %v793, %v92
    %v869 = vmul.f32 %v793, %v93
    %v870 = vmul.f32 %v793, %v94
    %v871 = vmul.f32 %v798, %v91
    %v872 = vmul.f32 %v798, %v92
    %v873 = vmul.f32 %v798, %v93
    %v874 = vmul.f32 %v798, %v94
    %v875 = vmul.f32 %v803, %v91
    %v876 = vmul.f32 %v803, %v92
    %v877 = vmul.f32 %v803, %v93
    %v878 = vmul.f32 %v803, %v94
    %v879 = vmul.f32 %v808, %v91
    %v880 = vmul.f32 %v808, %v92
    %v881 = vmul.f32 %v808, %v93
    %v882 = vmul.f32 %v808, %v94
    %v883 = vmul.f32 %v813, %v91
    %v884 = vmul.f32 %v813, %v92
    %v885 = vmul.f32 %v813, %v93
    %v886 = vmul.f32 %v813, %v94
    %v887 = vmul.f32 %v818, %v91
    %v888 = vmul.f32 %v818, %v92
    %v889 = vmul.f32 %v818, %v93
    %v890 = vmul.f32 %v818, %v94
    %v891 = vmul.f32 %v823, %v91
    %v892 = vmul.f32 %v823, %v92
    %v893 = vmul.f32 %v823, %v93
    %v894 = vmul.f32 %v823, %v94
    %v895 = vmul.f32 %v828, %v91
    %v896 = vmul.f32 %v828, %v92
    %v897 = vmul.f32 %v828, %v93
    %v898 = vmul.f32 %v828, %v94
    %v899 = vmul.f32 %v833, %v91
    %v900 = vmul.f32 %v833, %v92
    %v901 = vmul.f32 %v833, %v93
    %v902 = vmul.f32 %v833, %v94
    %v903 = vmul.f32 %v838, %v91
    %v904 = vmul.f32 %v838, %v92
    %v905 = vmul.f32 %v838, %v93
    %v906 = vmul.f32 %v838, %v94
    %v907 = vmul.f32 %v843, %v91
    %v908 = vmul.f32 %v843, %v92
    %v909 = vmul.f32 %v843, %v93
    %v910 = vmul.f32 %v843, %v94
    %v911 = vmul.f32 %v848, %v91
    %v912 = vmul.f32 %v848, %v92
    %v913 = vmul.f32 %v848, %v93
    %v914 = vmul.f32 %v848, %v94
    %v915 = vmul.f32 %v853, %v91
    %v916 = vmul.f32 %v853, %v92
    %v917 = vmul.f32 %v853, %v93
    %v918 = vmul.f32 %v853, %v94
    %920 = vset.pattern.permute.xlu0 0
    %921 = vperm.xlu0 %920, %v743
    %v922 = vpop.permute.xlu0 %921
    %925 = vset.pattern.permute.xlu0 0
    %926 = vperm.xlu0 %925, %v744
    %v927 = vpop.permute.xlu0 %926
    %930 = vset.pattern.permute.xlu0 0
    %931 = vperm.xlu0 %930, %v745
    %v932 = vpop.permute.xlu0 %931
    %935 = vset.pattern.permute.xlu0 0
    %936 = vperm.xlu0 %935, %v746
    %v937 = vpop.permute.xlu0 %936
    %940 = vset.pattern.permute.xlu0 0
    %941 = vperm.xlu0 %940, %v747
    %v942 = vpop.permute.xlu0 %941
    %945 = vset.pattern.permute.xlu0 0
    %946 = vperm.xlu0 %945, %v748
    %v947 = vpop.permute.xlu0 %946
    %950 = vset.pattern.permute.xlu0 0
    %951 = vperm.xlu0 %950, %v749
    %v952 = vpop.permute.xlu0 %951
    %955 = vset.pattern.permute.xlu0 0
    %956 = vperm.xlu0 %955, %v750
    %v957 = vpop.permute.xlu0 %956
    %960 = vset.pattern.permute.xlu0 0
    %961 = vperm.xlu0 %960, %v751
    %v962 = vpop.permute.xlu0 %961
    %965 = vset.pattern.permute.xlu0 0
    %966 = vperm.xlu0 %965, %v752
    %v967 = vpop.permute.xlu0 %966
    %970 = vset.pattern.permute.xlu0 0
    %971 = vperm.xlu0 %970, %v753
    %v972 = vpop.permute.xlu0 %971
    %975 = vset.pattern.permute.xlu0 0
    %976 = vperm.xlu0 %975, %v754
    %v977 = vpop.permute.xlu0 %976
    %980 = vset.pattern.permute.xlu0 0
    %981 = vperm.xlu0 %980, %v755
    %v982 = vpop.permute.xlu0 %981
    %985 = vset.pattern.permute.xlu0 0
    %986 = vperm.xlu0 %985, %v756
    %v987 = vpop.permute.xlu0 %986
    %990 = vset.pattern.permute.xlu0 0
    %991 = vperm.xlu0 %990, %v757
    %v992 = vpop.permute.xlu0 %991
    %995 = vset.pattern.permute.xlu0 0
    %996 = vperm.xlu0 %995, %v758
    %v997 = vpop.permute.xlu0 %996
    %v999 = vadd.f32 %v855, %v922
    %v1000 = vadd.f32 %v856, %v922
    %v1001 = vadd.f32 %v857, %v922
    %v1002 = vadd.f32 %v858, %v922
    %v1003 = vadd.f32 %v859, %v927
    %v1004 = vadd.f32 %v860, %v927
    %v1005 = vadd.f32 %v861, %v927
    %v1006 = vadd.f32 %v862, %v927
    %v1007 = vadd.f32 %v863, %v932
    %v1008 = vadd.f32 %v864, %v932
    %v1009 = vadd.f32 %v865, %v932
    %v1010 = vadd.f32 %v866, %v932
    %v1011 = vadd.f32 %v867, %v937
    %v1012 = vadd.f32 %v868, %v937
    %v1013 = vadd.f32 %v869, %v937
    %v1014 = vadd.f32 %v870, %v937
    %v1015 = vadd.f32 %v871, %v942
    %v1016 = vadd.f32 %v872, %v942
    %v1017 = vadd.f32 %v873, %v942
    %v1018 = vadd.f32 %v874, %v942
    %v1019 = vadd.f32 %v875, %v947
    %v1020 = vadd.f32 %v876, %v947
    %v1021 = vadd.f32 %v877, %v947
    %v1022 = vadd.f32 %v878, %v947
    %v1023 = vadd.f32 %v879, %v952
    %v1024 = vadd.f32 %v880, %v952
    %v1025 = vadd.f32 %v881, %v952
    %v1026 = vadd.f32 %v882, %v952
    %v1027 = vadd.f32 %v883, %v957
    %v1028 = vadd.f32 %v884, %v957
    %v1029 = vadd.f32 %v885, %v957
    %v1030 = vadd.f32 %v886, %v957
    %v1031 = vadd.f32 %v887, %v962
    %v1032 = vadd.f32 %v888, %v962
    %v1033 = vadd.f32 %v889, %v962
    %v1034 = vadd.f32 %v890, %v962
    %v1035 = vadd.f32 %v891, %v967
    %v1036 = vadd.f32 %v892, %v967
    %v1037 = vadd.f32 %v893, %v967
    %v1038 = vadd.f32 %v894, %v967
    %v1039 = vadd.f32 %v895, %v972
    %v1040 = vadd.f32 %v896, %v972
    %v1041 = vadd.f32 %v897, %v972
    %v1042 = vadd.f32 %v898, %v972
    %v1043 = vadd.f32 %v899, %v977
    %v1044 = vadd.f32 %v900, %v977
    %v1045 = vadd.f32 %v901, %v977
    %v1046 = vadd.f32 %v902, %v977
    %v1047 = vadd.f32 %v903, %v982
    %v1048 = vadd.f32 %v904, %v982
    %v1049 = vadd.f32 %v905, %v982
    %v1050 = vadd.f32 %v906, %v982
    %v1051 = vadd.f32 %v907, %v987
    %v1052 = vadd.f32 %v908, %v987
    %v1053 = vadd.f32 %v909, %v987
    %v1054 = vadd.f32 %v910, %v987
    %v1055 = vadd.f32 %v911, %v992
    %v1056 = vadd.f32 %v912, %v992
    %v1057 = vadd.f32 %v913, %v992
    %v1058 = vadd.f32 %v914, %v992
    %v1059 = vadd.f32 %v915, %v997
    %v1060 = vadd.f32 %v916, %v997
    %v1061 = vadd.f32 %v917, %v997
    %v1062 = vadd.f32 %v918, %v997
    %v1063 = vtanh.pop %v999
    %v1064 = vtanh.pop %v1000
    %v1065 = vtanh.pop %v1001
    %v1066 = vtanh.pop %v1002
    %v1067 = vtanh.pop %v1003
    %v1068 = vtanh.pop %v1004
    %v1069 = vtanh.pop %v1005
    %v1070 = vtanh.pop %v1006
    %v1071 = vtanh.pop %v1007
    %v1072 = vtanh.pop %v1008
    %v1073 = vtanh.pop %v1009
    %v1074 = vtanh.pop %v1010
    %v1075 = vtanh.pop %v1011
    %v1076 = vtanh.pop %v1012
    %v1077 = vtanh.pop %v1013
    %v1078 = vtanh.pop %v1014
    %v1079 = vtanh.pop %v1015
    %v1080 = vtanh.pop %v1016
    %v1081 = vtanh.pop %v1017
    %v1082 = vtanh.pop %v1018
    %v1083 = vtanh.pop %v1019
    %v1084 = vtanh.pop %v1020
    %v1085 = vtanh.pop %v1021
    %v1086 = vtanh.pop %v1022
    %v1087 = vtanh.pop %v1023
    %v1088 = vtanh.pop %v1024
    %v1089 = vtanh.pop %v1025
    %v1090 = vtanh.pop %v1026
    %v1091 = vtanh.pop %v1027
    %v1092 = vtanh.pop %v1028
    %v1093 = vtanh.pop %v1029
    %v1094 = vtanh.pop %v1030
    %v1095 = vtanh.pop %v1031
    %v1096 = vtanh.pop %v1032
    %v1097 = vtanh.pop %v1033
    %v1098 = vtanh.pop %v1034
    %v1099 = vtanh.pop %v1035
    %v1100 = vtanh.pop %v1036
    %v1101 = vtanh.pop %v1037
    %v1102 = vtanh.pop %v1038
    %v1103 = vtanh.pop %v1039
    %v1104 = vtanh.pop %v1040
    %v1105 = vtanh.pop %v1041
    %v1106 = vtanh.pop %v1042
    %v1107 = vtanh.pop %v1043
    %v1108 = vtanh.pop %v1044
    %v1109 = vtanh.pop %v1045
    %v1110 = vtanh.pop %v1046
    %v1111 = vtanh.pop %v1047
    %v1112 = vtanh.pop %v1048
    %v1113 = vtanh.pop %v1049
    %v1114 = vtanh.pop %v1050
    %v1115 = vtanh.pop %v1051
    %v1116 = vtanh.pop %v1052
    %v1117 = vtanh.pop %v1053
    %v1118 = vtanh.pop %v1054
    %v1119 = vtanh.pop %v1055
    %v1120 = vtanh.pop %v1056
    %v1121 = vtanh.pop %v1057
    %v1122 = vtanh.pop %v1058
    %v1123 = vtanh.pop %v1059
    %v1124 = vtanh.pop %v1060
    %v1125 = vtanh.pop %v1061
    %v1126 = vtanh.pop %v1062
    %1128 = vset.pattern.permute.xlu0 0
    %1129 = vperm.xlu0 %1128, %v759
    %v1130 = vpop.permute.xlu0 %1129
    %1133 = vset.pattern.permute.xlu0 0
    %1134 = vperm.xlu0 %1133, %v760
    %v1135 = vpop.permute.xlu0 %1134
    %1138 = vset.pattern.permute.xlu0 0
    %1139 = vperm.xlu0 %1138, %v761
    %v1140 = vpop.permute.xlu0 %1139
    %1143 = vset.pattern.permute.xlu0 0
    %1144 = vperm.xlu0 %1143, %v762
    %v1145 = vpop.permute.xlu0 %1144
    %1148 = vset.pattern.permute.xlu0 0
    %1149 = vperm.xlu0 %1148, %v763
    %v1150 = vpop.permute.xlu0 %1149
    %1153 = vset.pattern.permute.xlu0 0
    %1154 = vperm.xlu0 %1153, %v764
    %v1155 = vpop.permute.xlu0 %1154
    %1158 = vset.pattern.permute.xlu0 0
    %1159 = vperm.xlu0 %1158, %v765
    %v1160 = vpop.permute.xlu0 %1159
    %1163 = vset.pattern.permute.xlu0 0
    %1164 = vperm.xlu0 %1163, %v766
    %v1165 = vpop.permute.xlu0 %1164
    %1168 = vset.pattern.permute.xlu0 0
    %1169 = vperm.xlu0 %1168, %v767
    %v1170 = vpop.permute.xlu0 %1169
    %1173 = vset.pattern.permute.xlu0 0
    %1174 = vperm.xlu0 %1173, %v768
    %v1175 = vpop.permute.xlu0 %1174
    %1178 = vset.pattern.permute.xlu0 0
    %1179 = vperm.xlu0 %1178, %v769
    %v1180 = vpop.permute.xlu0 %1179
    %1183 = vset.pattern.permute.xlu0 0
    %1184 = vperm.xlu0 %1183, %v770
    %v1185 = vpop.permute.xlu0 %1184
    %1188 = vset.pattern.permute.xlu0 0
    %1189 = vperm.xlu0 %1188, %v771
    %v1190 = vpop.permute.xlu0 %1189
    %1193 = vset.pattern.permute.xlu0 0
    %1194 = vperm.xlu0 %1193, %v772
    %v1195 = vpop.permute.xlu0 %1194
    %1198 = vset.pattern.permute.xlu0 0
    %1199 = vperm.xlu0 %1198, %v773
    %v1200 = vpop.permute.xlu0 %1199
    %1203 = vset.pattern.permute.xlu0 0
    %1204 = vperm.xlu0 %1203, %v774
    %v1205 = vpop.permute.xlu0 %1204
    %v1207 = vmul.f32 %v1063, %v1130
    %v1208 = vmul.f32 %v1064, %v1130
    %v1209 = vmul.f32 %v1065, %v1130
    %v1210 = vmul.f32 %v1066, %v1130
    %v1211 = vmul.f32 %v1067, %v1135
    %v1212 = vmul.f32 %v1068, %v1135
    %v1213 = vmul.f32 %v1069, %v1135
    %v1214 = vmul.f32 %v1070, %v1135
    %v1215 = vmul.f32 %v1071, %v1140
    %v1216 = vmul.f32 %v1072, %v1140
    %v1217 = vmul.f32 %v1073, %v1140
    %v1218 = vmul.f32 %v1074, %v1140
    %v1219 = vmul.f32 %v1075, %v1145
    %v1220 = vmul.f32 %v1076, %v1145
    %v1221 = vmul.f32 %v1077, %v1145
    %v1222 = vmul.f32 %v1078, %v1145
    %v1223 = vmul.f32 %v1079, %v1150
    %v1224 = vmul.f32 %v1080, %v1150
    %v1225 = vmul.f32 %v1081, %v1150
    %v1226 = vmul.f32 %v1082, %v1150
    %v1227 = vmul.f32 %v1083, %v1155
    %v1228 = vmul.f32 %v1084, %v1155
    %v1229 = vmul.f32 %v1085, %v1155
    %v1230 = vmul.f32 %v1086, %v1155
    %v1231 = vmul.f32 %v1087, %v1160
    %v1232 = vmul.f32 %v1088, %v1160
    %v1233 = vmul.f32 %v1089, %v1160
    %v1234 = vmul.f32 %v1090, %v1160
    %v1235 = vmul.f32 %v1091, %v1165
    %v1236 = vmul.f32 %v1092, %v1165
    %v1237 = vmul.f32 %v1093, %v1165
    %v1238 = vmul.f32 %v1094, %v1165
    %v1239 = vmul.f32 %v1095, %v1170
    %v1240 = vmul.f32 %v1096, %v1170
    %v1241 = vmul.f32 %v1097, %v1170
    %v1242 = vmul.f32 %v1098, %v1170
    %v1243 = vmul.f32 %v1099, %v1175
    %v1244 = vmul.f32 %v1100, %v1175
    %v1245 = vmul.f32 %v1101, %v1175
    %v1246 = vmul.f32 %v1102, %v1175
    %v1247 = vmul.f32 %v1103, %v1180
    %v1248 = vmul.f32 %v1104, %v1180
    %v1249 = vmul.f32 %v1105, %v1180
    %v1250 = vmul.f32 %v1106, %v1180
    %v1251 = vmul.f32 %v1107, %v1185
    %v1252 = vmul.f32 %v1108, %v1185
    %v1253 = vmul.f32 %v1109, %v1185
    %v1254 = vmul.f32 %v1110, %v1185
    %v1255 = vmul.f32 %v1111, %v1190
    %v1256 = vmul.f32 %v1112, %v1190
    %v1257 = vmul.f32 %v1113, %v1190
    %v1258 = vmul.f32 %v1114, %v1190
    %v1259 = vmul.f32 %v1115, %v1195
    %v1260 = vmul.f32 %v1116, %v1195
    %v1261 = vmul.f32 %v1117, %v1195
    %v1262 = vmul.f32 %v1118, %v1195
    %v1263 = vmul.f32 %v1119, %v1200
    %v1264 = vmul.f32 %v1120, %v1200
    %v1265 = vmul.f32 %v1121, %v1200
    %v1266 = vmul.f32 %v1122, %v1200
    %v1267 = vmul.f32 %v1123, %v1205
    %v1268 = vmul.f32 %v1124, %v1205
    %v1269 = vmul.f32 %v1125, %v1205
    %v1270 = vmul.f32 %v1126, %v1205
    %v1271 = vadd.f32 %v1207, %v1211
    %v1272 = vadd.f32 %v1271, %v1215
    %v1273 = vadd.f32 %v1272, %v1219
    %v1274 = vadd.f32 %v1273, %v1223
    %v1275 = vadd.f32 %v1274, %v1227
    %v1276 = vadd.f32 %v1275, %v1231
    %v1277 = vadd.f32 %v1276, %v1235
    %v1278 = vadd.f32 %v1277, %v1239
    %v1279 = vadd.f32 %v1278, %v1243
    %v1280 = vadd.f32 %v1279, %v1247
    %v1281 = vadd.f32 %v1280, %v1251
    %v1282 = vadd.f32 %v1281, %v1255
    %v1283 = vadd.f32 %v1282, %v1259
    %v1284 = vadd.f32 %v1283, %v1263
    %v1285 = vadd.f32 %v1284, %v1267
    %v1286 = vrot.slane %v1285, 4
    %v1287 = vadd.f32 %v1285, %v1286
    %v1288 = vrot.slane %v1287, 2
    %v1289 = vadd.f32 %v1287, %v1288
    %v1290 = vrot.slane %v1289, 1
    %v1291 = vadd.f32 %v1289, %v1290
    %v1292 = vadd.f32 %v1208, %v1212
    %v1293 = vadd.f32 %v1292, %v1216
    %v1294 = vadd.f32 %v1293, %v1220
    %v1295 = vadd.f32 %v1294, %v1224
    %v1296 = vadd.f32 %v1295, %v1228
    %v1297 = vadd.f32 %v1296, %v1232
    %v1298 = vadd.f32 %v1297, %v1236
    %v1299 = vadd.f32 %v1298, %v1240
    %v1300 = vadd.f32 %v1299, %v1244
    %v1301 = vadd.f32 %v1300, %v1248
    %v1302 = vadd.f32 %v1301, %v1252
    %v1303 = vadd.f32 %v1302, %v1256
    %v1304 = vadd.f32 %v1303, %v1260
    %v1305 = vadd.f32 %v1304, %v1264
    %v1306 = vadd.f32 %v1305, %v1268
    %v1307 = vrot.slane %v1306, 4
    %v1308 = vadd.f32 %v1306, %v1307
    %v1309 = vrot.slane %v1308, 2
    %v1310 = vadd.f32 %v1308, %v1309
    %v1311 = vrot.slane %v1310, 1
    %v1312 = vadd.f32 %v1310, %v1311
    %v1313 = vadd.f32 %v1209, %v1213
    %v1314 = vadd.f32 %v1313, %v1217
    %v1315 = vadd.f32 %v1314, %v1221
    %v1316 = vadd.f32 %v1315, %v1225
    %v1317 = vadd.f32 %v1316, %v1229
    %v1318 = vadd.f32 %v1317, %v1233
    %v1319 = vadd.f32 %v1318, %v1237
    %v1320 = vadd.f32 %v1319, %v1241
    %v1321 = vadd.f32 %v1320, %v1245
    %v1322 = vadd.f32 %v1321, %v1249
    %v1323 = vadd.f32 %v1322, %v1253
    %v1324 = vadd.f32 %v1323, %v1257
    %v1325 = vadd.f32 %v1324, %v1261
    %v1326 = vadd.f32 %v1325, %v1265
    %v1327 = vadd.f32 %v1326, %v1269
    %v1328 = vrot.slane %v1327, 4
    %v1329 = vadd.f32 %v1327, %v1328
    %v1330 = vrot.slane %v1329, 2
    %v1331 = vadd.f32 %v1329, %v1330
    %v1332 = vrot.slane %v1331, 1
    %v1333 = vadd.f32 %v1331, %v1332
    %v1334 = vadd.f32 %v1210, %v1214
    %v1335 = vadd.f32 %v1334, %v1218
    %v1336 = vadd.f32 %v1335, %v1222
    %v1337 = vadd.f32 %v1336, %v1226
    %v1338 = vadd.f32 %v1337, %v1230
    %v1339 = vadd.f32 %v1338, %v1234
    %v1340 = vadd.f32 %v1339, %v1238
    %v1341 = vadd.f32 %v1340, %v1242
    %v1342 = vadd.f32 %v1341, %v1246
    %v1343 = vadd.f32 %v1342, %v1250
    %v1344 = vadd.f32 %v1343, %v1254
    %v1345 = vadd.f32 %v1344, %v1258
    %v1346 = vadd.f32 %v1345, %v1262
    %v1347 = vadd.f32 %v1346, %v1266
    %v1348 = vadd.f32 %v1347, %v1270
    %v1349 = vrot.slane %v1348, 4
    %v1350 = vadd.f32 %v1348, %v1349
    %v1351 = vrot.slane %v1350, 2
    %v1352 = vadd.f32 %v1350, %v1351
    %v1353 = vrot.slane %v1352, 1
    %v1354 = vadd.f32 %v1352, %v1353
    %v1355 = vadd.f32 %v723, %v1291
    %v1356 = vadd.f32 %v724, %v1312
    %v1357 = vadd.f32 %v725, %v1333
    %v1358 = vadd.f32 %v726, %v1354
    %v1359 = vld [vmem:[%s3 + $0x100] sm:$0xff]
    %v1360 = vld [vmem:[%s3 + $0x108] sm:$0xff]
    %v1361 = vld [vmem:[%s3 + $0x110] sm:$0xff]
    %v1362 = vld [vmem:[%s3 + $0x118] sm:$0xff]
    %v1363 = vld [vmem:[%s3 + $0x120] sm:$0xff]
    %v1364 = vld [vmem:[%s3 + $0x128] sm:$0xff]
    %v1365 = vld [vmem:[%s3 + $0x130] sm:$0xff]
    %v1366 = vld [vmem:[%s3 + $0x138] sm:$0xff]
    %v1367 = vld [vmem:[%s3 + $0x140] sm:$0xff]
    %v1368 = vld [vmem:[%s3 + $0x148] sm:$0xff]
    %v1369 = vld [vmem:[%s3 + $0x150] sm:$0xff]
    %v1370 = vld [vmem:[%s3 + $0x158] sm:$0xff]
    %v1371 = vld [vmem:[%s3 + $0x160] sm:$0xff]
    %v1372 = vld [vmem:[%s3 + $0x168] sm:$0xff]
    %v1373 = vld [vmem:[%s3 + $0x170] sm:$0xff]
    %v1374 = vld [vmem:[%s3 + $0x178] sm:$0xff]
    %v1375 = vld [vmem:[%s4 + $0x100] sm:$0xff]
    %v1376 = vld [vmem:[%s4 + $0x108] sm:$0xff]
    %v1377 = vld [vmem:[%s4 + $0x110] sm:$0xff]
    %v1378 = vld [vmem:[%s4 + $0x118] sm:$0xff]
    %v1379 = vld [vmem:[%s4 + $0x120] sm:$0xff]
    %v1380 = vld [vmem:[%s4 + $0x128] sm:$0xff]
    %v1381 = vld [vmem:[%s4 + $0x130] sm:$0xff]
    %v1382 = vld [vmem:[%s4 + $0x138] sm:$0xff]
    %v1383 = vld [vmem:[%s4 + $0x140] sm:$0xff]
    %v1384 = vld [vmem:[%s4 + $0x148] sm:$0xff]
    %v1385 = vld [vmem:[%s4 + $0x150] sm:$0xff]
    %v1386 = vld [vmem:[%s4 + $0x158] sm:$0xff]
    %v1387 = vld [vmem:[%s4 + $0x160] sm:$0xff]
    %v1388 = vld [vmem:[%s4 + $0x168] sm:$0xff]
    %v1389 = vld [vmem:[%s4 + $0x170] sm:$0xff]
    %v1390 = vld [vmem:[%s4 + $0x178] sm:$0xff]
    %v1391 = vld [vmem:[%s5 + $0x100] sm:$0xff]
    %v1392 = vld [vmem:[%s5 + $0x108] sm:$0xff]
    %v1393 = vld [vmem:[%s5 + $0x110] sm:$0xff]
    %v1394 = vld [vmem:[%s5 + $0x118] sm:$0xff]
    %v1395 = vld [vmem:[%s5 + $0x120] sm:$0xff]
    %v1396 = vld [vmem:[%s5 + $0x128] sm:$0xff]
    %v1397 = vld [vmem:[%s5 + $0x130] sm:$0xff]
    %v1398 = vld [vmem:[%s5 + $0x138] sm:$0xff]
    %v1399 = vld [vmem:[%s5 + $0x140] sm:$0xff]
    %v1400 = vld [vmem:[%s5 + $0x148] sm:$0xff]
    %v1401 = vld [vmem:[%s5 + $0x150] sm:$0xff]
    %v1402 = vld [vmem:[%s5 + $0x158] sm:$0xff]
    %v1403 = vld [vmem:[%s5 + $0x160] sm:$0xff]
    %v1404 = vld [vmem:[%s5 + $0x168] sm:$0xff]
    %v1405 = vld [vmem:[%s5 + $0x170] sm:$0xff]
    %v1406 = vld [vmem:[%s5 + $0x178] sm:$0xff]
    %1408 = vset.pattern.permute.xlu0 0
    %1409 = vperm.xlu0 %1408, %v1359
    %v1410 = vpop.permute.xlu0 %1409
    %1413 = vset.pattern.permute.xlu0 0
    %1414 = vperm.xlu0 %1413, %v1360
    %v1415 = vpop.permute.xlu0 %1414
    %1418 = vset.pattern.permute.xlu0 0
    %1419 = vperm.xlu0 %1418, %v1361
    %v1420 = vpop.permute.xlu0 %1419
    %1423 = vset.pattern.permute.xlu0 0
    %1424 = vperm.xlu0 %1423, %v1362
    %v1425 = vpop.permute.xlu0 %1424
    %1428 = vset.pattern.permute.xlu0 0
    %1429 = vperm.xlu0 %1428, %v1363
    %v1430 = vpop.permute.xlu0 %1429
    %1433 = vset.pattern.permute.xlu0 0
    %1434 = vperm.xlu0 %1433, %v1364
    %v1435 = vpop.permute.xlu0 %1434
    %1438 = vset.pattern.permute.xlu0 0
    %1439 = vperm.xlu0 %1438, %v1365
    %v1440 = vpop.permute.xlu0 %1439
    %1443 = vset.pattern.permute.xlu0 0
    %1444 = vperm.xlu0 %1443, %v1366
    %v1445 = vpop.permute.xlu0 %1444
    %1448 = vset.pattern.permute.xlu0 0
    %1449 = vperm.xlu0 %1448, %v1367
    %v1450 = vpop.permute.xlu0 %1449
    %1453 = vset.pattern.permute.xlu0 0
    %1454 = vperm.xlu0 %1453, %v1368
    %v1455 = vpop.permute.xlu0 %1454
    %1458 = vset.pattern.permute.xlu0 0
    %1459 = vperm.xlu0 %1458, %v1369
    %v1460 = vpop.permute.xlu0 %1459
    %1463 = vset.pattern.permute.xlu0 0
    %1464 = vperm.xlu0 %1463, %v1370
    %v1465 = vpop.permute.xlu0 %1464
    %1468 = vset.pattern.permute.xlu0 0
    %1469 = vperm.xlu0 %1468, %v1371
    %v1470 = vpop.permute.xlu0 %1469
    %1473 = vset.pattern.permute.xlu0 0
    %1474 = vperm.xlu0 %1473, %v1372
    %v1475 = vpop.permute.xlu0 %1474
    %1478 = vset.pattern.permute.xlu0 0
    %1479 = vperm.xlu0 %1478, %v1373
    %v1480 = vpop.permute.xlu0 %1479
    %1483 = vset.pattern.permute.xlu0 0
    %1484 = vperm.xlu0 %1483, %v1374
    %v1485 = vpop.permute.xlu0 %1484
    %v1487 = vmul.f32 %v1410, %v91
    %v1488 = vmul.f32 %v1410, %v92
    %v1489 = vmul.f32 %v1410, %v93
    %v1490 = vmul.f32 %v1410, %v94
    %v1491 = vmul.f32 %v1415, %v91
    %v1492 = vmul.f32 %v1415, %v92
    %v1493 = vmul.f32 %v1415, %v93
    %v1494 = vmul.f32 %v1415, %v94
    %v1495 = vmul.f32 %v1420, %v91
    %v1496 = vmul.f32 %v1420, %v92
    %v1497 = vmul.f32 %v1420, %v93
    %v1498 = vmul.f32 %v1420, %v94
    %v1499 = vmul.f32 %v1425, %v91
    %v1500 = vmul.f32 %v1425, %v92
    %v1501 = vmul.f32 %v1425, %v93
    %v1502 = vmul.f32 %v1425, %v94
    %v1503 = vmul.f32 %v1430, %v91
    %v1504 = vmul.f32 %v1430, %v92
    %v1505 = vmul.f32 %v1430, %v93
    %v1506 = vmul.f32 %v1430, %v94
    %v1507 = vmul.f32 %v1435, %v91
    %v1508 = vmul.f32 %v1435, %v92
    %v1509 = vmul.f32 %v1435, %v93
    %v1510 = vmul.f32 %v1435, %v94
    %v1511 = vmul.f32 %v1440, %v91
    %v1512 = vmul.f32 %v1440, %v92
    %v1513 = vmul.f32 %v1440, %v93
    %v1514 = vmul.f32 %v1440, %v94
    %v1515 = vmul.f32 %v1445, %v91
    %v1516 = vmul.f32 %v1445, %v92
    %v1517 = vmul.f32 %v1445, %v93
    %v1518 = vmul.f32 %v1445, %v94
    %v1519 = vmul.f32 %v1450, %v91
    %v1520 = vmul.f32 %v1450, %v92
    %v1521 = vmul.f32 %v1450, %v93
    %v1522 = vmul.f32 %v1450, %v94
    %v1523 = vmul.f32 %v1455, %v91
    %v1524 = vmul.f32 %v1455, %v92
    %v1525 = vmul.f32 %v1455, %v93
    %v1526 = vmul.f32 %v1455, %v94
    %v1527 = vmul.f32 %v1460, %v91
    %v1528 = vmul.f32 %v1460, %v92
    %v1529 = vmul.f32 %v1460, %v93
    %v1530 = vmul.f32 %v1460, %v94
    %v1531 = vmul.f32 %v1465, %v91
    %v1532 = vmul.f32 %v1465, %v92
    %v1533 = vmul.f32 %v1465, %v93
    %v1534 = vmul.f32 %v1465, %v94
    %v1535 = vmul.f32 %v1470, %v91
    %v1536 = vmul.f32 %v1470, %v92
    %v1537 = vmul.f32 %v1470, %v93
    %v1538 = vmul.f32 %v1470, %v94
    %v1539 = vmul.f32 %v1475, %v91
    %v1540 = vmul.f32 %v1475, %v92
    %v1541 = vmul.f32 %v1475, %v93
    %v1542 = vmul.f32 %v1475, %v94
    %v1543 = vmul.f32 %v1480, %v91
    %v1544 = vmul.f32 %v1480, %v92
    %v1545 = vmul.f32 %v1480, %v93
    %v1546 = vmul.f32 %v1480, %v94
    %v1547 = vmul.f32 %v1485, %v91
    %v1548 = vmul.f32 %v1485, %v92
    %v1549 = vmul.f32 %v1485, %v93
    %v1550 = vmul.f32 %v1485, %v94
    %1552 = vset.pattern.permute.xlu0 0
    %1553 = vperm.xlu0 %1552, %v1375
    %v1554 = vpop.permute.xlu0 %1553
    %1557 = vset.pattern.permute.xlu0 0
    %1558 = vperm.xlu0 %1557, %v1376
    %v1559 = vpop.permute.xlu0 %1558
    %1562 = vset.pattern.permute.xlu0 0
    %1563 = vperm.xlu0 %1562, %v1377
    %v1564 = vpop.permute.xlu0 %1563
    %1567 = vset.pattern.permute.xlu0 0
    %1568 = vperm.xlu0 %1567, %v1378
    %v1569 = vpop.permute.xlu0 %1568
    %1572 = vset.pattern.permute.xlu0 0
    %1573 = vperm.xlu0 %1572, %v1379
    %v1574 = vpop.permute.xlu0 %1573
    %1577 = vset.pattern.permute.xlu0 0
    %1578 = vperm.xlu0 %1577, %v1380
    %v1579 = vpop.permute.xlu0 %1578
    %1582 = vset.pattern.permute.xlu0 0
    %1583 = vperm.xlu0 %1582, %v1381
    %v1584 = vpop.permute.xlu0 %1583
    %1587 = vset.pattern.permute.xlu0 0
    %1588 = vperm.xlu0 %1587, %v1382
    %v1589 = vpop.permute.xlu0 %1588
    %1592 = vset.pattern.permute.xlu0 0
    %1593 = vperm.xlu0 %1592, %v1383
    %v1594 = vpop.permute.xlu0 %1593
    %1597 = vset.pattern.permute.xlu0 0
    %1598 = vperm.xlu0 %1597, %v1384
    %v1599 = vpop.permute.xlu0 %1598
    %1602 = vset.pattern.permute.xlu0 0
    %1603 = vperm.xlu0 %1602, %v1385
    %v1604 = vpop.permute.xlu0 %1603
    %1607 = vset.pattern.permute.xlu0 0
    %1608 = vperm.xlu0 %1607, %v1386
    %v1609 = vpop.permute.xlu0 %1608
    %1612 = vset.pattern.permute.xlu0 0
    %1613 = vperm.xlu0 %1612, %v1387
    %v1614 = vpop.permute.xlu0 %1613
    %1617 = vset.pattern.permute.xlu0 0
    %1618 = vperm.xlu0 %1617, %v1388
    %v1619 = vpop.permute.xlu0 %1618
    %1622 = vset.pattern.permute.xlu0 0
    %1623 = vperm.xlu0 %1622, %v1389
    %v1624 = vpop.permute.xlu0 %1623
    %1627 = vset.pattern.permute.xlu0 0
    %1628 = vperm.xlu0 %1627, %v1390
    %v1629 = vpop.permute.xlu0 %1628
    %v1631 = vadd.f32 %v1487, %v1554
    %v1632 = vadd.f32 %v1488, %v1554
    %v1633 = vadd.f32 %v1489, %v1554
    %v1634 = vadd.f32 %v1490, %v1554
    %v1635 = vadd.f32 %v1491, %v1559
    %v1636 = vadd.f32 %v1492, %v1559
    %v1637 = vadd.f32 %v1493, %v1559
    %v1638 = vadd.f32 %v1494, %v1559
    %v1639 = vadd.f32 %v1495, %v1564
    %v1640 = vadd.f32 %v1496, %v1564
    %v1641 = vadd.f32 %v1497, %v1564
    %v1642 = vadd.f32 %v1498, %v1564
    %v1643 = vadd.f32 %v1499, %v1569
    %v1644 = vadd.f32 %v1500, %v1569
    %v1645 = vadd.f32 %v1501, %v1569
    %v1646 = vadd.f32 %v1502, %v1569
    %v1647 = vadd.f32 %v1503, %v1574
    %v1648 = vadd.f32 %v1504, %v1574
    %v1649 = vadd.f32 %v1505, %v1574
    %v1650 = vadd.f32 %v1506, %v1574
    %v1651 = vadd.f32 %v1507, %v1579
    %v1652 = vadd.f32 %v1508, %v1579
    %v1653 = vadd.f32 %v1509, %v1579
    %v1654 = vadd.f32 %v1510, %v1579
    %v1655 = vadd.f32 %v1511, %v1584
    %v1656 = vadd.f32 %v1512, %v1584
    %v1657 = vadd.f32 %v1513, %v1584
    %v1658 = vadd.f32 %v1514, %v1584
    %v1659 = vadd.f32 %v1515, %v1589
    %v1660 = vadd.f32 %v1516, %v1589
    %v1661 = vadd.f32 %v1517, %v1589
    %v1662 = vadd.f32 %v1518, %v1589
    %v1663 = vadd.f32 %v1519, %v1594
    %v1664 = vadd.f32 %v1520, %v1594
    %v1665 = vadd.f32 %v1521, %v1594
    %v1666 = vadd.f32 %v1522, %v1594
    %v1667 = vadd.f32 %v1523, %v1599
    %v1668 = vadd.f32 %v1524, %v1599
    %v1669 = vadd.f32 %v1525, %v1599
    %v1670 = vadd.f32 %v1526, %v1599
    %v1671 = vadd.f32 %v1527, %v1604
    %v1672 = vadd.f32 %v1528, %v1604
    %v1673 = vadd.f32 %v1529, %v1604
    %v1674 = vadd.f32 %v1530, %v1604
    %v1675 = vadd.f32 %v1531, %v1609
    %v1676 = vadd.f32 %v1532, %v1609
    %v1677 = vadd.f32 %v1533, %v1609
    %v1678 = vadd.f32 %v1534, %v1609
    %v1679 = vadd.f32 %v1535, %v1614
    %v1680 = vadd.f32 %v1536, %v1614
    %v1681 = vadd.f32 %v1537, %v1614
    %v1682 = vadd.f32 %v1538, %v1614
    %v1683 = vadd.f32 %v1539, %v1619
    %v1684 = vadd.f32 %v1540, %v1619
    %v1685 = vadd.f32 %v1541, %v1619
    %v1686 = vadd.f32 %v1542, %v1619
    %v1687 = vadd.f32 %v1543, %v1624
    %v1688 = vadd.f32 %v1544, %v1624
    %v1689 = vadd.f32 %v1545, %v1624
    %v1690 = vadd.f32 %v1546, %v1624
    %v1691 = vadd.f32 %v1547, %v1629
    %v1692 = vadd.f32 %v1548, %v1629
    %v1693 = vadd.f32 %v1549, %v1629
    %v1694 = vadd.f32 %v1550, %v1629
    %v1695 = vtanh.pop %v1631
    %v1696 = vtanh.pop %v1632
    %v1697 = vtanh.pop %v1633
    %v1698 = vtanh.pop %v1634
    %v1699 = vtanh.pop %v1635
    %v1700 = vtanh.pop %v1636
    %v1701 = vtanh.pop %v1637
    %v1702 = vtanh.pop %v1638
    %v1703 = vtanh.pop %v1639
    %v1704 = vtanh.pop %v1640
    %v1705 = vtanh.pop %v1641
    %v1706 = vtanh.pop %v1642
    %v1707 = vtanh.pop %v1643
    %v1708 = vtanh.pop %v1644
    %v1709 = vtanh.pop %v1645
    %v1710 = vtanh.pop %v1646
    %v1711 = vtanh.pop %v1647
    %v1712 = vtanh.pop %v1648
    %v1713 = vtanh.pop %v1649
    %v1714 = vtanh.pop %v1650
    %v1715 = vtanh.pop %v1651
    %v1716 = vtanh.pop %v1652
    %v1717 = vtanh.pop %v1653
    %v1718 = vtanh.pop %v1654
    %v1719 = vtanh.pop %v1655
    %v1720 = vtanh.pop %v1656
    %v1721 = vtanh.pop %v1657
    %v1722 = vtanh.pop %v1658
    %v1723 = vtanh.pop %v1659
    %v1724 = vtanh.pop %v1660
    %v1725 = vtanh.pop %v1661
    %v1726 = vtanh.pop %v1662
    %v1727 = vtanh.pop %v1663
    %v1728 = vtanh.pop %v1664
    %v1729 = vtanh.pop %v1665
    %v1730 = vtanh.pop %v1666
    %v1731 = vtanh.pop %v1667
    %v1732 = vtanh.pop %v1668
    %v1733 = vtanh.pop %v1669
    %v1734 = vtanh.pop %v1670
    %v1735 = vtanh.pop %v1671
    %v1736 = vtanh.pop %v1672
    %v1737 = vtanh.pop %v1673
    %v1738 = vtanh.pop %v1674
    %v1739 = vtanh.pop %v1675
    %v1740 = vtanh.pop %v1676
    %v1741 = vtanh.pop %v1677
    %v1742 = vtanh.pop %v1678
    %v1743 = vtanh.pop %v1679
    %v1744 = vtanh.pop %v1680
    %v1745 = vtanh.pop %v1681
    %v1746 = vtanh.pop %v1682
    %v1747 = vtanh.pop %v1683
    %v1748 = vtanh.pop %v1684
    %v1749 = vtanh.pop %v1685
    %v1750 = vtanh.pop %v1686
    %v1751 = vtanh.pop %v1687
    %v1752 = vtanh.pop %v1688
    %v1753 = vtanh.pop %v1689
    %v1754 = vtanh.pop %v1690
    %v1755 = vtanh.pop %v1691
    %v1756 = vtanh.pop %v1692
    %v1757 = vtanh.pop %v1693
    %v1758 = vtanh.pop %v1694
    %1760 = vset.pattern.permute.xlu0 0
    %1761 = vperm.xlu0 %1760, %v1391
    %v1762 = vpop.permute.xlu0 %1761
    %1765 = vset.pattern.permute.xlu0 0
    %1766 = vperm.xlu0 %1765, %v1392
    %v1767 = vpop.permute.xlu0 %1766
    %1770 = vset.pattern.permute.xlu0 0
    %1771 = vperm.xlu0 %1770, %v1393
    %v1772 = vpop.permute.xlu0 %1771
    %1775 = vset.pattern.permute.xlu0 0
    %1776 = vperm.xlu0 %1775, %v1394
    %v1777 = vpop.permute.xlu0 %1776
    %1780 = vset.pattern.permute.xlu0 0
    %1781 = vperm.xlu0 %1780, %v1395
    %v1782 = vpop.permute.xlu0 %1781
    %1785 = vset.pattern.permute.xlu0 0
    %1786 = vperm.xlu0 %1785, %v1396
    %v1787 = vpop.permute.xlu0 %1786
    %1790 = vset.pattern.permute.xlu0 0
    %1791 = vperm.xlu0 %1790, %v1397
    %v1792 = vpop.permute.xlu0 %1791
    %1795 = vset.pattern.permute.xlu0 0
    %1796 = vperm.xlu0 %1795, %v1398
    %v1797 = vpop.permute.xlu0 %1796
    %1800 = vset.pattern.permute.xlu0 0
    %1801 = vperm.xlu0 %1800, %v1399
    %v1802 = vpop.permute.xlu0 %1801
    %1805 = vset.pattern.permute.xlu0 0
    %1806 = vperm.xlu0 %1805, %v1400
    %v1807 = vpop.permute.xlu0 %1806
    %1810 = vset.pattern.permute.xlu0 0
    %1811 = vperm.xlu0 %1810, %v1401
    %v1812 = vpop.permute.xlu0 %1811
    %1815 = vset.pattern.permute.xlu0 0
    %1816 = vperm.xlu0 %1815, %v1402
    %v1817 = vpop.permute.xlu0 %1816
    %1820 = vset.pattern.permute.xlu0 0
    %1821 = vperm.xlu0 %1820, %v1403
    %v1822 = vpop.permute.xlu0 %1821
    %1825 = vset.pattern.permute.xlu0 0
    %1826 = vperm.xlu0 %1825, %v1404
    %v1827 = vpop.permute.xlu0 %1826
    %1830 = vset.pattern.permute.xlu0 0
    %1831 = vperm.xlu0 %1830, %v1405
    %v1832 = vpop.permute.xlu0 %1831
    %1835 = vset.pattern.permute.xlu0 0
    %1836 = vperm.xlu0 %1835, %v1406
    %v1837 = vpop.permute.xlu0 %1836
    %v1839 = vmul.f32 %v1695, %v1762
    %v1840 = vmul.f32 %v1696, %v1762
    %v1841 = vmul.f32 %v1697, %v1762
    %v1842 = vmul.f32 %v1698, %v1762
    %v1843 = vmul.f32 %v1699, %v1767
    %v1844 = vmul.f32 %v1700, %v1767
    %v1845 = vmul.f32 %v1701, %v1767
    %v1846 = vmul.f32 %v1702, %v1767
    %v1847 = vmul.f32 %v1703, %v1772
    %v1848 = vmul.f32 %v1704, %v1772
    %v1849 = vmul.f32 %v1705, %v1772
    %v1850 = vmul.f32 %v1706, %v1772
    %v1851 = vmul.f32 %v1707, %v1777
    %v1852 = vmul.f32 %v1708, %v1777
    %v1853 = vmul.f32 %v1709, %v1777
    %v1854 = vmul.f32 %v1710, %v1777
    %v1855 = vmul.f32 %v1711, %v1782
    %v1856 = vmul.f32 %v1712, %v1782
    %v1857 = vmul.f32 %v1713, %v1782
    %v1858 = vmul.f32 %v1714, %v1782
    %v1859 = vmul.f32 %v1715, %v1787
    %v1860 = vmul.f32 %v1716, %v1787
    %v1861 = vmul.f32 %v1717, %v1787
    %v1862 = vmul.f32 %v1718, %v1787
    %v1863 = vmul.f32 %v1719, %v1792
    %v1864 = vmul.f32 %v1720, %v1792
    %v1865 = vmul.f32 %v1721, %v1792
    %v1866 = vmul.f32 %v1722, %v1792
    %v1867 = vmul.f32 %v1723, %v1797
    %v1868 = vmul.f32 %v1724, %v1797
    %v1869 = vmul.f32 %v1725, %v1797
    %v1870 = vmul.f32 %v1726, %v1797
    %v1871 = vmul.f32 %v1727, %v1802
    %v1872 = vmul.f32 %v1728, %v1802
    %v1873 = vmul.f32 %v1729, %v1802
    %v1874 = vmul.f32 %v1730, %v1802
    %v1875 = vmul.f32 %v1731, %v1807
    %v1876 = vmul.f32 %v1732, %v1807
    %v1877 = vmul.f32 %v1733, %v1807
    %v1878 = vmul.f32 %v1734, %v1807
    %v1879 = vmul.f32 %v1735, %v1812
    %v1880 = vmul.f32 %v1736, %v1812
    %v1881 = vmul.f32 %v1737, %v1812
    %v1882 = vmul.f32 %v1738, %v1812
    %v1883 = vmul.f32 %v1739, %v1817
    %v1884 = vmul.f32 %v1740, %v1817
    %v1885 = vmul.f32 %v1741, %v1817
    %v1886 = vmul.f32 %v1742, %v1817
    %v1887 = vmul.f32 %v1743, %v1822
    %v1888 = vmul.f32 %v1744, %v1822
    %v1889 = vmul.f32 %v1745, %v1822
    %v1890 = vmul.f32 %v1746, %v1822
    %v1891 = vmul.f32 %v1747, %v1827
    %v1892 = vmul.f32 %v1748, %v1827
    %v1893 = vmul.f32 %v1749, %v1827
    %v1894 = vmul.f32 %v1750, %v1827
    %v1895 = vmul.f32 %v1751, %v1832
    %v1896 = vmul.f32 %v1752, %v1832
    %v1897 = vmul.f32 %v1753, %v1832
    %v1898 = vmul.f32 %v1754, %v1832
    %v1899 = vmul.f32 %v1755, %v1837
    %v1900 = vmul.f32 %v1756, %v1837
    %v1901 = vmul.f32 %v1757, %v1837
    %v1902 = vmul.f32 %v1758, %v1837
    %v1903 = vadd.f32 %v1839, %v1843
    %v1904 = vadd.f32 %v1903, %v1847
    %v1905 = vadd.f32 %v1904, %v1851
    %v1906 = vadd.f32 %v1905, %v1855
    %v1907 = vadd.f32 %v1906, %v1859
    %v1908 = vadd.f32 %v1907, %v1863
    %v1909 = vadd.f32 %v1908, %v1867
    %v1910 = vadd.f32 %v1909, %v1871
    %v1911 = vadd.f32 %v1910, %v1875
    %v1912 = vadd.f32 %v1911, %v1879
    %v1913 = vadd.f32 %v1912, %v1883
    %v1914 = vadd.f32 %v1913, %v1887
    %v1915 = vadd.f32 %v1914, %v1891
    %v1916 = vadd.f32 %v1915, %v1895
    %v1917 = vadd.f32 %v1916, %v1899
    %v1918 = vrot.slane %v1917, 4
    %v1919 = vadd.f32 %v1917, %v1918
    %v1920 = vrot.slane %v1919, 2
    %v1921 = vadd.f32 %v1919, %v1920
    %v1922 = vrot.slane %v1921, 1
    %v1923 = vadd.f32 %v1921, %v1922
    %v1924 = vadd.f32 %v1840, %v1844
    %v1925 = vadd.f32 %v1924, %v1848
    %v1926 = vadd.f32 %v1925, %v1852
    %v1927 = vadd.f32 %v1926, %v1856
    %v1928 = vadd.f32 %v1927, %v1860
    %v1929 = vadd.f32 %v1928, %v1864
    %v1930 = vadd.f32 %v1929, %v1868
    %v1931 = vadd.f32 %v1930, %v1872
    %v1932 = vadd.f32 %v1931, %v1876
    %v1933 = vadd.f32 %v1932, %v1880
    %v1934 = vadd.f32 %v1933, %v1884
    %v1935 = vadd.f32 %v1934, %v1888
    %v1936 = vadd.f32 %v1935, %v1892
    %v1937 = vadd.f32 %v1936, %v1896
    %v1938 = vadd.f32 %v1937, %v1900
    %v1939 = vrot.slane %v1938, 4
    %v1940 = vadd.f32 %v1938, %v1939
    %v1941 = vrot.slane %v1940, 2
    %v1942 = vadd.f32 %v1940, %v1941
    %v1943 = vrot.slane %v1942, 1
    %v1944 = vadd.f32 %v1942, %v1943
    %v1945 = vadd.f32 %v1841, %v1845
    %v1946 = vadd.f32 %v1945, %v1849
    %v1947 = vadd.f32 %v1946, %v1853
    %v1948 = vadd.f32 %v1947, %v1857
    %v1949 = vadd.f32 %v1948, %v1861
    %v1950 = vadd.f32 %v1949, %v1865
    %v1951 = vadd.f32 %v1950, %v1869
    %v1952 = vadd.f32 %v1951, %v1873
    %v1953 = vadd.f32 %v1952, %v1877
    %v1954 = vadd.f32 %v1953, %v1881
    %v1955 = vadd.f32 %v1954, %v1885
    %v1956 = vadd.f32 %v1955, %v1889
    %v1957 = vadd.f32 %v1956, %v1893
    %v1958 = vadd.f32 %v1957, %v1897
    %v1959 = vadd.f32 %v1958, %v1901
    %v1960 = vrot.slane %v1959, 4
    %v1961 = vadd.f32 %v1959, %v1960
    %v1962 = vrot.slane %v1961, 2
    %v1963 = vadd.f32 %v1961, %v1962
    %v1964 = vrot.slane %v1963, 1
    %v1965 = vadd.f32 %v1963, %v1964
    %v1966 = vadd.f32 %v1842, %v1846
    %v1967 = vadd.f32 %v1966, %v1850
    %v1968 = vadd.f32 %v1967, %v1854
    %v1969 = vadd.f32 %v1968, %v1858
    %v1970 = vadd.f32 %v1969, %v1862
    %v1971 = vadd.f32 %v1970, %v1866
    %v1972 = vadd.f32 %v1971, %v1870
    %v1973 = vadd.f32 %v1972, %v1874
    %v1974 = vadd.f32 %v1973, %v1878
    %v1975 = vadd.f32 %v1974, %v1882
    %v1976 = vadd.f32 %v1975, %v1886
    %v1977 = vadd.f32 %v1976, %v1890
    %v1978 = vadd.f32 %v1977, %v1894
    %v1979 = vadd.f32 %v1978, %v1898
    %v1980 = vadd.f32 %v1979, %v1902
    %v1981 = vrot.slane %v1980, 4
    %v1982 = vadd.f32 %v1980, %v1981
    %v1983 = vrot.slane %v1982, 2
    %v1984 = vadd.f32 %v1982, %v1983
    %v1985 = vrot.slane %v1984, 1
    %v1986 = vadd.f32 %v1984, %v1985
    %v1987 = vadd.f32 %v1355, %v1923
    %v1988 = vadd.f32 %v1356, %v1944
    %v1989 = vadd.f32 %v1357, %v1965
    %v1990 = vadd.f32 %v1358, %v1986
    %v1991 = vld [vmem:[%s3 + $0x180] sm:$0xff]
    %v1992 = vld [vmem:[%s3 + $0x188] sm:$0xff]
    %v1993 = vld [vmem:[%s3 + $0x190] sm:$0xff]
    %v1994 = vld [vmem:[%s3 + $0x198] sm:$0xff]
    %v1995 = vld [vmem:[%s3 + $0x1a0] sm:$0xff]
    %v1996 = vld [vmem:[%s3 + $0x1a8] sm:$0xff]
    %v1997 = vld [vmem:[%s3 + $0x1b0] sm:$0xff]
    %v1998 = vld [vmem:[%s3 + $0x1b8] sm:$0xff]
    %v1999 = vld [vmem:[%s3 + $0x1c0] sm:$0xff]
    %v2000 = vld [vmem:[%s3 + $0x1c8] sm:$0xff]
    %v2001 = vld [vmem:[%s3 + $0x1d0] sm:$0xff]
    %v2002 = vld [vmem:[%s3 + $0x1d8] sm:$0xff]
    %v2003 = vld [vmem:[%s3 + $0x1e0] sm:$0xff]
    %v2004 = vld [vmem:[%s3 + $0x1e8] sm:$0xff]
    %v2005 = vld [vmem:[%s3 + $0x1f0] sm:$0xff]
    %v2006 = vld [vmem:[%s3 + $0x1f8] sm:$0xff]
    %v2007 = vld [vmem:[%s4 + $0x180] sm:$0xff]
    %v2008 = vld [vmem:[%s4 + $0x188] sm:$0xff]
    %v2009 = vld [vmem:[%s4 + $0x190] sm:$0xff]
    %v2010 = vld [vmem:[%s4 + $0x198] sm:$0xff]
    %v2011 = vld [vmem:[%s4 + $0x1a0] sm:$0xff]
    %v2012 = vld [vmem:[%s4 + $0x1a8] sm:$0xff]
    %v2013 = vld [vmem:[%s4 + $0x1b0] sm:$0xff]
    %v2014 = vld [vmem:[%s4 + $0x1b8] sm:$0xff]
    %v2015 = vld [vmem:[%s4 + $0x1c0] sm:$0xff]
    %v2016 = vld [vmem:[%s4 + $0x1c8] sm:$0xff]
    %v2017 = vld [vmem:[%s4 + $0x1d0] sm:$0xff]
    %v2018 = vld [vmem:[%s4 + $0x1d8] sm:$0xff]
    %v2019 = vld [vmem:[%s4 + $0x1e0] sm:$0xff]
    %v2020 = vld [vmem:[%s4 + $0x1e8] sm:$0xff]
    %v2021 = vld [vmem:[%s4 + $0x1f0] sm:$0xff]
    %v2022 = vld [vmem:[%s4 + $0x1f8] sm:$0xff]
    %v2023 = vld [vmem:[%s5 + $0x180] sm:$0xff]
    %v2024 = vld [vmem:[%s5 + $0x188] sm:$0xff]
    %v2025 = vld [vmem:[%s5 + $0x190] sm:$0xff]
    %v2026 = vld [vmem:[%s5 + $0x198] sm:$0xff]
    %v2027 = vld [vmem:[%s5 + $0x1a0] sm:$0xff]
    %v2028 = vld [vmem:[%s5 + $0x1a8] sm:$0xff]
    %v2029 = vld [vmem:[%s5 + $0x1b0] sm:$0xff]
    %v2030 = vld [vmem:[%s5 + $0x1b8] sm:$0xff]
    %v2031 = vld [vmem:[%s5 + $0x1c0] sm:$0xff]
    %v2032 = vld [vmem:[%s5 + $0x1c8] sm:$0xff]
    %v2033 = vld [vmem:[%s5 + $0x1d0] sm:$0xff]
    %v2034 = vld [vmem:[%s5 + $0x1d8] sm:$0xff]
    %v2035 = vld [vmem:[%s5 + $0x1e0] sm:$0xff]
    %v2036 = vld [vmem:[%s5 + $0x1e8] sm:$0xff]
    %v2037 = vld [vmem:[%s5 + $0x1f0] sm:$0xff]
    %v2038 = vld [vmem:[%s5 + $0x1f8] sm:$0xff]
    %2040 = vset.pattern.permute.xlu0 0
    %2041 = vperm.xlu0 %2040, %v1991
    %v2042 = vpop.permute.xlu0 %2041
    %2045 = vset.pattern.permute.xlu0 0
    %2046 = vperm.xlu0 %2045, %v1992
    %v2047 = vpop.permute.xlu0 %2046
    %2050 = vset.pattern.permute.xlu0 0
    %2051 = vperm.xlu0 %2050, %v1993
    %v2052 = vpop.permute.xlu0 %2051
    %2055 = vset.pattern.permute.xlu0 0
    %2056 = vperm.xlu0 %2055, %v1994
    %v2057 = vpop.permute.xlu0 %2056
    %2060 = vset.pattern.permute.xlu0 0
    %2061 = vperm.xlu0 %2060, %v1995
    %v2062 = vpop.permute.xlu0 %2061
    %2065 = vset.pattern.permute.xlu0 0
    %2066 = vperm.xlu0 %2065, %v1996
    %v2067 = vpop.permute.xlu0 %2066
    %2070 = vset.pattern.permute.xlu0 0
    %2071 = vperm.xlu0 %2070, %v1997
    %v2072 = vpop.permute.xlu0 %2071
    %2075 = vset.pattern.permute.xlu0 0
    %2076 = vperm.xlu0 %2075, %v1998
    %v2077 = vpop.permute.xlu0 %2076
    %2080 = vset.pattern.permute.xlu0 0
    %2081 = vperm.xlu0 %2080, %v1999
    %v2082 = vpop.permute.xlu0 %2081
    %2085 = vset.pattern.permute.xlu0 0
    %2086 = vperm.xlu0 %2085, %v2000
    %v2087 = vpop.permute.xlu0 %2086
    %2090 = vset.pattern.permute.xlu0 0
    %2091 = vperm.xlu0 %2090, %v2001
    %v2092 = vpop.permute.xlu0 %2091
    %2095 = vset.pattern.permute.xlu0 0
    %2096 = vperm.xlu0 %2095, %v2002
    %v2097 = vpop.permute.xlu0 %2096
    %2100 = vset.pattern.permute.xlu0 0
    %2101 = vperm.xlu0 %2100, %v2003
    %v2102 = vpop.permute.xlu0 %2101
    %2105 = vset.pattern.permute.xlu0 0
    %2106 = vperm.xlu0 %2105, %v2004
    %v2107 = vpop.permute.xlu0 %2106
    %2110 = vset.pattern.permute.xlu0 0
    %2111 = vperm.xlu0 %2110, %v2005
    %v2112 = vpop.permute.xlu0 %2111
    %2115 = vset.pattern.permute.xlu0 0
    %2116 = vperm.xlu0 %2115, %v2006
    %v2117 = vpop.permute.xlu0 %2116
    %v2119 = vmul.f32 %v2042, %v91
    %v2120 = vmul.f32 %v2042, %v92
    %v2121 = vmul.f32 %v2042, %v93
    %v2122 = vmul.f32 %v2042, %v94
    %v2123 = vmul.f32 %v2047, %v91
    %v2124 = vmul.f32 %v2047, %v92
    %v2125 = vmul.f32 %v2047, %v93
    %v2126 = vmul.f32 %v2047, %v94
    %v2127 = vmul.f32 %v2052, %v91
    %v2128 = vmul.f32 %v2052, %v92
    %v2129 = vmul.f32 %v2052, %v93
    %v2130 = vmul.f32 %v2052, %v94
    %v2131 = vmul.f32 %v2057, %v91
    %v2132 = vmul.f32 %v2057, %v92
    %v2133 = vmul.f32 %v2057, %v93
    %v2134 = vmul.f32 %v2057, %v94
    %v2135 = vmul.f32 %v2062, %v91
    %v2136 = vmul.f32 %v2062, %v92
    %v2137 = vmul.f32 %v2062, %v93
    %v2138 = vmul.f32 %v2062, %v94
    %v2139 = vmul.f32 %v2067, %v91
    %v2140 = vmul.f32 %v2067, %v92
    %v2141 = vmul.f32 %v2067, %v93
    %v2142 = vmul.f32 %v2067, %v94
    %v2143 = vmul.f32 %v2072, %v91
    %v2144 = vmul.f32 %v2072, %v92
    %v2145 = vmul.f32 %v2072, %v93
    %v2146 = vmul.f32 %v2072, %v94
    %v2147 = vmul.f32 %v2077, %v91
    %v2148 = vmul.f32 %v2077, %v92
    %v2149 = vmul.f32 %v2077, %v93
    %v2150 = vmul.f32 %v2077, %v94
    %v2151 = vmul.f32 %v2082, %v91
    %v2152 = vmul.f32 %v2082, %v92
    %v2153 = vmul.f32 %v2082, %v93
    %v2154 = vmul.f32 %v2082, %v94
    %v2155 = vmul.f32 %v2087, %v91
    %v2156 = vmul.f32 %v2087, %v92
    %v2157 = vmul.f32 %v2087, %v93
    %v2158 = vmul.f32 %v2087, %v94
    %v2159 = vmul.f32 %v2092, %v91
    %v2160 = vmul.f32 %v2092, %v92
    %v2161 = vmul.f32 %v2092, %v93
    %v2162 = vmul.f32 %v2092, %v94
    %v2163 = vmul.f32 %v2097, %v91
    %v2164 = vmul.f32 %v2097, %v92
    %v2165 = vmul.f32 %v2097, %v93
    %v2166 = vmul.f32 %v2097, %v94
    %v2167 = vmul.f32 %v2102, %v91
    %v2168 = vmul.f32 %v2102, %v92
    %v2169 = vmul.f32 %v2102, %v93
    %v2170 = vmul.f32 %v2102, %v94
    %v2171 = vmul.f32 %v2107, %v91
    %v2172 = vmul.f32 %v2107, %v92
    %v2173 = vmul.f32 %v2107, %v93
    %v2174 = vmul.f32 %v2107, %v94
    %v2175 = vmul.f32 %v2112, %v91
    %v2176 = vmul.f32 %v2112, %v92
    %v2177 = vmul.f32 %v2112, %v93
    %v2178 = vmul.f32 %v2112, %v94
    %v2179 = vmul.f32 %v2117, %v91
    %v2180 = vmul.f32 %v2117, %v92
    %v2181 = vmul.f32 %v2117, %v93
    %v2182 = vmul.f32 %v2117, %v94
    %2184 = vset.pattern.permute.xlu0 0
    %2185 = vperm.xlu0 %2184, %v2007
    %v2186 = vpop.permute.xlu0 %2185
    %2189 = vset.pattern.permute.xlu0 0
    %2190 = vperm.xlu0 %2189, %v2008
    %v2191 = vpop.permute.xlu0 %2190
    %2194 = vset.pattern.permute.xlu0 0
    %2195 = vperm.xlu0 %2194, %v2009
    %v2196 = vpop.permute.xlu0 %2195
    %2199 = vset.pattern.permute.xlu0 0
    %2200 = vperm.xlu0 %2199, %v2010
    %v2201 = vpop.permute.xlu0 %2200
    %2204 = vset.pattern.permute.xlu0 0
    %2205 = vperm.xlu0 %2204, %v2011
    %v2206 = vpop.permute.xlu0 %2205
    %2209 = vset.pattern.permute.xlu0 0
    %2210 = vperm.xlu0 %2209, %v2012
    %v2211 = vpop.permute.xlu0 %2210
    %2214 = vset.pattern.permute.xlu0 0
    %2215 = vperm.xlu0 %2214, %v2013
    %v2216 = vpop.permute.xlu0 %2215
    %2219 = vset.pattern.permute.xlu0 0
    %2220 = vperm.xlu0 %2219, %v2014
    %v2221 = vpop.permute.xlu0 %2220
    %2224 = vset.pattern.permute.xlu0 0
    %2225 = vperm.xlu0 %2224, %v2015
    %v2226 = vpop.permute.xlu0 %2225
    %2229 = vset.pattern.permute.xlu0 0
    %2230 = vperm.xlu0 %2229, %v2016
    %v2231 = vpop.permute.xlu0 %2230
    %2234 = vset.pattern.permute.xlu0 0
    %2235 = vperm.xlu0 %2234, %v2017
    %v2236 = vpop.permute.xlu0 %2235
    %2239 = vset.pattern.permute.xlu0 0
    %2240 = vperm.xlu0 %2239, %v2018
    %v2241 = vpop.permute.xlu0 %2240
    %2244 = vset.pattern.permute.xlu0 0
    %2245 = vperm.xlu0 %2244, %v2019
    %v2246 = vpop.permute.xlu0 %2245
    %2249 = vset.pattern.permute.xlu0 0
    %2250 = vperm.xlu0 %2249, %v2020
    %v2251 = vpop.permute.xlu0 %2250
    %2254 = vset.pattern.permute.xlu0 0
    %2255 = vperm.xlu0 %2254, %v2021
    %v2256 = vpop.permute.xlu0 %2255
    %2259 = vset.pattern.permute.xlu0 0
    %2260 = vperm.xlu0 %2259, %v2022
    %v2261 = vpop.permute.xlu0 %2260
    %v2263 = vadd.f32 %v2119, %v2186
    %v2264 = vadd.f32 %v2120, %v2186
    %v2265 = vadd.f32 %v2121, %v2186
    %v2266 = vadd.f32 %v2122, %v2186
    %v2267 = vadd.f32 %v2123, %v2191
    %v2268 = vadd.f32 %v2124, %v2191
    %v2269 = vadd.f32 %v2125, %v2191
    %v2270 = vadd.f32 %v2126, %v2191
    %v2271 = vadd.f32 %v2127, %v2196
    %v2272 = vadd.f32 %v2128, %v2196
    %v2273 = vadd.f32 %v2129, %v2196
    %v2274 = vadd.f32 %v2130, %v2196
    %v2275 = vadd.f32 %v2131, %v2201
    %v2276 = vadd.f32 %v2132, %v2201
    %v2277 = vadd.f32 %v2133, %v2201
    %v2278 = vadd.f32 %v2134, %v2201
    %v2279 = vadd.f32 %v2135, %v2206
    %v2280 = vadd.f32 %v2136, %v2206
    %v2281 = vadd.f32 %v2137, %v2206
    %v2282 = vadd.f32 %v2138, %v2206
    %v2283 = vadd.f32 %v2139, %v2211
    %v2284 = vadd.f32 %v2140, %v2211
    %v2285 = vadd.f32 %v2141, %v2211
    %v2286 = vadd.f32 %v2142, %v2211
    %v2287 = vadd.f32 %v2143, %v2216
    %v2288 = vadd.f32 %v2144, %v2216
    %v2289 = vadd.f32 %v2145, %v2216
    %v2290 = vadd.f32 %v2146, %v2216
    %v2291 = vadd.f32 %v2147, %v2221
    %v2292 = vadd.f32 %v2148, %v2221
    %v2293 = vadd.f32 %v2149, %v2221
    %v2294 = vadd.f32 %v2150, %v2221
    %v2295 = vadd.f32 %v2151, %v2226
    %v2296 = vadd.f32 %v2152, %v2226
    %v2297 = vadd.f32 %v2153, %v2226
    %v2298 = vadd.f32 %v2154, %v2226
    %v2299 = vadd.f32 %v2155, %v2231
    %v2300 = vadd.f32 %v2156, %v2231
    %v2301 = vadd.f32 %v2157, %v2231
    %v2302 = vadd.f32 %v2158, %v2231
    %v2303 = vadd.f32 %v2159, %v2236
    %v2304 = vadd.f32 %v2160, %v2236
    %v2305 = vadd.f32 %v2161, %v2236
    %v2306 = vadd.f32 %v2162, %v2236
    %v2307 = vadd.f32 %v2163, %v2241
    %v2308 = vadd.f32 %v2164, %v2241
    %v2309 = vadd.f32 %v2165, %v2241
    %v2310 = vadd.f32 %v2166, %v2241
    %v2311 = vadd.f32 %v2167, %v2246
    %v2312 = vadd.f32 %v2168, %v2246
    %v2313 = vadd.f32 %v2169, %v2246
    %v2314 = vadd.f32 %v2170, %v2246
    %v2315 = vadd.f32 %v2171, %v2251
    %v2316 = vadd.f32 %v2172, %v2251
    %v2317 = vadd.f32 %v2173, %v2251
    %v2318 = vadd.f32 %v2174, %v2251
    %v2319 = vadd.f32 %v2175, %v2256
    %v2320 = vadd.f32 %v2176, %v2256
    %v2321 = vadd.f32 %v2177, %v2256
    %v2322 = vadd.f32 %v2178, %v2256
    %v2323 = vadd.f32 %v2179, %v2261
    %v2324 = vadd.f32 %v2180, %v2261
    %v2325 = vadd.f32 %v2181, %v2261
    %v2326 = vadd.f32 %v2182, %v2261
    %v2327 = vtanh.pop %v2263
    %v2328 = vtanh.pop %v2264
    %v2329 = vtanh.pop %v2265
    %v2330 = vtanh.pop %v2266
    %v2331 = vtanh.pop %v2267
    %v2332 = vtanh.pop %v2268
    %v2333 = vtanh.pop %v2269
    %v2334 = vtanh.pop %v2270
    %v2335 = vtanh.pop %v2271
    %v2336 = vtanh.pop %v2272
    %v2337 = vtanh.pop %v2273
    %v2338 = vtanh.pop %v2274
    %v2339 = vtanh.pop %v2275
    %v2340 = vtanh.pop %v2276
    %v2341 = vtanh.pop %v2277
    %v2342 = vtanh.pop %v2278
    %v2343 = vtanh.pop %v2279
    %v2344 = vtanh.pop %v2280
    %v2345 = vtanh.pop %v2281
    %v2346 = vtanh.pop %v2282
    %v2347 = vtanh.pop %v2283
    %v2348 = vtanh.pop %v2284
    %v2349 = vtanh.pop %v2285
    %v2350 = vtanh.pop %v2286
    %v2351 = vtanh.pop %v2287
    %v2352 = vtanh.pop %v2288
    %v2353 = vtanh.pop %v2289
    %v2354 = vtanh.pop %v2290
    %v2355 = vtanh.pop %v2291
    %v2356 = vtanh.pop %v2292
    %v2357 = vtanh.pop %v2293
    %v2358 = vtanh.pop %v2294
    %v2359 = vtanh.pop %v2295
    %v2360 = vtanh.pop %v2296
    %v2361 = vtanh.pop %v2297
    %v2362 = vtanh.pop %v2298
    %v2363 = vtanh.pop %v2299
    %v2364 = vtanh.pop %v2300
    %v2365 = vtanh.pop %v2301
    %v2366 = vtanh.pop %v2302
    %v2367 = vtanh.pop %v2303
    %v2368 = vtanh.pop %v2304
    %v2369 = vtanh.pop %v2305
    %v2370 = vtanh.pop %v2306
    %v2371 = vtanh.pop %v2307
    %v2372 = vtanh.pop %v2308
    %v2373 = vtanh.pop %v2309
    %v2374 = vtanh.pop %v2310
    %v2375 = vtanh.pop %v2311
    %v2376 = vtanh.pop %v2312
    %v2377 = vtanh.pop %v2313
    %v2378 = vtanh.pop %v2314
    %v2379 = vtanh.pop %v2315
    %v2380 = vtanh.pop %v2316
    %v2381 = vtanh.pop %v2317
    %v2382 = vtanh.pop %v2318
    %v2383 = vtanh.pop %v2319
    %v2384 = vtanh.pop %v2320
    %v2385 = vtanh.pop %v2321
    %v2386 = vtanh.pop %v2322
    %v2387 = vtanh.pop %v2323
    %v2388 = vtanh.pop %v2324
    %v2389 = vtanh.pop %v2325
    %v2390 = vtanh.pop %v2326
    %2392 = vset.pattern.permute.xlu0 0
    %2393 = vperm.xlu0 %2392, %v2023
    %v2394 = vpop.permute.xlu0 %2393
    %2397 = vset.pattern.permute.xlu0 0
    %2398 = vperm.xlu0 %2397, %v2024
    %v2399 = vpop.permute.xlu0 %2398
    %2402 = vset.pattern.permute.xlu0 0
    %2403 = vperm.xlu0 %2402, %v2025
    %v2404 = vpop.permute.xlu0 %2403
    %2407 = vset.pattern.permute.xlu0 0
    %2408 = vperm.xlu0 %2407, %v2026
    %v2409 = vpop.permute.xlu0 %2408
    %2412 = vset.pattern.permute.xlu0 0
    %2413 = vperm.xlu0 %2412, %v2027
    %v2414 = vpop.permute.xlu0 %2413
    %2417 = vset.pattern.permute.xlu0 0
    %2418 = vperm.xlu0 %2417, %v2028
    %v2419 = vpop.permute.xlu0 %2418
    %2422 = vset.pattern.permute.xlu0 0
    %2423 = vperm.xlu0 %2422, %v2029
    %v2424 = vpop.permute.xlu0 %2423
    %2427 = vset.pattern.permute.xlu0 0
    %2428 = vperm.xlu0 %2427, %v2030
    %v2429 = vpop.permute.xlu0 %2428
    %2432 = vset.pattern.permute.xlu0 0
    %2433 = vperm.xlu0 %2432, %v2031
    %v2434 = vpop.permute.xlu0 %2433
    %2437 = vset.pattern.permute.xlu0 0
    %2438 = vperm.xlu0 %2437, %v2032
    %v2439 = vpop.permute.xlu0 %2438
    %2442 = vset.pattern.permute.xlu0 0
    %2443 = vperm.xlu0 %2442, %v2033
    %v2444 = vpop.permute.xlu0 %2443
    %2447 = vset.pattern.permute.xlu0 0
    %2448 = vperm.xlu0 %2447, %v2034
    %v2449 = vpop.permute.xlu0 %2448
    %2452 = vset.pattern.permute.xlu0 0
    %2453 = vperm.xlu0 %2452, %v2035
    %v2454 = vpop.permute.xlu0 %2453
    %2457 = vset.pattern.permute.xlu0 0
    %2458 = vperm.xlu0 %2457, %v2036
    %v2459 = vpop.permute.xlu0 %2458
    %2462 = vset.pattern.permute.xlu0 0
    %2463 = vperm.xlu0 %2462, %v2037
    %v2464 = vpop.permute.xlu0 %2463
    %2467 = vset.pattern.permute.xlu0 0
    %2468 = vperm.xlu0 %2467, %v2038
    %v2469 = vpop.permute.xlu0 %2468
    %v2471 = vmul.f32 %v2327, %v2394
    %v2472 = vmul.f32 %v2328, %v2394
    %v2473 = vmul.f32 %v2329, %v2394
    %v2474 = vmul.f32 %v2330, %v2394
    %v2475 = vmul.f32 %v2331, %v2399
    %v2476 = vmul.f32 %v2332, %v2399
    %v2477 = vmul.f32 %v2333, %v2399
    %v2478 = vmul.f32 %v2334, %v2399
    %v2479 = vmul.f32 %v2335, %v2404
    %v2480 = vmul.f32 %v2336, %v2404
    %v2481 = vmul.f32 %v2337, %v2404
    %v2482 = vmul.f32 %v2338, %v2404
    %v2483 = vmul.f32 %v2339, %v2409
    %v2484 = vmul.f32 %v2340, %v2409
    %v2485 = vmul.f32 %v2341, %v2409
    %v2486 = vmul.f32 %v2342, %v2409
    %v2487 = vmul.f32 %v2343, %v2414
    %v2488 = vmul.f32 %v2344, %v2414
    %v2489 = vmul.f32 %v2345, %v2414
    %v2490 = vmul.f32 %v2346, %v2414
    %v2491 = vmul.f32 %v2347, %v2419
    %v2492 = vmul.f32 %v2348, %v2419
    %v2493 = vmul.f32 %v2349, %v2419
    %v2494 = vmul.f32 %v2350, %v2419
    %v2495 = vmul.f32 %v2351, %v2424
    %v2496 = vmul.f32 %v2352, %v2424
    %v2497 = vmul.f32 %v2353, %v2424
    %v2498 = vmul.f32 %v2354, %v2424
    %v2499 = vmul.f32 %v2355, %v2429
    %v2500 = vmul.f32 %v2356, %v2429
    %v2501 = vmul.f32 %v2357, %v2429
    %v2502 = vmul.f32 %v2358, %v2429
    %v2503 = vmul.f32 %v2359, %v2434
    %v2504 = vmul.f32 %v2360, %v2434
    %v2505 = vmul.f32 %v2361, %v2434
    %v2506 = vmul.f32 %v2362, %v2434
    %v2507 = vmul.f32 %v2363, %v2439
    %v2508 = vmul.f32 %v2364, %v2439
    %v2509 = vmul.f32 %v2365, %v2439
    %v2510 = vmul.f32 %v2366, %v2439
    %v2511 = vmul.f32 %v2367, %v2444
    %v2512 = vmul.f32 %v2368, %v2444
    %v2513 = vmul.f32 %v2369, %v2444
    %v2514 = vmul.f32 %v2370, %v2444
    %v2515 = vmul.f32 %v2371, %v2449
    %v2516 = vmul.f32 %v2372, %v2449
    %v2517 = vmul.f32 %v2373, %v2449
    %v2518 = vmul.f32 %v2374, %v2449
    %v2519 = vmul.f32 %v2375, %v2454
    %v2520 = vmul.f32 %v2376, %v2454
    %v2521 = vmul.f32 %v2377, %v2454
    %v2522 = vmul.f32 %v2378, %v2454
    %v2523 = vmul.f32 %v2379, %v2459
    %v2524 = vmul.f32 %v2380, %v2459
    %v2525 = vmul.f32 %v2381, %v2459
    %v2526 = vmul.f32 %v2382, %v2459
    %v2527 = vmul.f32 %v2383, %v2464
    %v2528 = vmul.f32 %v2384, %v2464
    %v2529 = vmul.f32 %v2385, %v2464
    %v2530 = vmul.f32 %v2386, %v2464
    %v2531 = vmul.f32 %v2387, %v2469
    %v2532 = vmul.f32 %v2388, %v2469
    %v2533 = vmul.f32 %v2389, %v2469
    %v2534 = vmul.f32 %v2390, %v2469
    %v2535 = vadd.f32 %v2471, %v2475
    %v2536 = vadd.f32 %v2535, %v2479
    %v2537 = vadd.f32 %v2536, %v2483
    %v2538 = vadd.f32 %v2537, %v2487
    %v2539 = vadd.f32 %v2538, %v2491
    %v2540 = vadd.f32 %v2539, %v2495
    %v2541 = vadd.f32 %v2540, %v2499
    %v2542 = vadd.f32 %v2541, %v2503
    %v2543 = vadd.f32 %v2542, %v2507
    %v2544 = vadd.f32 %v2543, %v2511
    %v2545 = vadd.f32 %v2544, %v2515
    %v2546 = vadd.f32 %v2545, %v2519
    %v2547 = vadd.f32 %v2546, %v2523
    %v2548 = vadd.f32 %v2547, %v2527
    %v2549 = vadd.f32 %v2548, %v2531
    %v2550 = vrot.slane %v2549, 4
    %v2551 = vadd.f32 %v2549, %v2550
    %v2552 = vrot.slane %v2551, 2
    %v2553 = vadd.f32 %v2551, %v2552
    %v2554 = vrot.slane %v2553, 1
    %v2555 = vadd.f32 %v2553, %v2554
    %v2556 = vadd.f32 %v2472, %v2476
    %v2557 = vadd.f32 %v2556, %v2480
    %v2558 = vadd.f32 %v2557, %v2484
    %v2559 = vadd.f32 %v2558, %v2488
    %v2560 = vadd.f32 %v2559, %v2492
    %v2561 = vadd.f32 %v2560, %v2496
    %v2562 = vadd.f32 %v2561, %v2500
    %v2563 = vadd.f32 %v2562, %v2504
    %v2564 = vadd.f32 %v2563, %v2508
    %v2565 = vadd.f32 %v2564, %v2512
    %v2566 = vadd.f32 %v2565, %v2516
    %v2567 = vadd.f32 %v2566, %v2520
    %v2568 = vadd.f32 %v2567, %v2524
    %v2569 = vadd.f32 %v2568, %v2528
    %v2570 = vadd.f32 %v2569, %v2532
    %v2571 = vrot.slane %v2570, 4
    %v2572 = vadd.f32 %v2570, %v2571
    %v2573 = vrot.slane %v2572, 2
    %v2574 = vadd.f32 %v2572, %v2573
    %v2575 = vrot.slane %v2574, 1
    %v2576 = vadd.f32 %v2574, %v2575
    %v2577 = vadd.f32 %v2473, %v2477
    %v2578 = vadd.f32 %v2577, %v2481
    %v2579 = vadd.f32 %v2578, %v2485
    %v2580 = vadd.f32 %v2579, %v2489
    %v2581 = vadd.f32 %v2580, %v2493
    %v2582 = vadd.f32 %v2581, %v2497
    %v2583 = vadd.f32 %v2582, %v2501
    %v2584 = vadd.f32 %v2583, %v2505
    %v2585 = vadd.f32 %v2584, %v2509
    %v2586 = vadd.f32 %v2585, %v2513
    %v2587 = vadd.f32 %v2586, %v2517
    %v2588 = vadd.f32 %v2587, %v2521
    %v2589 = vadd.f32 %v2588, %v2525
    %v2590 = vadd.f32 %v2589, %v2529
    %v2591 = vadd.f32 %v2590, %v2533
    %v2592 = vrot.slane %v2591, 4
    %v2593 = vadd.f32 %v2591, %v2592
    %v2594 = vrot.slane %v2593, 2
    %v2595 = vadd.f32 %v2593, %v2594
    %v2596 = vrot.slane %v2595, 1
    %v2597 = vadd.f32 %v2595, %v2596
    %v2598 = vadd.f32 %v2474, %v2478
    %v2599 = vadd.f32 %v2598, %v2482
    %v2600 = vadd.f32 %v2599, %v2486
    %v2601 = vadd.f32 %v2600, %v2490
    %v2602 = vadd.f32 %v2601, %v2494
    %v2603 = vadd.f32 %v2602, %v2498
    %v2604 = vadd.f32 %v2603, %v2502
    %v2605 = vadd.f32 %v2604, %v2506
    %v2606 = vadd.f32 %v2605, %v2510
    %v2607 = vadd.f32 %v2606, %v2514
    %v2608 = vadd.f32 %v2607, %v2518
    %v2609 = vadd.f32 %v2608, %v2522
    %v2610 = vadd.f32 %v2609, %v2526
    %v2611 = vadd.f32 %v2610, %v2530
    %v2612 = vadd.f32 %v2611, %v2534
    %v2613 = vrot.slane %v2612, 4
    %v2614 = vadd.f32 %v2612, %v2613
    %v2615 = vrot.slane %v2614, 2
    %v2616 = vadd.f32 %v2614, %v2615
    %v2617 = vrot.slane %v2616, 1
    %v2618 = vadd.f32 %v2616, %v2617
    %v2619 = vadd.f32 %v1987, %v2555
    %v2620 = vadd.f32 %v1988, %v2576
    %v2621 = vadd.f32 %v1989, %v2597
    %v2622 = vadd.f32 %v1990, %v2618
    %v2623 = vld [vmem:[%s3 + $0x200] sm:$0xff]
    %v2624 = vld [vmem:[%s3 + $0x208] sm:$0xff]
    %v2625 = vld [vmem:[%s3 + $0x210] sm:$0xff]
    %v2626 = vld [vmem:[%s3 + $0x218] sm:$0xff]
    %v2627 = vld [vmem:[%s3 + $0x220] sm:$0xff]
    %v2628 = vld [vmem:[%s3 + $0x228] sm:$0xff]
    %v2629 = vld [vmem:[%s3 + $0x230] sm:$0xff]
    %v2630 = vld [vmem:[%s3 + $0x238] sm:$0xff]
    %v2631 = vld [vmem:[%s3 + $0x240] sm:$0xff]
    %v2632 = vld [vmem:[%s3 + $0x248] sm:$0xff]
    %v2633 = vld [vmem:[%s3 + $0x250] sm:$0xff]
    %v2634 = vld [vmem:[%s3 + $0x258] sm:$0xff]
    %v2635 = vld [vmem:[%s3 + $0x260] sm:$0xff]
    %v2636 = vld [vmem:[%s3 + $0x268] sm:$0xff]
    %v2637 = vld [vmem:[%s3 + $0x270] sm:$0xff]
    %v2638 = vld [vmem:[%s3 + $0x278] sm:$0xff]
    %v2639 = vld [vmem:[%s4 + $0x200] sm:$0xff]
    %v2640 = vld [vmem:[%s4 + $0x208] sm:$0xff]
    %v2641 = vld [vmem:[%s4 + $0x210] sm:$0xff]
    %v2642 = vld [vmem:[%s4 + $0x218] sm:$0xff]
    %v2643 = vld [vmem:[%s4 + $0x220] sm:$0xff]
    %v2644 = vld [vmem:[%s4 + $0x228] sm:$0xff]
    %v2645 = vld [vmem:[%s4 + $0x230] sm:$0xff]
    %v2646 = vld [vmem:[%s4 + $0x238] sm:$0xff]
    %v2647 = vld [vmem:[%s4 + $0x240] sm:$0xff]
    %v2648 = vld [vmem:[%s4 + $0x248] sm:$0xff]
    %v2649 = vld [vmem:[%s4 + $0x250] sm:$0xff]
    %v2650 = vld [vmem:[%s4 + $0x258] sm:$0xff]
    %v2651 = vld [vmem:[%s4 + $0x260] sm:$0xff]
    %v2652 = vld [vmem:[%s4 + $0x268] sm:$0xff]
    %v2653 = vld [vmem:[%s4 + $0x270] sm:$0xff]
    %v2654 = vld [vmem:[%s4 + $0x278] sm:$0xff]
    %v2655 = vld [vmem:[%s5 + $0x200] sm:$0xff]
    %v2656 = vld [vmem:[%s5 + $0x208] sm:$0xff]
    %v2657 = vld [vmem:[%s5 + $0x210] sm:$0xff]
    %v2658 = vld [vmem:[%s5 + $0x218] sm:$0xff]
    %v2659 = vld [vmem:[%s5 + $0x220] sm:$0xff]
    %v2660 = vld [vmem:[%s5 + $0x228] sm:$0xff]
    %v2661 = vld [vmem:[%s5 + $0x230] sm:$0xff]
    %v2662 = vld [vmem:[%s5 + $0x238] sm:$0xff]
    %v2663 = vld [vmem:[%s5 + $0x240] sm:$0xff]
    %v2664 = vld [vmem:[%s5 + $0x248] sm:$0xff]
    %v2665 = vld [vmem:[%s5 + $0x250] sm:$0xff]
    %v2666 = vld [vmem:[%s5 + $0x258] sm:$0xff]
    %v2667 = vld [vmem:[%s5 + $0x260] sm:$0xff]
    %v2668 = vld [vmem:[%s5 + $0x268] sm:$0xff]
    %v2669 = vld [vmem:[%s5 + $0x270] sm:$0xff]
    %v2670 = vld [vmem:[%s5 + $0x278] sm:$0xff]
    %2672 = vset.pattern.permute.xlu0 0
    %2673 = vperm.xlu0 %2672, %v2623
    %v2674 = vpop.permute.xlu0 %2673
    %2677 = vset.pattern.permute.xlu0 0
    %2678 = vperm.xlu0 %2677, %v2624
    %v2679 = vpop.permute.xlu0 %2678
    %2682 = vset.pattern.permute.xlu0 0
    %2683 = vperm.xlu0 %2682, %v2625
    %v2684 = vpop.permute.xlu0 %2683
    %2687 = vset.pattern.permute.xlu0 0
    %2688 = vperm.xlu0 %2687, %v2626
    %v2689 = vpop.permute.xlu0 %2688
    %2692 = vset.pattern.permute.xlu0 0
    %2693 = vperm.xlu0 %2692, %v2627
    %v2694 = vpop.permute.xlu0 %2693
    %2697 = vset.pattern.permute.xlu0 0
    %2698 = vperm.xlu0 %2697, %v2628
    %v2699 = vpop.permute.xlu0 %2698
    %2702 = vset.pattern.permute.xlu0 0
    %2703 = vperm.xlu0 %2702, %v2629
    %v2704 = vpop.permute.xlu0 %2703
    %2707 = vset.pattern.permute.xlu0 0
    %2708 = vperm.xlu0 %2707, %v2630
    %v2709 = vpop.permute.xlu0 %2708
    %2712 = vset.pattern.permute.xlu0 0
    %2713 = vperm.xlu0 %2712, %v2631
    %v2714 = vpop.permute.xlu0 %2713
    %2717 = vset.pattern.permute.xlu0 0
    %2718 = vperm.xlu0 %2717, %v2632
    %v2719 = vpop.permute.xlu0 %2718
    %2722 = vset.pattern.permute.xlu0 0
    %2723 = vperm.xlu0 %2722, %v2633
    %v2724 = vpop.permute.xlu0 %2723
    %2727 = vset.pattern.permute.xlu0 0
    %2728 = vperm.xlu0 %2727, %v2634
    %v2729 = vpop.permute.xlu0 %2728
    %2732 = vset.pattern.permute.xlu0 0
    %2733 = vperm.xlu0 %2732, %v2635
    %v2734 = vpop.permute.xlu0 %2733
    %2737 = vset.pattern.permute.xlu0 0
    %2738 = vperm.xlu0 %2737, %v2636
    %v2739 = vpop.permute.xlu0 %2738
    %2742 = vset.pattern.permute.xlu0 0
    %2743 = vperm.xlu0 %2742, %v2637
    %v2744 = vpop.permute.xlu0 %2743
    %2747 = vset.pattern.permute.xlu0 0
    %2748 = vperm.xlu0 %2747, %v2638
    %v2749 = vpop.permute.xlu0 %2748
    %v2751 = vmul.f32 %v2674, %v91
    %v2752 = vmul.f32 %v2674, %v92
    %v2753 = vmul.f32 %v2674, %v93
    %v2754 = vmul.f32 %v2674, %v94
    %v2755 = vmul.f32 %v2679, %v91
    %v2756 = vmul.f32 %v2679, %v92
    %v2757 = vmul.f32 %v2679, %v93
    %v2758 = vmul.f32 %v2679, %v94
    %v2759 = vmul.f32 %v2684, %v91
    %v2760 = vmul.f32 %v2684, %v92
    %v2761 = vmul.f32 %v2684, %v93
    %v2762 = vmul.f32 %v2684, %v94
    %v2763 = vmul.f32 %v2689, %v91
    %v2764 = vmul.f32 %v2689, %v92
    %v2765 = vmul.f32 %v2689, %v93
    %v2766 = vmul.f32 %v2689, %v94
    %v2767 = vmul.f32 %v2694, %v91
    %v2768 = vmul.f32 %v2694, %v92
    %v2769 = vmul.f32 %v2694, %v93
    %v2770 = vmul.f32 %v2694, %v94
    %v2771 = vmul.f32 %v2699, %v91
    %v2772 = vmul.f32 %v2699, %v92
    %v2773 = vmul.f32 %v2699, %v93
    %v2774 = vmul.f32 %v2699, %v94
    %v2775 = vmul.f32 %v2704, %v91
    %v2776 = vmul.f32 %v2704, %v92
    %v2777 = vmul.f32 %v2704, %v93
    %v2778 = vmul.f32 %v2704, %v94
    %v2779 = vmul.f32 %v2709, %v91
    %v2780 = vmul.f32 %v2709, %v92
    %v2781 = vmul.f32 %v2709, %v93
    %v2782 = vmul.f32 %v2709, %v94
    %v2783 = vmul.f32 %v2714, %v91
    %v2784 = vmul.f32 %v2714, %v92
    %v2785 = vmul.f32 %v2714, %v93
    %v2786 = vmul.f32 %v2714, %v94
    %v2787 = vmul.f32 %v2719, %v91
    %v2788 = vmul.f32 %v2719, %v92
    %v2789 = vmul.f32 %v2719, %v93
    %v2790 = vmul.f32 %v2719, %v94
    %v2791 = vmul.f32 %v2724, %v91
    %v2792 = vmul.f32 %v2724, %v92
    %v2793 = vmul.f32 %v2724, %v93
    %v2794 = vmul.f32 %v2724, %v94
    %v2795 = vmul.f32 %v2729, %v91
    %v2796 = vmul.f32 %v2729, %v92
    %v2797 = vmul.f32 %v2729, %v93
    %v2798 = vmul.f32 %v2729, %v94
    %v2799 = vmul.f32 %v2734, %v91
    %v2800 = vmul.f32 %v2734, %v92
    %v2801 = vmul.f32 %v2734, %v93
    %v2802 = vmul.f32 %v2734, %v94
    %v2803 = vmul.f32 %v2739, %v91
    %v2804 = vmul.f32 %v2739, %v92
    %v2805 = vmul.f32 %v2739, %v93
    %v2806 = vmul.f32 %v2739, %v94
    %v2807 = vmul.f32 %v2744, %v91
    %v2808 = vmul.f32 %v2744, %v92
    %v2809 = vmul.f32 %v2744, %v93
    %v2810 = vmul.f32 %v2744, %v94
    %v2811 = vmul.f32 %v2749, %v91
    %v2812 = vmul.f32 %v2749, %v92
    %v2813 = vmul.f32 %v2749, %v93
    %v2814 = vmul.f32 %v2749, %v94
    %2816 = vset.pattern.permute.xlu0 0
    %2817 = vperm.xlu0 %2816, %v2639
    %v2818 = vpop.permute.xlu0 %2817
    %2821 = vset.pattern.permute.xlu0 0
    %2822 = vperm.xlu0 %2821, %v2640
    %v2823 = vpop.permute.xlu0 %2822
    %2826 = vset.pattern.permute.xlu0 0
    %2827 = vperm.xlu0 %2826, %v2641
    %v2828 = vpop.permute.xlu0 %2827
    %2831 = vset.pattern.permute.xlu0 0
    %2832 = vperm.xlu0 %2831, %v2642
    %v2833 = vpop.permute.xlu0 %2832
    %2836 = vset.pattern.permute.xlu0 0
    %2837 = vperm.xlu0 %2836, %v2643
    %v2838 = vpop.permute.xlu0 %2837
    %2841 = vset.pattern.permute.xlu0 0
    %2842 = vperm.xlu0 %2841, %v2644
    %v2843 = vpop.permute.xlu0 %2842
    %2846 = vset.pattern.permute.xlu0 0
    %2847 = vperm.xlu0 %2846, %v2645
    %v2848 = vpop.permute.xlu0 %2847
    %2851 = vset.pattern.permute.xlu0 0
    %2852 = vperm.xlu0 %2851, %v2646
    %v2853 = vpop.permute.xlu0 %2852
    %2856 = vset.pattern.permute.xlu0 0
    %2857 = vperm.xlu0 %2856, %v2647
    %v2858 = vpop.permute.xlu0 %2857
    %2861 = vset.pattern.permute.xlu0 0
    %2862 = vperm.xlu0 %2861, %v2648
    %v2863 = vpop.permute.xlu0 %2862
    %2866 = vset.pattern.permute.xlu0 0
    %2867 = vperm.xlu0 %2866, %v2649
    %v2868 = vpop.permute.xlu0 %2867
    %2871 = vset.pattern.permute.xlu0 0
    %2872 = vperm.xlu0 %2871, %v2650
    %v2873 = vpop.permute.xlu0 %2872
    %2876 = vset.pattern.permute.xlu0 0
    %2877 = vperm.xlu0 %2876, %v2651
    %v2878 = vpop.permute.xlu0 %2877
    %2881 = vset.pattern.permute.xlu0 0
    %2882 = vperm.xlu0 %2881, %v2652
    %v2883 = vpop.permute.xlu0 %2882
    %2886 = vset.pattern.permute.xlu0 0
    %2887 = vperm.xlu0 %2886, %v2653
    %v2888 = vpop.permute.xlu0 %2887
    %2891 = vset.pattern.permute.xlu0 0
    %2892 = vperm.xlu0 %2891, %v2654
    %v2893 = vpop.permute.xlu0 %2892
    %v2895 = vadd.f32 %v2751, %v2818
    %v2896 = vadd.f32 %v2752, %v2818
    %v2897 = vadd.f32 %v2753, %v2818
    %v2898 = vadd.f32 %v2754, %v2818
    %v2899 = vadd.f32 %v2755, %v2823
    %v2900 = vadd.f32 %v2756, %v2823
    %v2901 = vadd.f32 %v2757, %v2823
    %v2902 = vadd.f32 %v2758, %v2823
    %v2903 = vadd.f32 %v2759, %v2828
    %v2904 = vadd.f32 %v2760, %v2828
    %v2905 = vadd.f32 %v2761, %v2828
    %v2906 = vadd.f32 %v2762, %v2828
    %v2907 = vadd.f32 %v2763, %v2833
    %v2908 = vadd.f32 %v2764, %v2833
    %v2909 = vadd.f32 %v2765, %v2833
    %v2910 = vadd.f32 %v2766, %v2833
    %v2911 = vadd.f32 %v2767, %v2838
    %v2912 = vadd.f32 %v2768, %v2838
    %v2913 = vadd.f32 %v2769, %v2838
    %v2914 = vadd.f32 %v2770, %v2838
    %v2915 = vadd.f32 %v2771, %v2843
    %v2916 = vadd.f32 %v2772, %v2843
    %v2917 = vadd.f32 %v2773, %v2843
    %v2918 = vadd.f32 %v2774, %v2843
    %v2919 = vadd.f32 %v2775, %v2848
    %v2920 = vadd.f32 %v2776, %v2848
    %v2921 = vadd.f32 %v2777, %v2848
    %v2922 = vadd.f32 %v2778, %v2848
    %v2923 = vadd.f32 %v2779, %v2853
    %v2924 = vadd.f32 %v2780, %v2853
    %v2925 = vadd.f32 %v2781, %v2853
    %v2926 = vadd.f32 %v2782, %v2853
    %v2927 = vadd.f32 %v2783, %v2858
    %v2928 = vadd.f32 %v2784, %v2858
    %v2929 = vadd.f32 %v2785, %v2858
    %v2930 = vadd.f32 %v2786, %v2858
    %v2931 = vadd.f32 %v2787, %v2863
    %v2932 = vadd.f32 %v2788, %v2863
    %v2933 = vadd.f32 %v2789, %v2863
    %v2934 = vadd.f32 %v2790, %v2863
    %v2935 = vadd.f32 %v2791, %v2868
    %v2936 = vadd.f32 %v2792, %v2868
    %v2937 = vadd.f32 %v2793, %v2868
    %v2938 = vadd.f32 %v2794, %v2868
    %v2939 = vadd.f32 %v2795, %v2873
    %v2940 = vadd.f32 %v2796, %v2873
    %v2941 = vadd.f32 %v2797, %v2873
    %v2942 = vadd.f32 %v2798, %v2873
    %v2943 = vadd.f32 %v2799, %v2878
    %v2944 = vadd.f32 %v2800, %v2878
    %v2945 = vadd.f32 %v2801, %v2878
    %v2946 = vadd.f32 %v2802, %v2878
    %v2947 = vadd.f32 %v2803, %v2883
    %v2948 = vadd.f32 %v2804, %v2883
    %v2949 = vadd.f32 %v2805, %v2883
    %v2950 = vadd.f32 %v2806, %v2883
    %v2951 = vadd.f32 %v2807, %v2888
    %v2952 = vadd.f32 %v2808, %v2888
    %v2953 = vadd.f32 %v2809, %v2888
    %v2954 = vadd.f32 %v2810, %v2888
    %v2955 = vadd.f32 %v2811, %v2893
    %v2956 = vadd.f32 %v2812, %v2893
    %v2957 = vadd.f32 %v2813, %v2893
    %v2958 = vadd.f32 %v2814, %v2893
    %v2959 = vtanh.pop %v2895
    %v2960 = vtanh.pop %v2896
    %v2961 = vtanh.pop %v2897
    %v2962 = vtanh.pop %v2898
    %v2963 = vtanh.pop %v2899
    %v2964 = vtanh.pop %v2900
    %v2965 = vtanh.pop %v2901
    %v2966 = vtanh.pop %v2902
    %v2967 = vtanh.pop %v2903
    %v2968 = vtanh.pop %v2904
    %v2969 = vtanh.pop %v2905
    %v2970 = vtanh.pop %v2906
    %v2971 = vtanh.pop %v2907
    %v2972 = vtanh.pop %v2908
    %v2973 = vtanh.pop %v2909
    %v2974 = vtanh.pop %v2910
    %v2975 = vtanh.pop %v2911
    %v2976 = vtanh.pop %v2912
    %v2977 = vtanh.pop %v2913
    %v2978 = vtanh.pop %v2914
    %v2979 = vtanh.pop %v2915
    %v2980 = vtanh.pop %v2916
    %v2981 = vtanh.pop %v2917
    %v2982 = vtanh.pop %v2918
    %v2983 = vtanh.pop %v2919
    %v2984 = vtanh.pop %v2920
    %v2985 = vtanh.pop %v2921
    %v2986 = vtanh.pop %v2922
    %v2987 = vtanh.pop %v2923
    %v2988 = vtanh.pop %v2924
    %v2989 = vtanh.pop %v2925
    %v2990 = vtanh.pop %v2926
    %v2991 = vtanh.pop %v2927
    %v2992 = vtanh.pop %v2928
    %v2993 = vtanh.pop %v2929
    %v2994 = vtanh.pop %v2930
    %v2995 = vtanh.pop %v2931
    %v2996 = vtanh.pop %v2932
    %v2997 = vtanh.pop %v2933
    %v2998 = vtanh.pop %v2934
    %v2999 = vtanh.pop %v2935
    %v3000 = vtanh.pop %v2936
    %v3001 = vtanh.pop %v2937
    %v3002 = vtanh.pop %v2938
    %v3003 = vtanh.pop %v2939
    %v3004 = vtanh.pop %v2940
    %v3005 = vtanh.pop %v2941
    %v3006 = vtanh.pop %v2942
    %v3007 = vtanh.pop %v2943
    %v3008 = vtanh.pop %v2944
    %v3009 = vtanh.pop %v2945
    %v3010 = vtanh.pop %v2946
    %v3011 = vtanh.pop %v2947
    %v3012 = vtanh.pop %v2948
    %v3013 = vtanh.pop %v2949
    %v3014 = vtanh.pop %v2950
    %v3015 = vtanh.pop %v2951
    %v3016 = vtanh.pop %v2952
    %v3017 = vtanh.pop %v2953
    %v3018 = vtanh.pop %v2954
    %v3019 = vtanh.pop %v2955
    %v3020 = vtanh.pop %v2956
    %v3021 = vtanh.pop %v2957
    %v3022 = vtanh.pop %v2958
    %3024 = vset.pattern.permute.xlu0 0
    %3025 = vperm.xlu0 %3024, %v2655
    %v3026 = vpop.permute.xlu0 %3025
    %3029 = vset.pattern.permute.xlu0 0
    %3030 = vperm.xlu0 %3029, %v2656
    %v3031 = vpop.permute.xlu0 %3030
    %3034 = vset.pattern.permute.xlu0 0
    %3035 = vperm.xlu0 %3034, %v2657
    %v3036 = vpop.permute.xlu0 %3035
    %3039 = vset.pattern.permute.xlu0 0
    %3040 = vperm.xlu0 %3039, %v2658
    %v3041 = vpop.permute.xlu0 %3040
    %3044 = vset.pattern.permute.xlu0 0
    %3045 = vperm.xlu0 %3044, %v2659
    %v3046 = vpop.permute.xlu0 %3045
    %3049 = vset.pattern.permute.xlu0 0
    %3050 = vperm.xlu0 %3049, %v2660
    %v3051 = vpop.permute.xlu0 %3050
    %3054 = vset.pattern.permute.xlu0 0
    %3055 = vperm.xlu0 %3054, %v2661
    %v3056 = vpop.permute.xlu0 %3055
    %3059 = vset.pattern.permute.xlu0 0
    %3060 = vperm.xlu0 %3059, %v2662
    %v3061 = vpop.permute.xlu0 %3060
    %3064 = vset.pattern.permute.xlu0 0
    %3065 = vperm.xlu0 %3064, %v2663
    %v3066 = vpop.permute.xlu0 %3065
    %3069 = vset.pattern.permute.xlu0 0
    %3070 = vperm.xlu0 %3069, %v2664
    %v3071 = vpop.permute.xlu0 %3070
    %3074 = vset.pattern.permute.xlu0 0
    %3075 = vperm.xlu0 %3074, %v2665
    %v3076 = vpop.permute.xlu0 %3075
    %3079 = vset.pattern.permute.xlu0 0
    %3080 = vperm.xlu0 %3079, %v2666
    %v3081 = vpop.permute.xlu0 %3080
    %3084 = vset.pattern.permute.xlu0 0
    %3085 = vperm.xlu0 %3084, %v2667
    %v3086 = vpop.permute.xlu0 %3085
    %3089 = vset.pattern.permute.xlu0 0
    %3090 = vperm.xlu0 %3089, %v2668
    %v3091 = vpop.permute.xlu0 %3090
    %3094 = vset.pattern.permute.xlu0 0
    %3095 = vperm.xlu0 %3094, %v2669
    %v3096 = vpop.permute.xlu0 %3095
    %3099 = vset.pattern.permute.xlu0 0
    %3100 = vperm.xlu0 %3099, %v2670
    %v3101 = vpop.permute.xlu0 %3100
    %v3103 = vmul.f32 %v2959, %v3026
    %v3104 = vmul.f32 %v2960, %v3026
    %v3105 = vmul.f32 %v2961, %v3026
    %v3106 = vmul.f32 %v2962, %v3026
    %v3107 = vmul.f32 %v2963, %v3031
    %v3108 = vmul.f32 %v2964, %v3031
    %v3109 = vmul.f32 %v2965, %v3031
    %v3110 = vmul.f32 %v2966, %v3031
    %v3111 = vmul.f32 %v2967, %v3036
    %v3112 = vmul.f32 %v2968, %v3036
    %v3113 = vmul.f32 %v2969, %v3036
    %v3114 = vmul.f32 %v2970, %v3036
    %v3115 = vmul.f32 %v2971, %v3041
    %v3116 = vmul.f32 %v2972, %v3041
    %v3117 = vmul.f32 %v2973, %v3041
    %v3118 = vmul.f32 %v2974, %v3041
    %v3119 = vmul.f32 %v2975, %v3046
    %v3120 = vmul.f32 %v2976, %v3046
    %v3121 = vmul.f32 %v2977, %v3046
    %v3122 = vmul.f32 %v2978, %v3046
    %v3123 = vmul.f32 %v2979, %v3051
    %v3124 = vmul.f32 %v2980, %v3051
    %v3125 = vmul.f32 %v2981, %v3051
    %v3126 = vmul.f32 %v2982, %v3051
    %v3127 = vmul.f32 %v2983, %v3056
    %v3128 = vmul.f32 %v2984, %v3056
    %v3129 = vmul.f32 %v2985, %v3056
    %v3130 = vmul.f32 %v2986, %v3056
    %v3131 = vmul.f32 %v2987, %v3061
    %v3132 = vmul.f32 %v2988, %v3061
    %v3133 = vmul.f32 %v2989, %v3061
    %v3134 = vmul.f32 %v2990, %v3061
    %v3135 = vmul.f32 %v2991, %v3066
    %v3136 = vmul.f32 %v2992, %v3066
    %v3137 = vmul.f32 %v2993, %v3066
    %v3138 = vmul.f32 %v2994, %v3066
    %v3139 = vmul.f32 %v2995, %v3071
    %v3140 = vmul.f32 %v2996, %v3071
    %v3141 = vmul.f32 %v2997, %v3071
    %v3142 = vmul.f32 %v2998, %v3071
    %v3143 = vmul.f32 %v2999, %v3076
    %v3144 = vmul.f32 %v3000, %v3076
    %v3145 = vmul.f32 %v3001, %v3076
    %v3146 = vmul.f32 %v3002, %v3076
    %v3147 = vmul.f32 %v3003, %v3081
    %v3148 = vmul.f32 %v3004, %v3081
    %v3149 = vmul.f32 %v3005, %v3081
    %v3150 = vmul.f32 %v3006, %v3081
    %v3151 = vmul.f32 %v3007, %v3086
    %v3152 = vmul.f32 %v3008, %v3086
    %v3153 = vmul.f32 %v3009, %v3086
    %v3154 = vmul.f32 %v3010, %v3086
    %v3155 = vmul.f32 %v3011, %v3091
    %v3156 = vmul.f32 %v3012, %v3091
    %v3157 = vmul.f32 %v3013, %v3091
    %v3158 = vmul.f32 %v3014, %v3091
    %v3159 = vmul.f32 %v3015, %v3096
    %v3160 = vmul.f32 %v3016, %v3096
    %v3161 = vmul.f32 %v3017, %v3096
    %v3162 = vmul.f32 %v3018, %v3096
    %v3163 = vmul.f32 %v3019, %v3101
    %v3164 = vmul.f32 %v3020, %v3101
    %v3165 = vmul.f32 %v3021, %v3101
    %v3166 = vmul.f32 %v3022, %v3101
    %v3167 = vadd.f32 %v3103, %v3107
    %v3168 = vadd.f32 %v3167, %v3111
    %v3169 = vadd.f32 %v3168, %v3115
    %v3170 = vadd.f32 %v3169, %v3119
    %v3171 = vadd.f32 %v3170, %v3123
    %v3172 = vadd.f32 %v3171, %v3127
    %v3173 = vadd.f32 %v3172, %v3131
    %v3174 = vadd.f32 %v3173, %v3135
    %v3175 = vadd.f32 %v3174, %v3139
    %v3176 = vadd.f32 %v3175, %v3143
    %v3177 = vadd.f32 %v3176, %v3147
    %v3178 = vadd.f32 %v3177, %v3151
    %v3179 = vadd.f32 %v3178, %v3155
    %v3180 = vadd.f32 %v3179, %v3159
    %v3181 = vadd.f32 %v3180, %v3163
    %v3182 = vrot.slane %v3181, 4
    %v3183 = vadd.f32 %v3181, %v3182
    %v3184 = vrot.slane %v3183, 2
    %v3185 = vadd.f32 %v3183, %v3184
    %v3186 = vrot.slane %v3185, 1
    %v3187 = vadd.f32 %v3185, %v3186
    %v3188 = vadd.f32 %v3104, %v3108
    %v3189 = vadd.f32 %v3188, %v3112
    %v3190 = vadd.f32 %v3189, %v3116
    %v3191 = vadd.f32 %v3190, %v3120
    %v3192 = vadd.f32 %v3191, %v3124
    %v3193 = vadd.f32 %v3192, %v3128
    %v3194 = vadd.f32 %v3193, %v3132
    %v3195 = vadd.f32 %v3194, %v3136
    %v3196 = vadd.f32 %v3195, %v3140
    %v3197 = vadd.f32 %v3196, %v3144
    %v3198 = vadd.f32 %v3197, %v3148
    %v3199 = vadd.f32 %v3198, %v3152
    %v3200 = vadd.f32 %v3199, %v3156
    %v3201 = vadd.f32 %v3200, %v3160
    %v3202 = vadd.f32 %v3201, %v3164
    %v3203 = vrot.slane %v3202, 4
    %v3204 = vadd.f32 %v3202, %v3203
    %v3205 = vrot.slane %v3204, 2
    %v3206 = vadd.f32 %v3204, %v3205
    %v3207 = vrot.slane %v3206, 1
    %v3208 = vadd.f32 %v3206, %v3207
    %v3209 = vadd.f32 %v3105, %v3109
    %v3210 = vadd.f32 %v3209, %v3113
    %v3211 = vadd.f32 %v3210, %v3117
    %v3212 = vadd.f32 %v3211, %v3121
    %v3213 = vadd.f32 %v3212, %v3125
    %v3214 = vadd.f32 %v3213, %v3129
    %v3215 = vadd.f32 %v3214, %v3133
    %v3216 = vadd.f32 %v3215, %v3137
    %v3217 = vadd.f32 %v3216, %v3141
    %v3218 = vadd.f32 %v3217, %v3145
    %v3219 = vadd.f32 %v3218, %v3149
    %v3220 = vadd.f32 %v3219, %v3153
    %v3221 = vadd.f32 %v3220, %v3157
    %v3222 = vadd.f32 %v3221, %v3161
    %v3223 = vadd.f32 %v3222, %v3165
    %v3224 = vrot.slane %v3223, 4
    %v3225 = vadd.f32 %v3223, %v3224
    %v3226 = vrot.slane %v3225, 2
    %v3227 = vadd.f32 %v3225, %v3226
    %v3228 = vrot.slane %v3227, 1
    %v3229 = vadd.f32 %v3227, %v3228
    %v3230 = vadd.f32 %v3106, %v3110
    %v3231 = vadd.f32 %v3230, %v3114
    %v3232 = vadd.f32 %v3231, %v3118
    %v3233 = vadd.f32 %v3232, %v3122
    %v3234 = vadd.f32 %v3233, %v3126
    %v3235 = vadd.f32 %v3234, %v3130
    %v3236 = vadd.f32 %v3235, %v3134
    %v3237 = vadd.f32 %v3236, %v3138
    %v3238 = vadd.f32 %v3237, %v3142
    %v3239 = vadd.f32 %v3238, %v3146
    %v3240 = vadd.f32 %v3239, %v3150
    %v3241 = vadd.f32 %v3240, %v3154
    %v3242 = vadd.f32 %v3241, %v3158
    %v3243 = vadd.f32 %v3242, %v3162
    %v3244 = vadd.f32 %v3243, %v3166
    %v3245 = vrot.slane %v3244, 4
    %v3246 = vadd.f32 %v3244, %v3245
    %v3247 = vrot.slane %v3246, 2
    %v3248 = vadd.f32 %v3246, %v3247
    %v3249 = vrot.slane %v3248, 1
    %v3250 = vadd.f32 %v3248, %v3249
    %v3251 = vadd.f32 %v2619, %v3187
    %v3252 = vadd.f32 %v2620, %v3208
    %v3253 = vadd.f32 %v2621, %v3229
    %v3254 = vadd.f32 %v2622, %v3250
    %v3255 = vld [vmem:[%s3 + $0x280] sm:$0xff]
    %v3256 = vld [vmem:[%s3 + $0x288] sm:$0xff]
    %v3257 = vld [vmem:[%s3 + $0x290] sm:$0xff]
    %v3258 = vld [vmem:[%s3 + $0x298] sm:$0xff]
    %v3259 = vld [vmem:[%s3 + $0x2a0] sm:$0xff]
    %v3260 = vld [vmem:[%s3 + $0x2a8] sm:$0xff]
    %v3261 = vld [vmem:[%s3 + $0x2b0] sm:$0xff]
    %v3262 = vld [vmem:[%s3 + $0x2b8] sm:$0xff]
    %v3263 = vld [vmem:[%s3 + $0x2c0] sm:$0xff]
    %v3264 = vld [vmem:[%s3 + $0x2c8] sm:$0xff]
    %v3265 = vld [vmem:[%s3 + $0x2d0] sm:$0xff]
    %v3266 = vld [vmem:[%s3 + $0x2d8] sm:$0xff]
    %v3267 = vld [vmem:[%s3 + $0x2e0] sm:$0xff]
    %v3268 = vld [vmem:[%s3 + $0x2e8] sm:$0xff]
    %v3269 = vld [vmem:[%s3 + $0x2f0] sm:$0xff]
    %v3270 = vld [vmem:[%s3 + $0x2f8] sm:$0xff]
    %v3271 = vld [vmem:[%s4 + $0x280] sm:$0xff]
    %v3272 = vld [vmem:[%s4 + $0x288] sm:$0xff]
    %v3273 = vld [vmem:[%s4 + $0x290] sm:$0xff]
    %v3274 = vld [vmem:[%s4 + $0x298] sm:$0xff]
    %v3275 = vld [vmem:[%s4 + $0x2a0] sm:$0xff]
    %v3276 = vld [vmem:[%s4 + $0x2a8] sm:$0xff]
    %v3277 = vld [vmem:[%s4 + $0x2b0] sm:$0xff]
    %v3278 = vld [vmem:[%s4 + $0x2b8] sm:$0xff]
    %v3279 = vld [vmem:[%s4 + $0x2c0] sm:$0xff]
    %v3280 = vld [vmem:[%s4 + $0x2c8] sm:$0xff]
    %v3281 = vld [vmem:[%s4 + $0x2d0] sm:$0xff]
    %v3282 = vld [vmem:[%s4 + $0x2d8] sm:$0xff]
    %v3283 = vld [vmem:[%s4 + $0x2e0] sm:$0xff]
    %v3284 = vld [vmem:[%s4 + $0x2e8] sm:$0xff]
    %v3285 = vld [vmem:[%s4 + $0x2f0] sm:$0xff]
    %v3286 = vld [vmem:[%s4 + $0x2f8] sm:$0xff]
    %v3287 = vld [vmem:[%s5 + $0x280] sm:$0xff]
    %v3288 = vld [vmem:[%s5 + $0x288] sm:$0xff]
    %v3289 = vld [vmem:[%s5 + $0x290] sm:$0xff]
    %v3290 = vld [vmem:[%s5 + $0x298] sm:$0xff]
    %v3291 = vld [vmem:[%s5 + $0x2a0] sm:$0xff]
    %v3292 = vld [vmem:[%s5 + $0x2a8] sm:$0xff]
    %v3293 = vld [vmem:[%s5 + $0x2b0] sm:$0xff]
    %v3294 = vld [vmem:[%s5 + $0x2b8] sm:$0xff]
    %v3295 = vld [vmem:[%s5 + $0x2c0] sm:$0xff]
    %v3296 = vld [vmem:[%s5 + $0x2c8] sm:$0xff]
    %v3297 = vld [vmem:[%s5 + $0x2d0] sm:$0xff]
    %v3298 = vld [vmem:[%s5 + $0x2d8] sm:$0xff]
    %v3299 = vld [vmem:[%s5 + $0x2e0] sm:$0xff]
    %v3300 = vld [vmem:[%s5 + $0x2e8] sm:$0xff]
    %v3301 = vld [vmem:[%s5 + $0x2f0] sm:$0xff]
    %v3302 = vld [vmem:[%s5 + $0x2f8] sm:$0xff]
    %3304 = vset.pattern.permute.xlu0 0
    %3305 = vperm.xlu0 %3304, %v3255
    %v3306 = vpop.permute.xlu0 %3305
    %3309 = vset.pattern.permute.xlu0 0
    %3310 = vperm.xlu0 %3309, %v3256
    %v3311 = vpop.permute.xlu0 %3310
    %3314 = vset.pattern.permute.xlu0 0
    %3315 = vperm.xlu0 %3314, %v3257
    %v3316 = vpop.permute.xlu0 %3315
    %3319 = vset.pattern.permute.xlu0 0
    %3320 = vperm.xlu0 %3319, %v3258
    %v3321 = vpop.permute.xlu0 %3320
    %3324 = vset.pattern.permute.xlu0 0
    %3325 = vperm.xlu0 %3324, %v3259
    %v3326 = vpop.permute.xlu0 %3325
    %3329 = vset.pattern.permute.xlu0 0
    %3330 = vperm.xlu0 %3329, %v3260
    %v3331 = vpop.permute.xlu0 %3330
    %3334 = vset.pattern.permute.xlu0 0
    %3335 = vperm.xlu0 %3334, %v3261
    %v3336 = vpop.permute.xlu0 %3335
    %3339 = vset.pattern.permute.xlu0 0
    %3340 = vperm.xlu0 %3339, %v3262
    %v3341 = vpop.permute.xlu0 %3340
    %3344 = vset.pattern.permute.xlu0 0
    %3345 = vperm.xlu0 %3344, %v3263
    %v3346 = vpop.permute.xlu0 %3345
    %3349 = vset.pattern.permute.xlu0 0
    %3350 = vperm.xlu0 %3349, %v3264
    %v3351 = vpop.permute.xlu0 %3350
    %3354 = vset.pattern.permute.xlu0 0
    %3355 = vperm.xlu0 %3354, %v3265
    %v3356 = vpop.permute.xlu0 %3355
    %3359 = vset.pattern.permute.xlu0 0
    %3360 = vperm.xlu0 %3359, %v3266
    %v3361 = vpop.permute.xlu0 %3360
    %3364 = vset.pattern.permute.xlu0 0
    %3365 = vperm.xlu0 %3364, %v3267
    %v3366 = vpop.permute.xlu0 %3365
    %3369 = vset.pattern.permute.xlu0 0
    %3370 = vperm.xlu0 %3369, %v3268
    %v3371 = vpop.permute.xlu0 %3370
    %3374 = vset.pattern.permute.xlu0 0
    %3375 = vperm.xlu0 %3374, %v3269
    %v3376 = vpop.permute.xlu0 %3375
    %3379 = vset.pattern.permute.xlu0 0
    %3380 = vperm.xlu0 %3379, %v3270
    %v3381 = vpop.permute.xlu0 %3380
    %v3383 = vmul.f32 %v3306, %v91
    %v3384 = vmul.f32 %v3306, %v92
    %v3385 = vmul.f32 %v3306, %v93
    %v3386 = vmul.f32 %v3306, %v94
    %v3387 = vmul.f32 %v3311, %v91
    %v3388 = vmul.f32 %v3311, %v92
    %v3389 = vmul.f32 %v3311, %v93
    %v3390 = vmul.f32 %v3311, %v94
    %v3391 = vmul.f32 %v3316, %v91
    %v3392 = vmul.f32 %v3316, %v92
    %v3393 = vmul.f32 %v3316, %v93
    %v3394 = vmul.f32 %v3316, %v94
    %v3395 = vmul.f32 %v3321, %v91
    %v3396 = vmul.f32 %v3321, %v92
    %v3397 = vmul.f32 %v3321, %v93
    %v3398 = vmul.f32 %v3321, %v94
    %v3399 = vmul.f32 %v3326, %v91
    %v3400 = vmul.f32 %v3326, %v92
    %v3401 = vmul.f32 %v3326, %v93
    %v3402 = vmul.f32 %v3326, %v94
    %v3403 = vmul.f32 %v3331, %v91
    %v3404 = vmul.f32 %v3331, %v92
    %v3405 = vmul.f32 %v3331, %v93
    %v3406 = vmul.f32 %v3331, %v94
    %v3407 = vmul.f32 %v3336, %v91
    %v3408 = vmul.f32 %v3336, %v92
    %v3409 = vmul.f32 %v3336, %v93
    %v3410 = vmul.f32 %v3336, %v94
    %v3411 = vmul.f32 %v3341, %v91
    %v3412 = vmul.f32 %v3341, %v92
    %v3413 = vmul.f32 %v3341, %v93
    %v3414 = vmul.f32 %v3341, %v94
    %v3415 = vmul.f32 %v3346, %v91
    %v3416 = vmul.f32 %v3346, %v92
    %v3417 = vmul.f32 %v3346, %v93
    %v3418 = vmul.f32 %v3346, %v94
    %v3419 = vmul.f32 %v3351, %v91
    %v3420 = vmul.f32 %v3351, %v92
    %v3421 = vmul.f32 %v3351, %v93
    %v3422 = vmul.f32 %v3351, %v94
    %v3423 = vmul.f32 %v3356, %v91
    %v3424 = vmul.f32 %v3356, %v92
    %v3425 = vmul.f32 %v3356, %v93
    %v3426 = vmul.f32 %v3356, %v94
    %v3427 = vmul.f32 %v3361, %v91
    %v3428 = vmul.f32 %v3361, %v92
    %v3429 = vmul.f32 %v3361, %v93
    %v3430 = vmul.f32 %v3361, %v94
    %v3431 = vmul.f32 %v3366, %v91
    %v3432 = vmul.f32 %v3366, %v92
    %v3433 = vmul.f32 %v3366, %v93
    %v3434 = vmul.f32 %v3366, %v94
    %v3435 = vmul.f32 %v3371, %v91
    %v3436 = vmul.f32 %v3371, %v92
    %v3437 = vmul.f32 %v3371, %v93
    %v3438 = vmul.f32 %v3371, %v94
    %v3439 = vmul.f32 %v3376, %v91
    %v3440 = vmul.f32 %v3376, %v92
    %v3441 = vmul.f32 %v3376, %v93
    %v3442 = vmul.f32 %v3376, %v94
    %v3443 = vmul.f32 %v3381, %v91
    %v3444 = vmul.f32 %v3381, %v92
    %v3445 = vmul.f32 %v3381, %v93
    %v3446 = vmul.f32 %v3381, %v94
    %3448 = vset.pattern.permute.xlu0 0
    %3449 = vperm.xlu0 %3448, %v3271
    %v3450 = vpop.permute.xlu0 %3449
    %3453 = vset.pattern.permute.xlu0 0
    %3454 = vperm.xlu0 %3453, %v3272
    %v3455 = vpop.permute.xlu0 %3454
    %3458 = vset.pattern.permute.xlu0 0
    %3459 = vperm.xlu0 %3458, %v3273
    %v3460 = vpop.permute.xlu0 %3459
    %3463 = vset.pattern.permute.xlu0 0
    %3464 = vperm.xlu0 %3463, %v3274
    %v3465 = vpop.permute.xlu0 %3464
    %3468 = vset.pattern.permute.xlu0 0
    %3469 = vperm.xlu0 %3468, %v3275
    %v3470 = vpop.permute.xlu0 %3469
    %3473 = vset.pattern.permute.xlu0 0
    %3474 = vperm.xlu0 %3473, %v3276
    %v3475 = vpop.permute.xlu0 %3474
    %3478 = vset.pattern.permute.xlu0 0
    %3479 = vperm.xlu0 %3478, %v3277
    %v3480 = vpop.permute.xlu0 %3479
    %3483 = vset.pattern.permute.xlu0 0
    %3484 = vperm.xlu0 %3483, %v3278
    %v3485 = vpop.permute.xlu0 %3484
    %3488 = vset.pattern.permute.xlu0 0
    %3489 = vperm.xlu0 %3488, %v3279
    %v3490 = vpop.permute.xlu0 %3489
    %3493 = vset.pattern.permute.xlu0 0
    %3494 = vperm.xlu0 %3493, %v3280
    %v3495 = vpop.permute.xlu0 %3494
    %3498 = vset.pattern.permute.xlu0 0
    %3499 = vperm.xlu0 %3498, %v3281
    %v3500 = vpop.permute.xlu0 %3499
    %3503 = vset.pattern.permute.xlu0 0
    %3504 = vperm.xlu0 %3503, %v3282
    %v3505 = vpop.permute.xlu0 %3504
    %3508 = vset.pattern.permute.xlu0 0
    %3509 = vperm.xlu0 %3508, %v3283
    %v3510 = vpop.permute.xlu0 %3509
    %3513 = vset.pattern.permute.xlu0 0
    %3514 = vperm.xlu0 %3513, %v3284
    %v3515 = vpop.permute.xlu0 %3514
    %3518 = vset.pattern.permute.xlu0 0
    %3519 = vperm.xlu0 %3518, %v3285
    %v3520 = vpop.permute.xlu0 %3519
    %3523 = vset.pattern.permute.xlu0 0
    %3524 = vperm.xlu0 %3523, %v3286
    %v3525 = vpop.permute.xlu0 %3524
    %v3527 = vadd.f32 %v3383, %v3450
    %v3528 = vadd.f32 %v3384, %v3450
    %v3529 = vadd.f32 %v3385, %v3450
    %v3530 = vadd.f32 %v3386, %v3450
    %v3531 = vadd.f32 %v3387, %v3455
    %v3532 = vadd.f32 %v3388, %v3455
    %v3533 = vadd.f32 %v3389, %v3455
    %v3534 = vadd.f32 %v3390, %v3455
    %v3535 = vadd.f32 %v3391, %v3460
    %v3536 = vadd.f32 %v3392, %v3460
    %v3537 = vadd.f32 %v3393, %v3460
    %v3538 = vadd.f32 %v3394, %v3460
    %v3539 = vadd.f32 %v3395, %v3465
    %v3540 = vadd.f32 %v3396, %v3465
    %v3541 = vadd.f32 %v3397, %v3465
    %v3542 = vadd.f32 %v3398, %v3465
    %v3543 = vadd.f32 %v3399, %v3470
    %v3544 = vadd.f32 %v3400, %v3470
    %v3545 = vadd.f32 %v3401, %v3470
    %v3546 = vadd.f32 %v3402, %v3470
    %v3547 = vadd.f32 %v3403, %v3475
    %v3548 = vadd.f32 %v3404, %v3475
    %v3549 = vadd.f32 %v3405, %v3475
    %v3550 = vadd.f32 %v3406, %v3475
    %v3551 = vadd.f32 %v3407, %v3480
    %v3552 = vadd.f32 %v3408, %v3480
    %v3553 = vadd.f32 %v3409, %v3480
    %v3554 = vadd.f32 %v3410, %v3480
    %v3555 = vadd.f32 %v3411, %v3485
    %v3556 = vadd.f32 %v3412, %v3485
    %v3557 = vadd.f32 %v3413, %v3485
    %v3558 = vadd.f32 %v3414, %v3485
    %v3559 = vadd.f32 %v3415, %v3490
    %v3560 = vadd.f32 %v3416, %v3490
    %v3561 = vadd.f32 %v3417, %v3490
    %v3562 = vadd.f32 %v3418, %v3490
    %v3563 = vadd.f32 %v3419, %v3495
    %v3564 = vadd.f32 %v3420, %v3495
    %v3565 = vadd.f32 %v3421, %v3495
    %v3566 = vadd.f32 %v3422, %v3495
    %v3567 = vadd.f32 %v3423, %v3500
    %v3568 = vadd.f32 %v3424, %v3500
    %v3569 = vadd.f32 %v3425, %v3500
    %v3570 = vadd.f32 %v3426, %v3500
    %v3571 = vadd.f32 %v3427, %v3505
    %v3572 = vadd.f32 %v3428, %v3505
    %v3573 = vadd.f32 %v3429, %v3505
    %v3574 = vadd.f32 %v3430, %v3505
    %v3575 = vadd.f32 %v3431, %v3510
    %v3576 = vadd.f32 %v3432, %v3510
    %v3577 = vadd.f32 %v3433, %v3510
    %v3578 = vadd.f32 %v3434, %v3510
    %v3579 = vadd.f32 %v3435, %v3515
    %v3580 = vadd.f32 %v3436, %v3515
    %v3581 = vadd.f32 %v3437, %v3515
    %v3582 = vadd.f32 %v3438, %v3515
    %v3583 = vadd.f32 %v3439, %v3520
    %v3584 = vadd.f32 %v3440, %v3520
    %v3585 = vadd.f32 %v3441, %v3520
    %v3586 = vadd.f32 %v3442, %v3520
    %v3587 = vadd.f32 %v3443, %v3525
    %v3588 = vadd.f32 %v3444, %v3525
    %v3589 = vadd.f32 %v3445, %v3525
    %v3590 = vadd.f32 %v3446, %v3525
    %v3591 = vtanh.pop %v3527
    %v3592 = vtanh.pop %v3528
    %v3593 = vtanh.pop %v3529
    %v3594 = vtanh.pop %v3530
    %v3595 = vtanh.pop %v3531
    %v3596 = vtanh.pop %v3532
    %v3597 = vtanh.pop %v3533
    %v3598 = vtanh.pop %v3534
    %v3599 = vtanh.pop %v3535
    %v3600 = vtanh.pop %v3536
    %v3601 = vtanh.pop %v3537
    %v3602 = vtanh.pop %v3538
    %v3603 = vtanh.pop %v3539
    %v3604 = vtanh.pop %v3540
    %v3605 = vtanh.pop %v3541
    %v3606 = vtanh.pop %v3542
    %v3607 = vtanh.pop %v3543
    %v3608 = vtanh.pop %v3544
    %v3609 = vtanh.pop %v3545
    %v3610 = vtanh.pop %v3546
    %v3611 = vtanh.pop %v3547
    %v3612 = vtanh.pop %v3548
    %v3613 = vtanh.pop %v3549
    %v3614 = vtanh.pop %v3550
    %v3615 = vtanh.pop %v3551
    %v3616 = vtanh.pop %v3552
    %v3617 = vtanh.pop %v3553
    %v3618 = vtanh.pop %v3554
    %v3619 = vtanh.pop %v3555
    %v3620 = vtanh.pop %v3556
    %v3621 = vtanh.pop %v3557
    %v3622 = vtanh.pop %v3558
    %v3623 = vtanh.pop %v3559
    %v3624 = vtanh.pop %v3560
    %v3625 = vtanh.pop %v3561
    %v3626 = vtanh.pop %v3562
    %v3627 = vtanh.pop %v3563
    %v3628 = vtanh.pop %v3564
    %v3629 = vtanh.pop %v3565
    %v3630 = vtanh.pop %v3566
    %v3631 = vtanh.pop %v3567
    %v3632 = vtanh.pop %v3568
    %v3633 = vtanh.pop %v3569
    %v3634 = vtanh.pop %v3570
    %v3635 = vtanh.pop %v3571
    %v3636 = vtanh.pop %v3572
    %v3637 = vtanh.pop %v3573
    %v3638 = vtanh.pop %v3574
    %v3639 = vtanh.pop %v3575
    %v3640 = vtanh.pop %v3576
    %v3641 = vtanh.pop %v3577
    %v3642 = vtanh.pop %v3578
    %v3643 = vtanh.pop %v3579
    %v3644 = vtanh.pop %v3580
    %v3645 = vtanh.pop %v3581
    %v3646 = vtanh.pop %v3582
    %v3647 = vtanh.pop %v3583
    %v3648 = vtanh.pop %v3584
    %v3649 = vtanh.pop %v3585
    %v3650 = vtanh.pop %v3586
    %v3651 = vtanh.pop %v3587
    %v3652 = vtanh.pop %v3588
    %v3653 = vtanh.pop %v3589
    %v3654 = vtanh.pop %v3590
    %3656 = vset.pattern.permute.xlu0 0
    %3657 = vperm.xlu0 %3656, %v3287
    %v3658 = vpop.permute.xlu0 %3657
    %3661 = vset.pattern.permute.xlu0 0
    %3662 = vperm.xlu0 %3661, %v3288
    %v3663 = vpop.permute.xlu0 %3662
    %3666 = vset.pattern.permute.xlu0 0
    %3667 = vperm.xlu0 %3666, %v3289
    %v3668 = vpop.permute.xlu0 %3667
    %3671 = vset.pattern.permute.xlu0 0
    %3672 = vperm.xlu0 %3671, %v3290
    %v3673 = vpop.permute.xlu0 %3672
    %3676 = vset.pattern.permute.xlu0 0
    %3677 = vperm.xlu0 %3676, %v3291
    %v3678 = vpop.permute.xlu0 %3677
    %3681 = vset.pattern.permute.xlu0 0
    %3682 = vperm.xlu0 %3681, %v3292
    %v3683 = vpop.permute.xlu0 %3682
    %3686 = vset.pattern.permute.xlu0 0
    %3687 = vperm.xlu0 %3686, %v3293
    %v3688 = vpop.permute.xlu0 %3687
    %3691 = vset.pattern.permute.xlu0 0
    %3692 = vperm.xlu0 %3691, %v3294
    %v3693 = vpop.permute.xlu0 %3692
    %3696 = vset.pattern.permute.xlu0 0
    %3697 = vperm.xlu0 %3696, %v3295
    %v3698 = vpop.permute.xlu0 %3697
    %3701 = vset.pattern.permute.xlu0 0
    %3702 = vperm.xlu0 %3701, %v3296
    %v3703 = vpop.permute.xlu0 %3702
    %3706 = vset.pattern.permute.xlu0 0
    %3707 = vperm.xlu0 %3706, %v3297
    %v3708 = vpop.permute.xlu0 %3707
    %3711 = vset.pattern.permute.xlu0 0
    %3712 = vperm.xlu0 %3711, %v3298
    %v3713 = vpop.permute.xlu0 %3712
    %3716 = vset.pattern.permute.xlu0 0
    %3717 = vperm.xlu0 %3716, %v3299
    %v3718 = vpop.permute.xlu0 %3717
    %3721 = vset.pattern.permute.xlu0 0
    %3722 = vperm.xlu0 %3721, %v3300
    %v3723 = vpop.permute.xlu0 %3722
    %3726 = vset.pattern.permute.xlu0 0
    %3727 = vperm.xlu0 %3726, %v3301
    %v3728 = vpop.permute.xlu0 %3727
    %3731 = vset.pattern.permute.xlu0 0
    %3732 = vperm.xlu0 %3731, %v3302
    %v3733 = vpop.permute.xlu0 %3732
    %v3735 = vmul.f32 %v3591, %v3658
    %v3736 = vmul.f32 %v3592, %v3658
    %v3737 = vmul.f32 %v3593, %v3658
    %v3738 = vmul.f32 %v3594, %v3658
    %v3739 = vmul.f32 %v3595, %v3663
    %v3740 = vmul.f32 %v3596, %v3663
    %v3741 = vmul.f32 %v3597, %v3663
    %v3742 = vmul.f32 %v3598, %v3663
    %v3743 = vmul.f32 %v3599, %v3668
    %v3744 = vmul.f32 %v3600, %v3668
    %v3745 = vmul.f32 %v3601, %v3668
    %v3746 = vmul.f32 %v3602, %v3668
    %v3747 = vmul.f32 %v3603, %v3673
    %v3748 = vmul.f32 %v3604, %v3673
    %v3749 = vmul.f32 %v3605, %v3673
    %v3750 = vmul.f32 %v3606, %v3673
    %v3751 = vmul.f32 %v3607, %v3678
    %v3752 = vmul.f32 %v3608, %v3678
    %v3753 = vmul.f32 %v3609, %v3678
    %v3754 = vmul.f32 %v3610, %v3678
    %v3755 = vmul.f32 %v3611, %v3683
    %v3756 = vmul.f32 %v3612, %v3683
    %v3757 = vmul.f32 %v3613, %v3683
    %v3758 = vmul.f32 %v3614, %v3683
    %v3759 = vmul.f32 %v3615, %v3688
    %v3760 = vmul.f32 %v3616, %v3688
    %v3761 = vmul.f32 %v3617, %v3688
    %v3762 = vmul.f32 %v3618, %v3688
    %v3763 = vmul.f32 %v3619, %v3693
    %v3764 = vmul.f32 %v3620, %v3693
    %v3765 = vmul.f32 %v3621, %v3693
    %v3766 = vmul.f32 %v3622, %v3693
    %v3767 = vmul.f32 %v3623, %v3698
    %v3768 = vmul.f32 %v3624, %v3698
    %v3769 = vmul.f32 %v3625, %v3698
    %v3770 = vmul.f32 %v3626, %v3698
    %v3771 = vmul.f32 %v3627, %v3703
    %v3772 = vmul.f32 %v3628, %v3703
    %v3773 = vmul.f32 %v3629, %v3703
    %v3774 = vmul.f32 %v3630, %v3703
    %v3775 = vmul.f32 %v3631, %v3708
    %v3776 = vmul.f32 %v3632, %v3708
    %v3777 = vmul.f32 %v3633, %v3708
    %v3778 = vmul.f32 %v3634, %v3708
    %v3779 = vmul.f32 %v3635, %v3713
    %v3780 = vmul.f32 %v3636, %v3713
    %v3781 = vmul.f32 %v3637, %v3713
    %v3782 = vmul.f32 %v3638, %v3713
    %v3783 = vmul.f32 %v3639, %v3718
    %v3784 = vmul.f32 %v3640, %v3718
    %v3785 = vmul.f32 %v3641, %v3718
    %v3786 = vmul.f32 %v3642, %v3718
    %v3787 = vmul.f32 %v3643, %v3723
    %v3788 = vmul.f32 %v3644, %v3723
    %v3789 = vmul.f32 %v3645, %v3723
    %v3790 = vmul.f32 %v3646, %v3723
    %v3791 = vmul.f32 %v3647, %v3728
    %v3792 = vmul.f32 %v3648, %v3728
    %v3793 = vmul.f32 %v3649, %v3728
    %v3794 = vmul.f32 %v3650, %v3728
    %v3795 = vmul.f32 %v3651, %v3733
    %v3796 = vmul.f32 %v3652, %v3733
    %v3797 = vmul.f32 %v3653, %v3733
    %v3798 = vmul.f32 %v3654, %v3733
    %v3799 = vadd.f32 %v3735, %v3739
    %v3800 = vadd.f32 %v3799, %v3743
    %v3801 = vadd.f32 %v3800, %v3747
    %v3802 = vadd.f32 %v3801, %v3751
    %v3803 = vadd.f32 %v3802, %v3755
    %v3804 = vadd.f32 %v3803, %v3759
    %v3805 = vadd.f32 %v3804, %v3763
    %v3806 = vadd.f32 %v3805, %v3767
    %v3807 = vadd.f32 %v3806, %v3771
    %v3808 = vadd.f32 %v3807, %v3775
    %v3809 = vadd.f32 %v3808, %v3779
    %v3810 = vadd.f32 %v3809, %v3783
    %v3811 = vadd.f32 %v3810, %v3787
    %v3812 = vadd.f32 %v3811, %v3791
    %v3813 = vadd.f32 %v3812, %v3795
    %v3814 = vrot.slane %v3813, 4
    %v3815 = vadd.f32 %v3813, %v3814
    %v3816 = vrot.slane %v3815, 2
    %v3817 = vadd.f32 %v3815, %v3816
    %v3818 = vrot.slane %v3817, 1
    %v3819 = vadd.f32 %v3817, %v3818
    %v3820 = vadd.f32 %v3736, %v3740
    %v3821 = vadd.f32 %v3820, %v3744
    %v3822 = vadd.f32 %v3821, %v3748
    %v3823 = vadd.f32 %v3822, %v3752
    %v3824 = vadd.f32 %v3823, %v3756
    %v3825 = vadd.f32 %v3824, %v3760
    %v3826 = vadd.f32 %v3825, %v3764
    %v3827 = vadd.f32 %v3826, %v3768
    %v3828 = vadd.f32 %v3827, %v3772
    %v3829 = vadd.f32 %v3828, %v3776
    %v3830 = vadd.f32 %v3829, %v3780
    %v3831 = vadd.f32 %v3830, %v3784
    %v3832 = vadd.f32 %v3831, %v3788
    %v3833 = vadd.f32 %v3832, %v3792
    %v3834 = vadd.f32 %v3833, %v3796
    %v3835 = vrot.slane %v3834, 4
    %v3836 = vadd.f32 %v3834, %v3835
    %v3837 = vrot.slane %v3836, 2
    %v3838 = vadd.f32 %v3836, %v3837
    %v3839 = vrot.slane %v3838, 1
    %v3840 = vadd.f32 %v3838, %v3839
    %v3841 = vadd.f32 %v3737, %v3741
    %v3842 = vadd.f32 %v3841, %v3745
    %v3843 = vadd.f32 %v3842, %v3749
    %v3844 = vadd.f32 %v3843, %v3753
    %v3845 = vadd.f32 %v3844, %v3757
    %v3846 = vadd.f32 %v3845, %v3761
    %v3847 = vadd.f32 %v3846, %v3765
    %v3848 = vadd.f32 %v3847, %v3769
    %v3849 = vadd.f32 %v3848, %v3773
    %v3850 = vadd.f32 %v3849, %v3777
    %v3851 = vadd.f32 %v3850, %v3781
    %v3852 = vadd.f32 %v3851, %v3785
    %v3853 = vadd.f32 %v3852, %v3789
    %v3854 = vadd.f32 %v3853, %v3793
    %v3855 = vadd.f32 %v3854, %v3797
    %v3856 = vrot.slane %v3855, 4
    %v3857 = vadd.f32 %v3855, %v3856
    %v3858 = vrot.slane %v3857, 2
    %v3859 = vadd.f32 %v3857, %v3858
    %v3860 = vrot.slane %v3859, 1
    %v3861 = vadd.f32 %v3859, %v3860
    %v3862 = vadd.f32 %v3738, %v3742
    %v3863 = vadd.f32 %v3862, %v3746
    %v3864 = vadd.f32 %v3863, %v3750
    %v3865 = vadd.f32 %v3864, %v3754
    %v3866 = vadd.f32 %v3865, %v3758
    %v3867 = vadd.f32 %v3866, %v3762
    %v3868 = vadd.f32 %v3867, %v3766
    %v3869 = vadd.f32 %v3868, %v3770
    %v3870 = vadd.f32 %v3869, %v3774
    %v3871 = vadd.f32 %v3870, %v3778
    %v3872 = vadd.f32 %v3871, %v3782
    %v3873 = vadd.f32 %v3872, %v3786
    %v3874 = vadd.f32 %v3873, %v3790
    %v3875 = vadd.f32 %v3874, %v3794
    %v3876 = vadd.f32 %v3875, %v3798
    %v3877 = vrot.slane %v3876, 4
    %v3878 = vadd.f32 %v3876, %v3877
    %v3879 = vrot.slane %v3878, 2
    %v3880 = vadd.f32 %v3878, %v3879
    %v3881 = vrot.slane %v3880, 1
    %v3882 = vadd.f32 %v3880, %v3881
    %v3883 = vadd.f32 %v3251, %v3819
    %v3884 = vadd.f32 %v3252, %v3840
    %v3885 = vadd.f32 %v3253, %v3861
    %v3886 = vadd.f32 %v3254, %v3882
    %v3887 = vld [vmem:[%s3 + $0x300] sm:$0xff]
    %v3888 = vld [vmem:[%s3 + $0x308] sm:$0xff]
    %v3889 = vld [vmem:[%s3 + $0x310] sm:$0xff]
    %v3890 = vld [vmem:[%s3 + $0x318] sm:$0xff]
    %v3891 = vld [vmem:[%s3 + $0x320] sm:$0xff]
    %v3892 = vld [vmem:[%s3 + $0x328] sm:$0xff]
    %v3893 = vld [vmem:[%s3 + $0x330] sm:$0xff]
    %v3894 = vld [vmem:[%s3 + $0x338] sm:$0xff]
    %v3895 = vld [vmem:[%s3 + $0x340] sm:$0xff]
    %v3896 = vld [vmem:[%s3 + $0x348] sm:$0xff]
    %v3897 = vld [vmem:[%s3 + $0x350] sm:$0xff]
    %v3898 = vld [vmem:[%s3 + $0x358] sm:$0xff]
    %v3899 = vld [vmem:[%s3 + $0x360] sm:$0xff]
    %v3900 = vld [vmem:[%s3 + $0x368] sm:$0xff]
    %v3901 = vld [vmem:[%s3 + $0x370] sm:$0xff]
    %v3902 = vld [vmem:[%s3 + $0x378] sm:$0xff]
    %v3903 = vld [vmem:[%s4 + $0x300] sm:$0xff]
    %v3904 = vld [vmem:[%s4 + $0x308] sm:$0xff]
    %v3905 = vld [vmem:[%s4 + $0x310] sm:$0xff]
    %v3906 = vld [vmem:[%s4 + $0x318] sm:$0xff]
    %v3907 = vld [vmem:[%s4 + $0x320] sm:$0xff]
    %v3908 = vld [vmem:[%s4 + $0x328] sm:$0xff]
    %v3909 = vld [vmem:[%s4 + $0x330] sm:$0xff]
    %v3910 = vld [vmem:[%s4 + $0x338] sm:$0xff]
    %v3911 = vld [vmem:[%s4 + $0x340] sm:$0xff]
    %v3912 = vld [vmem:[%s4 + $0x348] sm:$0xff]
    %v3913 = vld [vmem:[%s4 + $0x350] sm:$0xff]
    %v3914 = vld [vmem:[%s4 + $0x358] sm:$0xff]
    %v3915 = vld [vmem:[%s4 + $0x360] sm:$0xff]
    %v3916 = vld [vmem:[%s4 + $0x368] sm:$0xff]
    %v3917 = vld [vmem:[%s4 + $0x370] sm:$0xff]
    %v3918 = vld [vmem:[%s4 + $0x378] sm:$0xff]
    %v3919 = vld [vmem:[%s5 + $0x300] sm:$0xff]
    %v3920 = vld [vmem:[%s5 + $0x308] sm:$0xff]
    %v3921 = vld [vmem:[%s5 + $0x310] sm:$0xff]
    %v3922 = vld [vmem:[%s5 + $0x318] sm:$0xff]
    %v3923 = vld [vmem:[%s5 + $0x320] sm:$0xff]
    %v3924 = vld [vmem:[%s5 + $0x328] sm:$0xff]
    %v3925 = vld [vmem:[%s5 + $0x330] sm:$0xff]
    %v3926 = vld [vmem:[%s5 + $0x338] sm:$0xff]
    %v3927 = vld [vmem:[%s5 + $0x340] sm:$0xff]
    %v3928 = vld [vmem:[%s5 + $0x348] sm:$0xff]
    %v3929 = vld [vmem:[%s5 + $0x350] sm:$0xff]
    %v3930 = vld [vmem:[%s5 + $0x358] sm:$0xff]
    %v3931 = vld [vmem:[%s5 + $0x360] sm:$0xff]
    %v3932 = vld [vmem:[%s5 + $0x368] sm:$0xff]
    %v3933 = vld [vmem:[%s5 + $0x370] sm:$0xff]
    %v3934 = vld [vmem:[%s5 + $0x378] sm:$0xff]
    %3936 = vset.pattern.permute.xlu0 0
    %3937 = vperm.xlu0 %3936, %v3887
    %v3938 = vpop.permute.xlu0 %3937
    %3941 = vset.pattern.permute.xlu0 0
    %3942 = vperm.xlu0 %3941, %v3888
    %v3943 = vpop.permute.xlu0 %3942
    %3946 = vset.pattern.permute.xlu0 0
    %3947 = vperm.xlu0 %3946, %v3889
    %v3948 = vpop.permute.xlu0 %3947
    %3951 = vset.pattern.permute.xlu0 0
    %3952 = vperm.xlu0 %3951, %v3890
    %v3953 = vpop.permute.xlu0 %3952
    %3956 = vset.pattern.permute.xlu0 0
    %3957 = vperm.xlu0 %3956, %v3891
    %v3958 = vpop.permute.xlu0 %3957
    %3961 = vset.pattern.permute.xlu0 0
    %3962 = vperm.xlu0 %3961, %v3892
    %v3963 = vpop.permute.xlu0 %3962
    %3966 = vset.pattern.permute.xlu0 0
    %3967 = vperm.xlu0 %3966, %v3893
    %v3968 = vpop.permute.xlu0 %3967
    %3971 = vset.pattern.permute.xlu0 0
    %3972 = vperm.xlu0 %3971, %v3894
    %v3973 = vpop.permute.xlu0 %3972
    %3976 = vset.pattern.permute.xlu0 0
    %3977 = vperm.xlu0 %3976, %v3895
    %v3978 = vpop.permute.xlu0 %3977
    %3981 = vset.pattern.permute.xlu0 0
    %3982 = vperm.xlu0 %3981, %v3896
    %v3983 = vpop.permute.xlu0 %3982
    %3986 = vset.pattern.permute.xlu0 0
    %3987 = vperm.xlu0 %3986, %v3897
    %v3988 = vpop.permute.xlu0 %3987
    %3991 = vset.pattern.permute.xlu0 0
    %3992 = vperm.xlu0 %3991, %v3898
    %v3993 = vpop.permute.xlu0 %3992
    %3996 = vset.pattern.permute.xlu0 0
    %3997 = vperm.xlu0 %3996, %v3899
    %v3998 = vpop.permute.xlu0 %3997
    %4001 = vset.pattern.permute.xlu0 0
    %4002 = vperm.xlu0 %4001, %v3900
    %v4003 = vpop.permute.xlu0 %4002
    %4006 = vset.pattern.permute.xlu0 0
    %4007 = vperm.xlu0 %4006, %v3901
    %v4008 = vpop.permute.xlu0 %4007
    %4011 = vset.pattern.permute.xlu0 0
    %4012 = vperm.xlu0 %4011, %v3902
    %v4013 = vpop.permute.xlu0 %4012
    %v4015 = vmul.f32 %v3938, %v91
    %v4016 = vmul.f32 %v3938, %v92
    %v4017 = vmul.f32 %v3938, %v93
    %v4018 = vmul.f32 %v3938, %v94
    %v4019 = vmul.f32 %v3943, %v91
    %v4020 = vmul.f32 %v3943, %v92
    %v4021 = vmul.f32 %v3943, %v93
    %v4022 = vmul.f32 %v3943, %v94
    %v4023 = vmul.f32 %v3948, %v91
    %v4024 = vmul.f32 %v3948, %v92
    %v4025 = vmul.f32 %v3948, %v93
    %v4026 = vmul.f32 %v3948, %v94
    %v4027 = vmul.f32 %v3953, %v91
    %v4028 = vmul.f32 %v3953, %v92
    %v4029 = vmul.f32 %v3953, %v93
    %v4030 = vmul.f32 %v3953, %v94
    %v4031 = vmul.f32 %v3958, %v91
    %v4032 = vmul.f32 %v3958, %v92
    %v4033 = vmul.f32 %v3958, %v93
    %v4034 = vmul.f32 %v3958, %v94
    %v4035 = vmul.f32 %v3963, %v91
    %v4036 = vmul.f32 %v3963, %v92
    %v4037 = vmul.f32 %v3963, %v93
    %v4038 = vmul.f32 %v3963, %v94
    %v4039 = vmul.f32 %v3968, %v91
    %v4040 = vmul.f32 %v3968, %v92
    %v4041 = vmul.f32 %v3968, %v93
    %v4042 = vmul.f32 %v3968, %v94
    %v4043 = vmul.f32 %v3973, %v91
    %v4044 = vmul.f32 %v3973, %v92
    %v4045 = vmul.f32 %v3973, %v93
    %v4046 = vmul.f32 %v3973, %v94
    %v4047 = vmul.f32 %v3978, %v91
    %v4048 = vmul.f32 %v3978, %v92
    %v4049 = vmul.f32 %v3978, %v93
    %v4050 = vmul.f32 %v3978, %v94
    %v4051 = vmul.f32 %v3983, %v91
    %v4052 = vmul.f32 %v3983, %v92
    %v4053 = vmul.f32 %v3983, %v93
    %v4054 = vmul.f32 %v3983, %v94
    %v4055 = vmul.f32 %v3988, %v91
    %v4056 = vmul.f32 %v3988, %v92
    %v4057 = vmul.f32 %v3988, %v93
    %v4058 = vmul.f32 %v3988, %v94
    %v4059 = vmul.f32 %v3993, %v91
    %v4060 = vmul.f32 %v3993, %v92
    %v4061 = vmul.f32 %v3993, %v93
    %v4062 = vmul.f32 %v3993, %v94
    %v4063 = vmul.f32 %v3998, %v91
    %v4064 = vmul.f32 %v3998, %v92
    %v4065 = vmul.f32 %v3998, %v93
    %v4066 = vmul.f32 %v3998, %v94
    %v4067 = vmul.f32 %v4003, %v91
    %v4068 = vmul.f32 %v4003, %v92
    %v4069 = vmul.f32 %v4003, %v93
    %v4070 = vmul.f32 %v4003, %v94
    %v4071 = vmul.f32 %v4008, %v91
    %v4072 = vmul.f32 %v4008, %v92
    %v4073 = vmul.f32 %v4008, %v93
    %v4074 = vmul.f32 %v4008, %v94
    %v4075 = vmul.f32 %v4013, %v91
    %v4076 = vmul.f32 %v4013, %v92
    %v4077 = vmul.f32 %v4013, %v93
    %v4078 = vmul.f32 %v4013, %v94
    %4080 = vset.pattern.permute.xlu0 0
    %4081 = vperm.xlu0 %4080, %v3903
    %v4082 = vpop.permute.xlu0 %4081
    %4085 = vset.pattern.permute.xlu0 0
    %4086 = vperm.xlu0 %4085, %v3904
    %v4087 = vpop.permute.xlu0 %4086
    %4090 = vset.pattern.permute.xlu0 0
    %4091 = vperm.xlu0 %4090, %v3905
    %v4092 = vpop.permute.xlu0 %4091
    %4095 = vset.pattern.permute.xlu0 0
    %4096 = vperm.xlu0 %4095, %v3906
    %v4097 = vpop.permute.xlu0 %4096
    %4100 = vset.pattern.permute.xlu0 0
    %4101 = vperm.xlu0 %4100, %v3907
    %v4102 = vpop.permute.xlu0 %4101
    %4105 = vset.pattern.permute.xlu0 0
    %4106 = vperm.xlu0 %4105, %v3908
    %v4107 = vpop.permute.xlu0 %4106
    %4110 = vset.pattern.permute.xlu0 0
    %4111 = vperm.xlu0 %4110, %v3909
    %v4112 = vpop.permute.xlu0 %4111
    %4115 = vset.pattern.permute.xlu0 0
    %4116 = vperm.xlu0 %4115, %v3910
    %v4117 = vpop.permute.xlu0 %4116
    %4120 = vset.pattern.permute.xlu0 0
    %4121 = vperm.xlu0 %4120, %v3911
    %v4122 = vpop.permute.xlu0 %4121
    %4125 = vset.pattern.permute.xlu0 0
    %4126 = vperm.xlu0 %4125, %v3912
    %v4127 = vpop.permute.xlu0 %4126
    %4130 = vset.pattern.permute.xlu0 0
    %4131 = vperm.xlu0 %4130, %v3913
    %v4132 = vpop.permute.xlu0 %4131
    %4135 = vset.pattern.permute.xlu0 0
    %4136 = vperm.xlu0 %4135, %v3914
    %v4137 = vpop.permute.xlu0 %4136
    %4140 = vset.pattern.permute.xlu0 0
    %4141 = vperm.xlu0 %4140, %v3915
    %v4142 = vpop.permute.xlu0 %4141
    %4145 = vset.pattern.permute.xlu0 0
    %4146 = vperm.xlu0 %4145, %v3916
    %v4147 = vpop.permute.xlu0 %4146
    %4150 = vset.pattern.permute.xlu0 0
    %4151 = vperm.xlu0 %4150, %v3917
    %v4152 = vpop.permute.xlu0 %4151
    %4155 = vset.pattern.permute.xlu0 0
    %4156 = vperm.xlu0 %4155, %v3918
    %v4157 = vpop.permute.xlu0 %4156
    %v4159 = vadd.f32 %v4015, %v4082
    %v4160 = vadd.f32 %v4016, %v4082
    %v4161 = vadd.f32 %v4017, %v4082
    %v4162 = vadd.f32 %v4018, %v4082
    %v4163 = vadd.f32 %v4019, %v4087
    %v4164 = vadd.f32 %v4020, %v4087
    %v4165 = vadd.f32 %v4021, %v4087
    %v4166 = vadd.f32 %v4022, %v4087
    %v4167 = vadd.f32 %v4023, %v4092
    %v4168 = vadd.f32 %v4024, %v4092
    %v4169 = vadd.f32 %v4025, %v4092
    %v4170 = vadd.f32 %v4026, %v4092
    %v4171 = vadd.f32 %v4027, %v4097
    %v4172 = vadd.f32 %v4028, %v4097
    %v4173 = vadd.f32 %v4029, %v4097
    %v4174 = vadd.f32 %v4030, %v4097
    %v4175 = vadd.f32 %v4031, %v4102
    %v4176 = vadd.f32 %v4032, %v4102
    %v4177 = vadd.f32 %v4033, %v4102
    %v4178 = vadd.f32 %v4034, %v4102
    %v4179 = vadd.f32 %v4035, %v4107
    %v4180 = vadd.f32 %v4036, %v4107
    %v4181 = vadd.f32 %v4037, %v4107
    %v4182 = vadd.f32 %v4038, %v4107
    %v4183 = vadd.f32 %v4039, %v4112
    %v4184 = vadd.f32 %v4040, %v4112
    %v4185 = vadd.f32 %v4041, %v4112
    %v4186 = vadd.f32 %v4042, %v4112
    %v4187 = vadd.f32 %v4043, %v4117
    %v4188 = vadd.f32 %v4044, %v4117
    %v4189 = vadd.f32 %v4045, %v4117
    %v4190 = vadd.f32 %v4046, %v4117
    %v4191 = vadd.f32 %v4047, %v4122
    %v4192 = vadd.f32 %v4048, %v4122
    %v4193 = vadd.f32 %v4049, %v4122
    %v4194 = vadd.f32 %v4050, %v4122
    %v4195 = vadd.f32 %v4051, %v4127
    %v4196 = vadd.f32 %v4052, %v4127
    %v4197 = vadd.f32 %v4053, %v4127
    %v4198 = vadd.f32 %v4054, %v4127
    %v4199 = vadd.f32 %v4055, %v4132
    %v4200 = vadd.f32 %v4056, %v4132
    %v4201 = vadd.f32 %v4057, %v4132
    %v4202 = vadd.f32 %v4058, %v4132
    %v4203 = vadd.f32 %v4059, %v4137
    %v4204 = vadd.f32 %v4060, %v4137
    %v4205 = vadd.f32 %v4061, %v4137
    %v4206 = vadd.f32 %v4062, %v4137
    %v4207 = vadd.f32 %v4063, %v4142
    %v4208 = vadd.f32 %v4064, %v4142
    %v4209 = vadd.f32 %v4065, %v4142
    %v4210 = vadd.f32 %v4066, %v4142
    %v4211 = vadd.f32 %v4067, %v4147
    %v4212 = vadd.f32 %v4068, %v4147
    %v4213 = vadd.f32 %v4069, %v4147
    %v4214 = vadd.f32 %v4070, %v4147
    %v4215 = vadd.f32 %v4071, %v4152
    %v4216 = vadd.f32 %v4072, %v4152
    %v4217 = vadd.f32 %v4073, %v4152
    %v4218 = vadd.f32 %v4074, %v4152
    %v4219 = vadd.f32 %v4075, %v4157
    %v4220 = vadd.f32 %v4076, %v4157
    %v4221 = vadd.f32 %v4077, %v4157
    %v4222 = vadd.f32 %v4078, %v4157
    %v4223 = vtanh.pop %v4159
    %v4224 = vtanh.pop %v4160
    %v4225 = vtanh.pop %v4161
    %v4226 = vtanh.pop %v4162
    %v4227 = vtanh.pop %v4163
    %v4228 = vtanh.pop %v4164
    %v4229 = vtanh.pop %v4165
    %v4230 = vtanh.pop %v4166
    %v4231 = vtanh.pop %v4167
    %v4232 = vtanh.pop %v4168
    %v4233 = vtanh.pop %v4169
    %v4234 = vtanh.pop %v4170
    %v4235 = vtanh.pop %v4171
    %v4236 = vtanh.pop %v4172
    %v4237 = vtanh.pop %v4173
    %v4238 = vtanh.pop %v4174
    %v4239 = vtanh.pop %v4175
    %v4240 = vtanh.pop %v4176
    %v4241 = vtanh.pop %v4177
    %v4242 = vtanh.pop %v4178
    %v4243 = vtanh.pop %v4179
    %v4244 = vtanh.pop %v4180
    %v4245 = vtanh.pop %v4181
    %v4246 = vtanh.pop %v4182
    %v4247 = vtanh.pop %v4183
    %v4248 = vtanh.pop %v4184
    %v4249 = vtanh.pop %v4185
    %v4250 = vtanh.pop %v4186
    %v4251 = vtanh.pop %v4187
    %v4252 = vtanh.pop %v4188
    %v4253 = vtanh.pop %v4189
    %v4254 = vtanh.pop %v4190
    %v4255 = vtanh.pop %v4191
    %v4256 = vtanh.pop %v4192
    %v4257 = vtanh.pop %v4193
    %v4258 = vtanh.pop %v4194
    %v4259 = vtanh.pop %v4195
    %v4260 = vtanh.pop %v4196
    %v4261 = vtanh.pop %v4197
    %v4262 = vtanh.pop %v4198
    %v4263 = vtanh.pop %v4199
    %v4264 = vtanh.pop %v4200
    %v4265 = vtanh.pop %v4201
    %v4266 = vtanh.pop %v4202
    %v4267 = vtanh.pop %v4203
    %v4268 = vtanh.pop %v4204
    %v4269 = vtanh.pop %v4205
    %v4270 = vtanh.pop %v4206
    %v4271 = vtanh.pop %v4207
    %v4272 = vtanh.pop %v4208
    %v4273 = vtanh.pop %v4209
    %v4274 = vtanh.pop %v4210
    %v4275 = vtanh.pop %v4211
    %v4276 = vtanh.pop %v4212
    %v4277 = vtanh.pop %v4213
    %v4278 = vtanh.pop %v4214
    %v4279 = vtanh.pop %v4215
    %v4280 = vtanh.pop %v4216
    %v4281 = vtanh.pop %v4217
    %v4282 = vtanh.pop %v4218
    %v4283 = vtanh.pop %v4219
    %v4284 = vtanh.pop %v4220
    %v4285 = vtanh.pop %v4221
    %v4286 = vtanh.pop %v4222
    %4288 = vset.pattern.permute.xlu0 0
    %4289 = vperm.xlu0 %4288, %v3919
    %v4290 = vpop.permute.xlu0 %4289
    %4293 = vset.pattern.permute.xlu0 0
    %4294 = vperm.xlu0 %4293, %v3920
    %v4295 = vpop.permute.xlu0 %4294
    %4298 = vset.pattern.permute.xlu0 0
    %4299 = vperm.xlu0 %4298, %v3921
    %v4300 = vpop.permute.xlu0 %4299
    %4303 = vset.pattern.permute.xlu0 0
    %4304 = vperm.xlu0 %4303, %v3922
    %v4305 = vpop.permute.xlu0 %4304
    %4308 = vset.pattern.permute.xlu0 0
    %4309 = vperm.xlu0 %4308, %v3923
    %v4310 = vpop.permute.xlu0 %4309
    %4313 = vset.pattern.permute.xlu0 0
    %4314 = vperm.xlu0 %4313, %v3924
    %v4315 = vpop.permute.xlu0 %4314
    %4318 = vset.pattern.permute.xlu0 0
    %4319 = vperm.xlu0 %4318, %v3925
    %v4320 = vpop.permute.xlu0 %4319
    %4323 = vset.pattern.permute.xlu0 0
    %4324 = vperm.xlu0 %4323, %v3926
    %v4325 = vpop.permute.xlu0 %4324
    %4328 = vset.pattern.permute.xlu0 0
    %4329 = vperm.xlu0 %4328, %v3927
    %v4330 = vpop.permute.xlu0 %4329
    %4333 = vset.pattern.permute.xlu0 0
    %4334 = vperm.xlu0 %4333, %v3928
    %v4335 = vpop.permute.xlu0 %4334
    %4338 = vset.pattern.permute.xlu0 0
    %4339 = vperm.xlu0 %4338, %v3929
    %v4340 = vpop.permute.xlu0 %4339
    %4343 = vset.pattern.permute.xlu0 0
    %4344 = vperm.xlu0 %4343, %v3930
    %v4345 = vpop.permute.xlu0 %4344
    %4348 = vset.pattern.permute.xlu0 0
    %4349 = vperm.xlu0 %4348, %v3931
    %v4350 = vpop.permute.xlu0 %4349
    %4353 = vset.pattern.permute.xlu0 0
    %4354 = vperm.xlu0 %4353, %v3932
    %v4355 = vpop.permute.xlu0 %4354
    %4358 = vset.pattern.permute.xlu0 0
    %4359 = vperm.xlu0 %4358, %v3933
    %v4360 = vpop.permute.xlu0 %4359
    %4363 = vset.pattern.permute.xlu0 0
    %4364 = vperm.xlu0 %4363, %v3934
    %v4365 = vpop.permute.xlu0 %4364
    %v4367 = vmul.f32 %v4223, %v4290
    %v4368 = vmul.f32 %v4224, %v4290
    %v4369 = vmul.f32 %v4225, %v4290
    %v4370 = vmul.f32 %v4226, %v4290
    %v4371 = vmul.f32 %v4227, %v4295
    %v4372 = vmul.f32 %v4228, %v4295
    %v4373 = vmul.f32 %v4229, %v4295
    %v4374 = vmul.f32 %v4230, %v4295
    %v4375 = vmul.f32 %v4231, %v4300
    %v4376 = vmul.f32 %v4232, %v4300
    %v4377 = vmul.f32 %v4233, %v4300
    %v4378 = vmul.f32 %v4234, %v4300
    %v4379 = vmul.f32 %v4235, %v4305
    %v4380 = vmul.f32 %v4236, %v4305
    %v4381 = vmul.f32 %v4237, %v4305
    %v4382 = vmul.f32 %v4238, %v4305
    %v4383 = vmul.f32 %v4239, %v4310
    %v4384 = vmul.f32 %v4240, %v4310
    %v4385 = vmul.f32 %v4241, %v4310
    %v4386 = vmul.f32 %v4242, %v4310
    %v4387 = vmul.f32 %v4243, %v4315
    %v4388 = vmul.f32 %v4244, %v4315
    %v4389 = vmul.f32 %v4245, %v4315
    %v4390 = vmul.f32 %v4246, %v4315
    %v4391 = vmul.f32 %v4247, %v4320
    %v4392 = vmul.f32 %v4248, %v4320
    %v4393 = vmul.f32 %v4249, %v4320
    %v4394 = vmul.f32 %v4250, %v4320
    %v4395 = vmul.f32 %v4251, %v4325
    %v4396 = vmul.f32 %v4252, %v4325
    %v4397 = vmul.f32 %v4253, %v4325
    %v4398 = vmul.f32 %v4254, %v4325
    %v4399 = vmul.f32 %v4255, %v4330
    %v4400 = vmul.f32 %v4256, %v4330
    %v4401 = vmul.f32 %v4257, %v4330
    %v4402 = vmul.f32 %v4258, %v4330
    %v4403 = vmul.f32 %v4259, %v4335
    %v4404 = vmul.f32 %v4260, %v4335
    %v4405 = vmul.f32 %v4261, %v4335
    %v4406 = vmul.f32 %v4262, %v4335
    %v4407 = vmul.f32 %v4263, %v4340
    %v4408 = vmul.f32 %v4264, %v4340
    %v4409 = vmul.f32 %v4265, %v4340
    %v4410 = vmul.f32 %v4266, %v4340
    %v4411 = vmul.f32 %v4267, %v4345
    %v4412 = vmul.f32 %v4268, %v4345
    %v4413 = vmul.f32 %v4269, %v4345
    %v4414 = vmul.f32 %v4270, %v4345
    %v4415 = vmul.f32 %v4271, %v4350
    %v4416 = vmul.f32 %v4272, %v4350
    %v4417 = vmul.f32 %v4273, %v4350
    %v4418 = vmul.f32 %v4274, %v4350
    %v4419 = vmul.f32 %v4275, %v4355
    %v4420 = vmul.f32 %v4276, %v4355
    %v4421 = vmul.f32 %v4277, %v4355
    %v4422 = vmul.f32 %v4278, %v4355
    %v4423 = vmul.f32 %v4279, %v4360
    %v4424 = vmul.f32 %v4280, %v4360
    %v4425 = vmul.f32 %v4281, %v4360
    %v4426 = vmul.f32 %v4282, %v4360
    %v4427 = vmul.f32 %v4283, %v4365
    %v4428 = vmul.f32 %v4284, %v4365
    %v4429 = vmul.f32 %v4285, %v4365
    %v4430 = vmul.f32 %v4286, %v4365
    %v4431 = vadd.f32 %v4367, %v4371
    %v4432 = vadd.f32 %v4431, %v4375
    %v4433 = vadd.f32 %v4432, %v4379
    %v4434 = vadd.f32 %v4433, %v4383
    %v4435 = vadd.f32 %v4434, %v4387
    %v4436 = vadd.f32 %v4435, %v4391
    %v4437 = vadd.f32 %v4436, %v4395
    %v4438 = vadd.f32 %v4437, %v4399
    %v4439 = vadd.f32 %v4438, %v4403
    %v4440 = vadd.f32 %v4439, %v4407
    %v4441 = vadd.f32 %v4440, %v4411
    %v4442 = vadd.f32 %v4441, %v4415
    %v4443 = vadd.f32 %v4442, %v4419
    %v4444 = vadd.f32 %v4443, %v4423
    %v4445 = vadd.f32 %v4444, %v4427
    %v4446 = vrot.slane %v4445, 4
    %v4447 = vadd.f32 %v4445, %v4446
    %v4448 = vrot.slane %v4447, 2
    %v4449 = vadd.f32 %v4447, %v4448
    %v4450 = vrot.slane %v4449, 1
    %v4451 = vadd.f32 %v4449, %v4450
    %v4452 = vadd.f32 %v4368, %v4372
    %v4453 = vadd.f32 %v4452, %v4376
    %v4454 = vadd.f32 %v4453, %v4380
    %v4455 = vadd.f32 %v4454, %v4384
    %v4456 = vadd.f32 %v4455, %v4388
    %v4457 = vadd.f32 %v4456, %v4392
    %v4458 = vadd.f32 %v4457, %v4396
    %v4459 = vadd.f32 %v4458, %v4400
    %v4460 = vadd.f32 %v4459, %v4404
    %v4461 = vadd.f32 %v4460, %v4408
    %v4462 = vadd.f32 %v4461, %v4412
    %v4463 = vadd.f32 %v4462, %v4416
    %v4464 = vadd.f32 %v4463, %v4420
    %v4465 = vadd.f32 %v4464, %v4424
    %v4466 = vadd.f32 %v4465, %v4428
    %v4467 = vrot.slane %v4466, 4
    %v4468 = vadd.f32 %v4466, %v4467
    %v4469 = vrot.slane %v4468, 2
    %v4470 = vadd.f32 %v4468, %v4469
    %v4471 = vrot.slane %v4470, 1
    %v4472 = vadd.f32 %v4470, %v4471
    %v4473 = vadd.f32 %v4369, %v4373
    %v4474 = vadd.f32 %v4473, %v4377
    %v4475 = vadd.f32 %v4474, %v4381
    %v4476 = vadd.f32 %v4475, %v4385
    %v4477 = vadd.f32 %v4476, %v4389
    %v4478 = vadd.f32 %v4477, %v4393
    %v4479 = vadd.f32 %v4478, %v4397
    %v4480 = vadd.f32 %v4479, %v4401
    %v4481 = vadd.f32 %v4480, %v4405
    %v4482 = vadd.f32 %v4481, %v4409
    %v4483 = vadd.f32 %v4482, %v4413
    %v4484 = vadd.f32 %v4483, %v4417
    %v4485 = vadd.f32 %v4484, %v4421
    %v4486 = vadd.f32 %v4485, %v4425
    %v4487 = vadd.f32 %v4486, %v4429
    %v4488 = vrot.slane %v4487, 4
    %v4489 = vadd.f32 %v4487, %v4488
    %v4490 = vrot.slane %v4489, 2
    %v4491 = vadd.f32 %v4489, %v4490
    %v4492 = vrot.slane %v4491, 1
    %v4493 = vadd.f32 %v4491, %v4492
    %v4494 = vadd.f32 %v4370, %v4374
    %v4495 = vadd.f32 %v4494, %v4378
    %v4496 = vadd.f32 %v4495, %v4382
    %v4497 = vadd.f32 %v4496, %v4386
    %v4498 = vadd.f32 %v4497, %v4390
    %v4499 = vadd.f32 %v4498, %v4394
    %v4500 = vadd.f32 %v4499, %v4398
    %v4501 = vadd.f32 %v4500, %v4402
    %v4502 = vadd.f32 %v4501, %v4406
    %v4503 = vadd.f32 %v4502, %v4410
    %v4504 = vadd.f32 %v4503, %v4414
    %v4505 = vadd.f32 %v4504, %v4418
    %v4506 = vadd.f32 %v4505, %v4422
    %v4507 = vadd.f32 %v4506, %v4426
    %v4508 = vadd.f32 %v4507, %v4430
    %v4509 = vrot.slane %v4508, 4
    %v4510 = vadd.f32 %v4508, %v4509
    %v4511 = vrot.slane %v4510, 2
    %v4512 = vadd.f32 %v4510, %v4511
    %v4513 = vrot.slane %v4512, 1
    %v4514 = vadd.f32 %v4512, %v4513
    %v4515 = vadd.f32 %v3883, %v4451
    %v4516 = vadd.f32 %v3884, %v4472
    %v4517 = vadd.f32 %v3885, %v4493
    %v4518 = vadd.f32 %v3886, %v4514
    %v4519 = vld [vmem:[%s3 + $0x380] sm:$0xff]
    %v4520 = vld [vmem:[%s3 + $0x388] sm:$0xff]
    %v4521 = vld [vmem:[%s3 + $0x390] sm:$0xff]
    %v4522 = vld [vmem:[%s3 + $0x398] sm:$0xff]
    %v4523 = vld [vmem:[%s3 + $0x3a0] sm:$0xff]
    %v4524 = vld [vmem:[%s3 + $0x3a8] sm:$0xff]
    %v4525 = vld [vmem:[%s3 + $0x3b0] sm:$0xff]
    %v4526 = vld [vmem:[%s3 + $0x3b8] sm:$0xff]
    %v4527 = vld [vmem:[%s3 + $0x3c0] sm:$0xff]
    %v4528 = vld [vmem:[%s3 + $0x3c8] sm:$0xff]
    %v4529 = vld [vmem:[%s3 + $0x3d0] sm:$0xff]
    %v4530 = vld [vmem:[%s3 + $0x3d8] sm:$0xff]
    %v4531 = vld [vmem:[%s3 + $0x3e0] sm:$0xff]
    %v4532 = vld [vmem:[%s3 + $0x3e8] sm:$0xff]
    %v4533 = vld [vmem:[%s3 + $0x3f0] sm:$0xff]
    %v4534 = vld [vmem:[%s3 + $0x3f8] sm:$0xff]
    %v4535 = vld [vmem:[%s4 + $0x380] sm:$0xff]
    %v4536 = vld [vmem:[%s4 + $0x388] sm:$0xff]
    %v4537 = vld [vmem:[%s4 + $0x390] sm:$0xff]
    %v4538 = vld [vmem:[%s4 + $0x398] sm:$0xff]
    %v4539 = vld [vmem:[%s4 + $0x3a0] sm:$0xff]
    %v4540 = vld [vmem:[%s4 + $0x3a8] sm:$0xff]
    %v4541 = vld [vmem:[%s4 + $0x3b0] sm:$0xff]
    %v4542 = vld [vmem:[%s4 + $0x3b8] sm:$0xff]
    %v4543 = vld [vmem:[%s4 + $0x3c0] sm:$0xff]
    %v4544 = vld [vmem:[%s4 + $0x3c8] sm:$0xff]
    %v4545 = vld [vmem:[%s4 + $0x3d0] sm:$0xff]
    %v4546 = vld [vmem:[%s4 + $0x3d8] sm:$0xff]
    %v4547 = vld [vmem:[%s4 + $0x3e0] sm:$0xff]
    %v4548 = vld [vmem:[%s4 + $0x3e8] sm:$0xff]
    %v4549 = vld [vmem:[%s4 + $0x3f0] sm:$0xff]
    %v4550 = vld [vmem:[%s4 + $0x3f8] sm:$0xff]
    %v4551 = vld [vmem:[%s5 + $0x380] sm:$0xff]
    %v4552 = vld [vmem:[%s5 + $0x388] sm:$0xff]
    %v4553 = vld [vmem:[%s5 + $0x390] sm:$0xff]
    %v4554 = vld [vmem:[%s5 + $0x398] sm:$0xff]
    %v4555 = vld [vmem:[%s5 + $0x3a0] sm:$0xff]
    %v4556 = vld [vmem:[%s5 + $0x3a8] sm:$0xff]
    %v4557 = vld [vmem:[%s5 + $0x3b0] sm:$0xff]
    %v4558 = vld [vmem:[%s5 + $0x3b8] sm:$0xff]
    %v4559 = vld [vmem:[%s5 + $0x3c0] sm:$0xff]
    %v4560 = vld [vmem:[%s5 + $0x3c8] sm:$0xff]
    %v4561 = vld [vmem:[%s5 + $0x3d0] sm:$0xff]
    %v4562 = vld [vmem:[%s5 + $0x3d8] sm:$0xff]
    %v4563 = vld [vmem:[%s5 + $0x3e0] sm:$0xff]
    %v4564 = vld [vmem:[%s5 + $0x3e8] sm:$0xff]
    %v4565 = vld [vmem:[%s5 + $0x3f0] sm:$0xff]
    %v4566 = vld [vmem:[%s5 + $0x3f8] sm:$0xff]
    %4568 = vset.pattern.permute.xlu0 0
    %4569 = vperm.xlu0 %4568, %v4519
    %v4570 = vpop.permute.xlu0 %4569
    %4573 = vset.pattern.permute.xlu0 0
    %4574 = vperm.xlu0 %4573, %v4520
    %v4575 = vpop.permute.xlu0 %4574
    %4578 = vset.pattern.permute.xlu0 0
    %4579 = vperm.xlu0 %4578, %v4521
    %v4580 = vpop.permute.xlu0 %4579
    %4583 = vset.pattern.permute.xlu0 0
    %4584 = vperm.xlu0 %4583, %v4522
    %v4585 = vpop.permute.xlu0 %4584
    %4588 = vset.pattern.permute.xlu0 0
    %4589 = vperm.xlu0 %4588, %v4523
    %v4590 = vpop.permute.xlu0 %4589
    %4593 = vset.pattern.permute.xlu0 0
    %4594 = vperm.xlu0 %4593, %v4524
    %v4595 = vpop.permute.xlu0 %4594
    %4598 = vset.pattern.permute.xlu0 0
    %4599 = vperm.xlu0 %4598, %v4525
    %v4600 = vpop.permute.xlu0 %4599
    %4603 = vset.pattern.permute.xlu0 0
    %4604 = vperm.xlu0 %4603, %v4526
    %v4605 = vpop.permute.xlu0 %4604
    %4608 = vset.pattern.permute.xlu0 0
    %4609 = vperm.xlu0 %4608, %v4527
    %v4610 = vpop.permute.xlu0 %4609
    %4613 = vset.pattern.permute.xlu0 0
    %4614 = vperm.xlu0 %4613, %v4528
    %v4615 = vpop.permute.xlu0 %4614
    %4618 = vset.pattern.permute.xlu0 0
    %4619 = vperm.xlu0 %4618, %v4529
    %v4620 = vpop.permute.xlu0 %4619
    %4623 = vset.pattern.permute.xlu0 0
    %4624 = vperm.xlu0 %4623, %v4530
    %v4625 = vpop.permute.xlu0 %4624
    %4628 = vset.pattern.permute.xlu0 0
    %4629 = vperm.xlu0 %4628, %v4531
    %v4630 = vpop.permute.xlu0 %4629
    %4633 = vset.pattern.permute.xlu0 0
    %4634 = vperm.xlu0 %4633, %v4532
    %v4635 = vpop.permute.xlu0 %4634
    %4638 = vset.pattern.permute.xlu0 0
    %4639 = vperm.xlu0 %4638, %v4533
    %v4640 = vpop.permute.xlu0 %4639
    %4643 = vset.pattern.permute.xlu0 0
    %4644 = vperm.xlu0 %4643, %v4534
    %v4645 = vpop.permute.xlu0 %4644
    %v4647 = vmul.f32 %v4570, %v91
    %v4648 = vmul.f32 %v4570, %v92
    %v4649 = vmul.f32 %v4570, %v93
    %v4650 = vmul.f32 %v4570, %v94
    %v4651 = vmul.f32 %v4575, %v91
    %v4652 = vmul.f32 %v4575, %v92
    %v4653 = vmul.f32 %v4575, %v93
    %v4654 = vmul.f32 %v4575, %v94
    %v4655 = vmul.f32 %v4580, %v91
    %v4656 = vmul.f32 %v4580, %v92
    %v4657 = vmul.f32 %v4580, %v93
    %v4658 = vmul.f32 %v4580, %v94
    %v4659 = vmul.f32 %v4585, %v91
    %v4660 = vmul.f32 %v4585, %v92
    %v4661 = vmul.f32 %v4585, %v93
    %v4662 = vmul.f32 %v4585, %v94
    %v4663 = vmul.f32 %v4590, %v91
    %v4664 = vmul.f32 %v4590, %v92
    %v4665 = vmul.f32 %v4590, %v93
    %v4666 = vmul.f32 %v4590, %v94
    %v4667 = vmul.f32 %v4595, %v91
    %v4668 = vmul.f32 %v4595, %v92
    %v4669 = vmul.f32 %v4595, %v93
    %v4670 = vmul.f32 %v4595, %v94
    %v4671 = vmul.f32 %v4600, %v91
    %v4672 = vmul.f32 %v4600, %v92
    %v4673 = vmul.f32 %v4600, %v93
    %v4674 = vmul.f32 %v4600, %v94
    %v4675 = vmul.f32 %v4605, %v91
    %v4676 = vmul.f32 %v4605, %v92
    %v4677 = vmul.f32 %v4605, %v93
    %v4678 = vmul.f32 %v4605, %v94
    %v4679 = vmul.f32 %v4610, %v91
    %v4680 = vmul.f32 %v4610, %v92
    %v4681 = vmul.f32 %v4610, %v93
    %v4682 = vmul.f32 %v4610, %v94
    %v4683 = vmul.f32 %v4615, %v91
    %v4684 = vmul.f32 %v4615, %v92
    %v4685 = vmul.f32 %v4615, %v93
    %v4686 = vmul.f32 %v4615, %v94
    %v4687 = vmul.f32 %v4620, %v91
    %v4688 = vmul.f32 %v4620, %v92
    %v4689 = vmul.f32 %v4620, %v93
    %v4690 = vmul.f32 %v4620, %v94
    %v4691 = vmul.f32 %v4625, %v91
    %v4692 = vmul.f32 %v4625, %v92
    %v4693 = vmul.f32 %v4625, %v93
    %v4694 = vmul.f32 %v4625, %v94
    %v4695 = vmul.f32 %v4630, %v91
    %v4696 = vmul.f32 %v4630, %v92
    %v4697 = vmul.f32 %v4630, %v93
    %v4698 = vmul.f32 %v4630, %v94
    %v4699 = vmul.f32 %v4635, %v91
    %v4700 = vmul.f32 %v4635, %v92
    %v4701 = vmul.f32 %v4635, %v93
    %v4702 = vmul.f32 %v4635, %v94
    %v4703 = vmul.f32 %v4640, %v91
    %v4704 = vmul.f32 %v4640, %v92
    %v4705 = vmul.f32 %v4640, %v93
    %v4706 = vmul.f32 %v4640, %v94
    %v4707 = vmul.f32 %v4645, %v91
    %v4708 = vmul.f32 %v4645, %v92
    %v4709 = vmul.f32 %v4645, %v93
    %v4710 = vmul.f32 %v4645, %v94
    %4712 = vset.pattern.permute.xlu0 0
    %4713 = vperm.xlu0 %4712, %v4535
    %v4714 = vpop.permute.xlu0 %4713
    %4717 = vset.pattern.permute.xlu0 0
    %4718 = vperm.xlu0 %4717, %v4536
    %v4719 = vpop.permute.xlu0 %4718
    %4722 = vset.pattern.permute.xlu0 0
    %4723 = vperm.xlu0 %4722, %v4537
    %v4724 = vpop.permute.xlu0 %4723
    %4727 = vset.pattern.permute.xlu0 0
    %4728 = vperm.xlu0 %4727, %v4538
    %v4729 = vpop.permute.xlu0 %4728
    %4732 = vset.pattern.permute.xlu0 0
    %4733 = vperm.xlu0 %4732, %v4539
    %v4734 = vpop.permute.xlu0 %4733
    %4737 = vset.pattern.permute.xlu0 0
    %4738 = vperm.xlu0 %4737, %v4540
    %v4739 = vpop.permute.xlu0 %4738
    %4742 = vset.pattern.permute.xlu0 0
    %4743 = vperm.xlu0 %4742, %v4541
    %v4744 = vpop.permute.xlu0 %4743
    %4747 = vset.pattern.permute.xlu0 0
    %4748 = vperm.xlu0 %4747, %v4542
    %v4749 = vpop.permute.xlu0 %4748
    %4752 = vset.pattern.permute.xlu0 0
    %4753 = vperm.xlu0 %4752, %v4543
    %v4754 = vpop.permute.xlu0 %4753
    %4757 = vset.pattern.permute.xlu0 0
    %4758 = vperm.xlu0 %4757, %v4544
    %v4759 = vpop.permute.xlu0 %4758
    %4762 = vset.pattern.permute.xlu0 0
    %4763 = vperm.xlu0 %4762, %v4545
    %v4764 = vpop.permute.xlu0 %4763
    %4767 = vset.pattern.permute.xlu0 0
    %4768 = vperm.xlu0 %4767, %v4546
    %v4769 = vpop.permute.xlu0 %4768
    %4772 = vset.pattern.permute.xlu0 0
    %4773 = vperm.xlu0 %4772, %v4547
    %v4774 = vpop.permute.xlu0 %4773
    %4777 = vset.pattern.permute.xlu0 0
    %4778 = vperm.xlu0 %4777, %v4548
    %v4779 = vpop.permute.xlu0 %4778
    %4782 = vset.pattern.permute.xlu0 0
    %4783 = vperm.xlu0 %4782, %v4549
    %v4784 = vpop.permute.xlu0 %4783
    %4787 = vset.pattern.permute.xlu0 0
    %4788 = vperm.xlu0 %4787, %v4550
    %v4789 = vpop.permute.xlu0 %4788
    %v4791 = vadd.f32 %v4647, %v4714
    %v4792 = vadd.f32 %v4648, %v4714
    %v4793 = vadd.f32 %v4649, %v4714
    %v4794 = vadd.f32 %v4650, %v4714
    %v4795 = vadd.f32 %v4651, %v4719
    %v4796 = vadd.f32 %v4652, %v4719
    %v4797 = vadd.f32 %v4653, %v4719
    %v4798 = vadd.f32 %v4654, %v4719
    %v4799 = vadd.f32 %v4655, %v4724
    %v4800 = vadd.f32 %v4656, %v4724
    %v4801 = vadd.f32 %v4657, %v4724
    %v4802 = vadd.f32 %v4658, %v4724
    %v4803 = vadd.f32 %v4659, %v4729
    %v4804 = vadd.f32 %v4660, %v4729
    %v4805 = vadd.f32 %v4661, %v4729
    %v4806 = vadd.f32 %v4662, %v4729
    %v4807 = vadd.f32 %v4663, %v4734
    %v4808 = vadd.f32 %v4664, %v4734
    %v4809 = vadd.f32 %v4665, %v4734
    %v4810 = vadd.f32 %v4666, %v4734
    %v4811 = vadd.f32 %v4667, %v4739
    %v4812 = vadd.f32 %v4668, %v4739
    %v4813 = vadd.f32 %v4669, %v4739
    %v4814 = vadd.f32 %v4670, %v4739
    %v4815 = vadd.f32 %v4671, %v4744
    %v4816 = vadd.f32 %v4672, %v4744
    %v4817 = vadd.f32 %v4673, %v4744
    %v4818 = vadd.f32 %v4674, %v4744
    %v4819 = vadd.f32 %v4675, %v4749
    %v4820 = vadd.f32 %v4676, %v4749
    %v4821 = vadd.f32 %v4677, %v4749
    %v4822 = vadd.f32 %v4678, %v4749
    %v4823 = vadd.f32 %v4679, %v4754
    %v4824 = vadd.f32 %v4680, %v4754
    %v4825 = vadd.f32 %v4681, %v4754
    %v4826 = vadd.f32 %v4682, %v4754
    %v4827 = vadd.f32 %v4683, %v4759
    %v4828 = vadd.f32 %v4684, %v4759
    %v4829 = vadd.f32 %v4685, %v4759
    %v4830 = vadd.f32 %v4686, %v4759
    %v4831 = vadd.f32 %v4687, %v4764
    %v4832 = vadd.f32 %v4688, %v4764
    %v4833 = vadd.f32 %v4689, %v4764
    %v4834 = vadd.f32 %v4690, %v4764
    %v4835 = vadd.f32 %v4691, %v4769
    %v4836 = vadd.f32 %v4692, %v4769
    %v4837 = vadd.f32 %v4693, %v4769
    %v4838 = vadd.f32 %v4694, %v4769
    %v4839 = vadd.f32 %v4695, %v4774
    %v4840 = vadd.f32 %v4696, %v4774
    %v4841 = vadd.f32 %v4697, %v4774
    %v4842 = vadd.f32 %v4698, %v4774
    %v4843 = vadd.f32 %v4699, %v4779
    %v4844 = vadd.f32 %v4700, %v4779
    %v4845 = vadd.f32 %v4701, %v4779
    %v4846 = vadd.f32 %v4702, %v4779
    %v4847 = vadd.f32 %v4703, %v4784
    %v4848 = vadd.f32 %v4704, %v4784
    %v4849 = vadd.f32 %v4705, %v4784
    %v4850 = vadd.f32 %v4706, %v4784
    %v4851 = vadd.f32 %v4707, %v4789
    %v4852 = vadd.f32 %v4708, %v4789
    %v4853 = vadd.f32 %v4709, %v4789
    %v4854 = vadd.f32 %v4710, %v4789
    %v4855 = vtanh.pop %v4791
    %v4856 = vtanh.pop %v4792
    %v4857 = vtanh.pop %v4793
    %v4858 = vtanh.pop %v4794
    %v4859 = vtanh.pop %v4795
    %v4860 = vtanh.pop %v4796
    %v4861 = vtanh.pop %v4797
    %v4862 = vtanh.pop %v4798
    %v4863 = vtanh.pop %v4799
    %v4864 = vtanh.pop %v4800
    %v4865 = vtanh.pop %v4801
    %v4866 = vtanh.pop %v4802
    %v4867 = vtanh.pop %v4803
    %v4868 = vtanh.pop %v4804
    %v4869 = vtanh.pop %v4805
    %v4870 = vtanh.pop %v4806
    %v4871 = vtanh.pop %v4807
    %v4872 = vtanh.pop %v4808
    %v4873 = vtanh.pop %v4809
    %v4874 = vtanh.pop %v4810
    %v4875 = vtanh.pop %v4811
    %v4876 = vtanh.pop %v4812
    %v4877 = vtanh.pop %v4813
    %v4878 = vtanh.pop %v4814
    %v4879 = vtanh.pop %v4815
    %v4880 = vtanh.pop %v4816
    %v4881 = vtanh.pop %v4817
    %v4882 = vtanh.pop %v4818
    %v4883 = vtanh.pop %v4819
    %v4884 = vtanh.pop %v4820
    %v4885 = vtanh.pop %v4821
    %v4886 = vtanh.pop %v4822
    %v4887 = vtanh.pop %v4823
    %v4888 = vtanh.pop %v4824
    %v4889 = vtanh.pop %v4825
    %v4890 = vtanh.pop %v4826
    %v4891 = vtanh.pop %v4827
    %v4892 = vtanh.pop %v4828
    %v4893 = vtanh.pop %v4829
    %v4894 = vtanh.pop %v4830
    %v4895 = vtanh.pop %v4831
    %v4896 = vtanh.pop %v4832
    %v4897 = vtanh.pop %v4833
    %v4898 = vtanh.pop %v4834
    %v4899 = vtanh.pop %v4835
    %v4900 = vtanh.pop %v4836
    %v4901 = vtanh.pop %v4837
    %v4902 = vtanh.pop %v4838
    %v4903 = vtanh.pop %v4839
    %v4904 = vtanh.pop %v4840
    %v4905 = vtanh.pop %v4841
    %v4906 = vtanh.pop %v4842
    %v4907 = vtanh.pop %v4843
    %v4908 = vtanh.pop %v4844
    %v4909 = vtanh.pop %v4845
    %v4910 = vtanh.pop %v4846
    %v4911 = vtanh.pop %v4847
    %v4912 = vtanh.pop %v4848
    %v4913 = vtanh.pop %v4849
    %v4914 = vtanh.pop %v4850
    %v4915 = vtanh.pop %v4851
    %v4916 = vtanh.pop %v4852
    %v4917 = vtanh.pop %v4853
    %v4918 = vtanh.pop %v4854
    %4920 = vset.pattern.permute.xlu0 0
    %4921 = vperm.xlu0 %4920, %v4551
    %v4922 = vpop.permute.xlu0 %4921
    %4925 = vset.pattern.permute.xlu0 0
    %4926 = vperm.xlu0 %4925, %v4552
    %v4927 = vpop.permute.xlu0 %4926
    %4930 = vset.pattern.permute.xlu0 0
    %4931 = vperm.xlu0 %4930, %v4553
    %v4932 = vpop.permute.xlu0 %4931
    %4935 = vset.pattern.permute.xlu0 0
    %4936 = vperm.xlu0 %4935, %v4554
    %v4937 = vpop.permute.xlu0 %4936
    %4940 = vset.pattern.permute.xlu0 0
    %4941 = vperm.xlu0 %4940, %v4555
    %v4942 = vpop.permute.xlu0 %4941
    %4945 = vset.pattern.permute.xlu0 0
    %4946 = vperm.xlu0 %4945, %v4556
    %v4947 = vpop.permute.xlu0 %4946
    %4950 = vset.pattern.permute.xlu0 0
    %4951 = vperm.xlu0 %4950, %v4557
    %v4952 = vpop.permute.xlu0 %4951
    %4955 = vset.pattern.permute.xlu0 0
    %4956 = vperm.xlu0 %4955, %v4558
    %v4957 = vpop.permute.xlu0 %4956
    %4960 = vset.pattern.permute.xlu0 0
    %4961 = vperm.xlu0 %4960, %v4559
    %v4962 = vpop.permute.xlu0 %4961
    %4965 = vset.pattern.permute.xlu0 0
    %4966 = vperm.xlu0 %4965, %v4560
    %v4967 = vpop.permute.xlu0 %4966
    %4970 = vset.pattern.permute.xlu0 0
    %4971 = vperm.xlu0 %4970, %v4561
    %v4972 = vpop.permute.xlu0 %4971
    %4975 = vset.pattern.permute.xlu0 0
    %4976 = vperm.xlu0 %4975, %v4562
    %v4977 = vpop.permute.xlu0 %4976
    %4980 = vset.pattern.permute.xlu0 0
    %4981 = vperm.xlu0 %4980, %v4563
    %v4982 = vpop.permute.xlu0 %4981
    %4985 = vset.pattern.permute.xlu0 0
    %4986 = vperm.xlu0 %4985, %v4564
    %v4987 = vpop.permute.xlu0 %4986
    %4990 = vset.pattern.permute.xlu0 0
    %4991 = vperm.xlu0 %4990, %v4565
    %v4992 = vpop.permute.xlu0 %4991
    %4995 = vset.pattern.permute.xlu0 0
    %4996 = vperm.xlu0 %4995, %v4566
    %v4997 = vpop.permute.xlu0 %4996
    %v4999 = vmul.f32 %v4855, %v4922
    %v5000 = vmul.f32 %v4856, %v4922
    %v5001 = vmul.f32 %v4857, %v4922
    %v5002 = vmul.f32 %v4858, %v4922
    %v5003 = vmul.f32 %v4859, %v4927
    %v5004 = vmul.f32 %v4860, %v4927
    %v5005 = vmul.f32 %v4861, %v4927
    %v5006 = vmul.f32 %v4862, %v4927
    %v5007 = vmul.f32 %v4863, %v4932
    %v5008 = vmul.f32 %v4864, %v4932
    %v5009 = vmul.f32 %v4865, %v4932
    %v5010 = vmul.f32 %v4866, %v4932
    %v5011 = vmul.f32 %v4867, %v4937
    %v5012 = vmul.f32 %v4868, %v4937
    %v5013 = vmul.f32 %v4869, %v4937
    %v5014 = vmul.f32 %v4870, %v4937
    %v5015 = vmul.f32 %v4871, %v4942
    %v5016 = vmul.f32 %v4872, %v4942
    %v5017 = vmul.f32 %v4873, %v4942
    %v5018 = vmul.f32 %v4874, %v4942
    %v5019 = vmul.f32 %v4875, %v4947
    %v5020 = vmul.f32 %v4876, %v4947
    %v5021 = vmul.f32 %v4877, %v4947
    %v5022 = vmul.f32 %v4878, %v4947
    %v5023 = vmul.f32 %v4879, %v4952
    %v5024 = vmul.f32 %v4880, %v4952
    %v5025 = vmul.f32 %v4881, %v4952
    %v5026 = vmul.f32 %v4882, %v4952
    %v5027 = vmul.f32 %v4883, %v4957
    %v5028 = vmul.f32 %v4884, %v4957
    %v5029 = vmul.f32 %v4885, %v4957
    %v5030 = vmul.f32 %v4886, %v4957
    %v5031 = vmul.f32 %v4887, %v4962
    %v5032 = vmul.f32 %v4888, %v4962
    %v5033 = vmul.f32 %v4889, %v4962
    %v5034 = vmul.f32 %v4890, %v4962
    %v5035 = vmul.f32 %v4891, %v4967
    %v5036 = vmul.f32 %v4892, %v4967
    %v5037 = vmul.f32 %v4893, %v4967
    %v5038 = vmul.f32 %v4894, %v4967
    %v5039 = vmul.f32 %v4895, %v4972
    %v5040 = vmul.f32 %v4896, %v4972
    %v5041 = vmul.f32 %v4897, %v4972
    %v5042 = vmul.f32 %v4898, %v4972
    %v5043 = vmul.f32 %v4899, %v4977
    %v5044 = vmul.f32 %v4900, %v4977
    %v5045 = vmul.f32 %v4901, %v4977
    %v5046 = vmul.f32 %v4902, %v4977
    %v5047 = vmul.f32 %v4903, %v4982
    %v5048 = vmul.f32 %v4904, %v4982
    %v5049 = vmul.f32 %v4905, %v4982
    %v5050 = vmul.f32 %v4906, %v4982
    %v5051 = vmul.f32 %v4907, %v4987
    %v5052 = vmul.f32 %v4908, %v4987
    %v5053 = vmul.f32 %v4909, %v4987
    %v5054 = vmul.f32 %v4910, %v4987
    %v5055 = vmul.f32 %v4911, %v4992
    %v5056 = vmul.f32 %v4912, %v4992
    %v5057 = vmul.f32 %v4913, %v4992
    %v5058 = vmul.f32 %v4914, %v4992
    %v5059 = vmul.f32 %v4915, %v4997
    %v5060 = vmul.f32 %v4916, %v4997
    %v5061 = vmul.f32 %v4917, %v4997
    %v5062 = vmul.f32 %v4918, %v4997
    %v5063 = vadd.f32 %v4999, %v5003
    %v5064 = vadd.f32 %v5063, %v5007
    %v5065 = vadd.f32 %v5064, %v5011
    %v5066 = vadd.f32 %v5065, %v5015
    %v5067 = vadd.f32 %v5066, %v5019
    %v5068 = vadd.f32 %v5067, %v5023
    %v5069 = vadd.f32 %v5068, %v5027
    %v5070 = vadd.f32 %v5069, %v5031
    %v5071 = vadd.f32 %v5070, %v5035
    %v5072 = vadd.f32 %v5071, %v5039
    %v5073 = vadd.f32 %v5072, %v5043
    %v5074 = vadd.f32 %v5073, %v5047
    %v5075 = vadd.f32 %v5074, %v5051
    %v5076 = vadd.f32 %v5075, %v5055
    %v5077 = vadd.f32 %v5076, %v5059
    %v5078 = vrot.slane %v5077, 4
    %v5079 = vadd.f32 %v5077, %v5078
    %v5080 = vrot.slane %v5079, 2
    %v5081 = vadd.f32 %v5079, %v5080
    %v5082 = vrot.slane %v5081, 1
    %v5083 = vadd.f32 %v5081, %v5082
    %v5084 = vadd.f32 %v5000, %v5004
    %v5085 = vadd.f32 %v5084, %v5008
    %v5086 = vadd.f32 %v5085, %v5012
    %v5087 = vadd.f32 %v5086, %v5016
    %v5088 = vadd.f32 %v5087, %v5020
    %v5089 = vadd.f32 %v5088, %v5024
    %v5090 = vadd.f32 %v5089, %v5028
    %v5091 = vadd.f32 %v5090, %v5032
    %v5092 = vadd.f32 %v5091, %v5036
    %v5093 = vadd.f32 %v5092, %v5040
    %v5094 = vadd.f32 %v5093, %v5044
    %v5095 = vadd.f32 %v5094, %v5048
    %v5096 = vadd.f32 %v5095, %v5052
    %v5097 = vadd.f32 %v5096, %v5056
    %v5098 = vadd.f32 %v5097, %v5060
    %v5099 = vrot.slane %v5098, 4
    %v5100 = vadd.f32 %v5098, %v5099
    %v5101 = vrot.slane %v5100, 2
    %v5102 = vadd.f32 %v5100, %v5101
    %v5103 = vrot.slane %v5102, 1
    %v5104 = vadd.f32 %v5102, %v5103
    %v5105 = vadd.f32 %v5001, %v5005
    %v5106 = vadd.f32 %v5105, %v5009
    %v5107 = vadd.f32 %v5106, %v5013
    %v5108 = vadd.f32 %v5107, %v5017
    %v5109 = vadd.f32 %v5108, %v5021
    %v5110 = vadd.f32 %v5109, %v5025
    %v5111 = vadd.f32 %v5110, %v5029
    %v5112 = vadd.f32 %v5111, %v5033
    %v5113 = vadd.f32 %v5112, %v5037
    %v5114 = vadd.f32 %v5113, %v5041
    %v5115 = vadd.f32 %v5114, %v5045
    %v5116 = vadd.f32 %v5115, %v5049
    %v5117 = vadd.f32 %v5116, %v5053
    %v5118 = vadd.f32 %v5117, %v5057
    %v5119 = vadd.f32 %v5118, %v5061
    %v5120 = vrot.slane %v5119, 4
    %v5121 = vadd.f32 %v5119, %v5120
    %v5122 = vrot.slane %v5121, 2
    %v5123 = vadd.f32 %v5121, %v5122
    %v5124 = vrot.slane %v5123, 1
    %v5125 = vadd.f32 %v5123, %v5124
    %v5126 = vadd.f32 %v5002, %v5006
    %v5127 = vadd.f32 %v5126, %v5010
    %v5128 = vadd.f32 %v5127, %v5014
    %v5129 = vadd.f32 %v5128, %v5018
    %v5130 = vadd.f32 %v5129, %v5022
    %v5131 = vadd.f32 %v5130, %v5026
    %v5132 = vadd.f32 %v5131, %v5030
    %v5133 = vadd.f32 %v5132, %v5034
    %v5134 = vadd.f32 %v5133, %v5038
    %v5135 = vadd.f32 %v5134, %v5042
    %v5136 = vadd.f32 %v5135, %v5046
    %v5137 = vadd.f32 %v5136, %v5050
    %v5138 = vadd.f32 %v5137, %v5054
    %v5139 = vadd.f32 %v5138, %v5058
    %v5140 = vadd.f32 %v5139, %v5062
    %v5141 = vrot.slane %v5140, 4
    %v5142 = vadd.f32 %v5140, %v5141
    %v5143 = vrot.slane %v5142, 2
    %v5144 = vadd.f32 %v5142, %v5143
    %v5145 = vrot.slane %v5144, 1
    %v5146 = vadd.f32 %v5144, %v5145
    %v5147 = vadd.f32 %v4515, %v5083
    %v5148 = vadd.f32 %v4516, %v5104
    %v5149 = vadd.f32 %v4517, %v5125
    %v5150 = vadd.f32 %v4518, %v5146
    %v5151 = vld [vmem:[%s3 + $0x400] sm:$0xff]
    %v5152 = vld [vmem:[%s3 + $0x408] sm:$0xff]
    %v5153 = vld [vmem:[%s3 + $0x410] sm:$0xff]
    %v5154 = vld [vmem:[%s3 + $0x418] sm:$0xff]
    %v5155 = vld [vmem:[%s3 + $0x420] sm:$0xff]
    %v5156 = vld [vmem:[%s3 + $0x428] sm:$0xff]
    %v5157 = vld [vmem:[%s3 + $0x430] sm:$0xff]
    %v5158 = vld [vmem:[%s3 + $0x438] sm:$0xff]
    %v5159 = vld [vmem:[%s3 + $0x440] sm:$0xff]
    %v5160 = vld [vmem:[%s3 + $0x448] sm:$0xff]
    %v5161 = vld [vmem:[%s3 + $0x450] sm:$0xff]
    %v5162 = vld [vmem:[%s3 + $0x458] sm:$0xff]
    %v5163 = vld [vmem:[%s3 + $0x460] sm:$0xff]
    %v5164 = vld [vmem:[%s3 + $0x468] sm:$0xff]
    %v5165 = vld [vmem:[%s3 + $0x470] sm:$0xff]
    %v5166 = vld [vmem:[%s3 + $0x478] sm:$0xff]
    %v5167 = vld [vmem:[%s4 + $0x400] sm:$0xff]
    %v5168 = vld [vmem:[%s4 + $0x408] sm:$0xff]
    %v5169 = vld [vmem:[%s4 + $0x410] sm:$0xff]
    %v5170 = vld [vmem:[%s4 + $0x418] sm:$0xff]
    %v5171 = vld [vmem:[%s4 + $0x420] sm:$0xff]
    %v5172 = vld [vmem:[%s4 + $0x428] sm:$0xff]
    %v5173 = vld [vmem:[%s4 + $0x430] sm:$0xff]
    %v5174 = vld [vmem:[%s4 + $0x438] sm:$0xff]
    %v5175 = vld [vmem:[%s4 + $0x440] sm:$0xff]
    %v5176 = vld [vmem:[%s4 + $0x448] sm:$0xff]
    %v5177 = vld [vmem:[%s4 + $0x450] sm:$0xff]
    %v5178 = vld [vmem:[%s4 + $0x458] sm:$0xff]
    %v5179 = vld [vmem:[%s4 + $0x460] sm:$0xff]
    %v5180 = vld [vmem:[%s4 + $0x468] sm:$0xff]
    %v5181 = vld [vmem:[%s4 + $0x470] sm:$0xff]
    %v5182 = vld [vmem:[%s4 + $0x478] sm:$0xff]
    %v5183 = vld [vmem:[%s5 + $0x400] sm:$0xff]
    %v5184 = vld [vmem:[%s5 + $0x408] sm:$0xff]
    %v5185 = vld [vmem:[%s5 + $0x410] sm:$0xff]
    %v5186 = vld [vmem:[%s5 + $0x418] sm:$0xff]
    %v5187 = vld [vmem:[%s5 + $0x420] sm:$0xff]
    %v5188 = vld [vmem:[%s5 + $0x428] sm:$0xff]
    %v5189 = vld [vmem:[%s5 + $0x430] sm:$0xff]
    %v5190 = vld [vmem:[%s5 + $0x438] sm:$0xff]
    %v5191 = vld [vmem:[%s5 + $0x440] sm:$0xff]
    %v5192 = vld [vmem:[%s5 + $0x448] sm:$0xff]
    %v5193 = vld [vmem:[%s5 + $0x450] sm:$0xff]
    %v5194 = vld [vmem:[%s5 + $0x458] sm:$0xff]
    %v5195 = vld [vmem:[%s5 + $0x460] sm:$0xff]
    %v5196 = vld [vmem:[%s5 + $0x468] sm:$0xff]
    %v5197 = vld [vmem:[%s5 + $0x470] sm:$0xff]
    %v5198 = vld [vmem:[%s5 + $0x478] sm:$0xff]
    %5200 = vset.pattern.permute.xlu0 0
    %5201 = vperm.xlu0 %5200, %v5151
    %v5202 = vpop.permute.xlu0 %5201
    %5205 = vset.pattern.permute.xlu0 0
    %5206 = vperm.xlu0 %5205, %v5152
    %v5207 = vpop.permute.xlu0 %5206
    %5210 = vset.pattern.permute.xlu0 0
    %5211 = vperm.xlu0 %5210, %v5153
    %v5212 = vpop.permute.xlu0 %5211
    %5215 = vset.pattern.permute.xlu0 0
    %5216 = vperm.xlu0 %5215, %v5154
    %v5217 = vpop.permute.xlu0 %5216
    %5220 = vset.pattern.permute.xlu0 0
    %5221 = vperm.xlu0 %5220, %v5155
    %v5222 = vpop.permute.xlu0 %5221
    %5225 = vset.pattern.permute.xlu0 0
    %5226 = vperm.xlu0 %5225, %v5156
    %v5227 = vpop.permute.xlu0 %5226
    %5230 = vset.pattern.permute.xlu0 0
    %5231 = vperm.xlu0 %5230, %v5157
    %v5232 = vpop.permute.xlu0 %5231
    %5235 = vset.pattern.permute.xlu0 0
    %5236 = vperm.xlu0 %5235, %v5158
    %v5237 = vpop.permute.xlu0 %5236
    %5240 = vset.pattern.permute.xlu0 0
    %5241 = vperm.xlu0 %5240, %v5159
    %v5242 = vpop.permute.xlu0 %5241
    %5245 = vset.pattern.permute.xlu0 0
    %5246 = vperm.xlu0 %5245, %v5160
    %v5247 = vpop.permute.xlu0 %5246
    %5250 = vset.pattern.permute.xlu0 0
    %5251 = vperm.xlu0 %5250, %v5161
    %v5252 = vpop.permute.xlu0 %5251
    %5255 = vset.pattern.permute.xlu0 0
    %5256 = vperm.xlu0 %5255, %v5162
    %v5257 = vpop.permute.xlu0 %5256
    %5260 = vset.pattern.permute.xlu0 0
    %5261 = vperm.xlu0 %5260, %v5163
    %v5262 = vpop.permute.xlu0 %5261
    %5265 = vset.pattern.permute.xlu0 0
    %5266 = vperm.xlu0 %5265, %v5164
    %v5267 = vpop.permute.xlu0 %5266
    %5270 = vset.pattern.permute.xlu0 0
    %5271 = vperm.xlu0 %5270, %v5165
    %v5272 = vpop.permute.xlu0 %5271
    %5275 = vset.pattern.permute.xlu0 0
    %5276 = vperm.xlu0 %5275, %v5166
    %v5277 = vpop.permute.xlu0 %5276
    %v5279 = vmul.f32 %v5202, %v91
    %v5280 = vmul.f32 %v5202, %v92
    %v5281 = vmul.f32 %v5202, %v93
    %v5282 = vmul.f32 %v5202, %v94
    %v5283 = vmul.f32 %v5207, %v91
    %v5284 = vmul.f32 %v5207, %v92
    %v5285 = vmul.f32 %v5207, %v93
    %v5286 = vmul.f32 %v5207, %v94
    %v5287 = vmul.f32 %v5212, %v91
    %v5288 = vmul.f32 %v5212, %v92
    %v5289 = vmul.f32 %v5212, %v93
    %v5290 = vmul.f32 %v5212, %v94
    %v5291 = vmul.f32 %v5217, %v91
    %v5292 = vmul.f32 %v5217, %v92
    %v5293 = vmul.f32 %v5217, %v93
    %v5294 = vmul.f32 %v5217, %v94
    %v5295 = vmul.f32 %v5222, %v91
    %v5296 = vmul.f32 %v5222, %v92
    %v5297 = vmul.f32 %v5222, %v93
    %v5298 = vmul.f32 %v5222, %v94
    %v5299 = vmul.f32 %v5227, %v91
    %v5300 = vmul.f32 %v5227, %v92
    %v5301 = vmul.f32 %v5227, %v93
    %v5302 = vmul.f32 %v5227, %v94
    %v5303 = vmul.f32 %v5232, %v91
    %v5304 = vmul.f32 %v5232, %v92
    %v5305 = vmul.f32 %v5232, %v93
    %v5306 = vmul.f32 %v5232, %v94
    %v5307 = vmul.f32 %v5237, %v91
    %v5308 = vmul.f32 %v5237, %v92
    %v5309 = vmul.f32 %v5237, %v93
    %v5310 = vmul.f32 %v5237, %v94
    %v5311 = vmul.f32 %v5242, %v91
    %v5312 = vmul.f32 %v5242, %v92
    %v5313 = vmul.f32 %v5242, %v93
    %v5314 = vmul.f32 %v5242, %v94
    %v5315 = vmul.f32 %v5247, %v91
    %v5316 = vmul.f32 %v5247, %v92
    %v5317 = vmul.f32 %v5247, %v93
    %v5318 = vmul.f32 %v5247, %v94
    %v5319 = vmul.f32 %v5252, %v91
    %v5320 = vmul.f32 %v5252, %v92
    %v5321 = vmul.f32 %v5252, %v93
    %v5322 = vmul.f32 %v5252, %v94
    %v5323 = vmul.f32 %v5257, %v91
    %v5324 = vmul.f32 %v5257, %v92
    %v5325 = vmul.f32 %v5257, %v93
    %v5326 = vmul.f32 %v5257, %v94
    %v5327 = vmul.f32 %v5262, %v91
    %v5328 = vmul.f32 %v5262, %v92
    %v5329 = vmul.f32 %v5262, %v93
    %v5330 = vmul.f32 %v5262, %v94
    %v5331 = vmul.f32 %v5267, %v91
    %v5332 = vmul.f32 %v5267, %v92
    %v5333 = vmul.f32 %v5267, %v93
    %v5334 = vmul.f32 %v5267, %v94
    %v5335 = vmul.f32 %v5272, %v91
    %v5336 = vmul.f32 %v5272, %v92
    %v5337 = vmul.f32 %v5272, %v93
    %v5338 = vmul.f32 %v5272, %v94
    %v5339 = vmul.f32 %v5277, %v91
    %v5340 = vmul.f32 %v5277, %v92
    %v5341 = vmul.f32 %v5277, %v93
    %v5342 = vmul.f32 %v5277, %v94
    %5344 = vset.pattern.permute.xlu0 0
    %5345 = vperm.xlu0 %5344, %v5167
    %v5346 = vpop.permute.xlu0 %5345
    %5349 = vset.pattern.permute.xlu0 0
    %5350 = vperm.xlu0 %5349, %v5168
    %v5351 = vpop.permute.xlu0 %5350
    %5354 = vset.pattern.permute.xlu0 0
    %5355 = vperm.xlu0 %5354, %v5169
    %v5356 = vpop.permute.xlu0 %5355
    %5359 = vset.pattern.permute.xlu0 0
    %5360 = vperm.xlu0 %5359, %v5170
    %v5361 = vpop.permute.xlu0 %5360
    %5364 = vset.pattern.permute.xlu0 0
    %5365 = vperm.xlu0 %5364, %v5171
    %v5366 = vpop.permute.xlu0 %5365
    %5369 = vset.pattern.permute.xlu0 0
    %5370 = vperm.xlu0 %5369, %v5172
    %v5371 = vpop.permute.xlu0 %5370
    %5374 = vset.pattern.permute.xlu0 0
    %5375 = vperm.xlu0 %5374, %v5173
    %v5376 = vpop.permute.xlu0 %5375
    %5379 = vset.pattern.permute.xlu0 0
    %5380 = vperm.xlu0 %5379, %v5174
    %v5381 = vpop.permute.xlu0 %5380
    %5384 = vset.pattern.permute.xlu0 0
    %5385 = vperm.xlu0 %5384, %v5175
    %v5386 = vpop.permute.xlu0 %5385
    %5389 = vset.pattern.permute.xlu0 0
    %5390 = vperm.xlu0 %5389, %v5176
    %v5391 = vpop.permute.xlu0 %5390
    %5394 = vset.pattern.permute.xlu0 0
    %5395 = vperm.xlu0 %5394, %v5177
    %v5396 = vpop.permute.xlu0 %5395
    %5399 = vset.pattern.permute.xlu0 0
    %5400 = vperm.xlu0 %5399, %v5178
    %v5401 = vpop.permute.xlu0 %5400
    %5404 = vset.pattern.permute.xlu0 0
    %5405 = vperm.xlu0 %5404, %v5179
    %v5406 = vpop.permute.xlu0 %5405
    %5409 = vset.pattern.permute.xlu0 0
    %5410 = vperm.xlu0 %5409, %v5180
    %v5411 = vpop.permute.xlu0 %5410
    %5414 = vset.pattern.permute.xlu0 0
    %5415 = vperm.xlu0 %5414, %v5181
    %v5416 = vpop.permute.xlu0 %5415
    %5419 = vset.pattern.permute.xlu0 0
    %5420 = vperm.xlu0 %5419, %v5182
    %v5421 = vpop.permute.xlu0 %5420
    %v5423 = vadd.f32 %v5279, %v5346
    %v5424 = vadd.f32 %v5280, %v5346
    %v5425 = vadd.f32 %v5281, %v5346
    %v5426 = vadd.f32 %v5282, %v5346
    %v5427 = vadd.f32 %v5283, %v5351
    %v5428 = vadd.f32 %v5284, %v5351
    %v5429 = vadd.f32 %v5285, %v5351
    %v5430 = vadd.f32 %v5286, %v5351
    %v5431 = vadd.f32 %v5287, %v5356
    %v5432 = vadd.f32 %v5288, %v5356
    %v5433 = vadd.f32 %v5289, %v5356
    %v5434 = vadd.f32 %v5290, %v5356
    %v5435 = vadd.f32 %v5291, %v5361
    %v5436 = vadd.f32 %v5292, %v5361
    %v5437 = vadd.f32 %v5293, %v5361
    %v5438 = vadd.f32 %v5294, %v5361
    %v5439 = vadd.f32 %v5295, %v5366
    %v5440 = vadd.f32 %v5296, %v5366
    %v5441 = vadd.f32 %v5297, %v5366
    %v5442 = vadd.f32 %v5298, %v5366
    %v5443 = vadd.f32 %v5299, %v5371
    %v5444 = vadd.f32 %v5300, %v5371
    %v5445 = vadd.f32 %v5301, %v5371
    %v5446 = vadd.f32 %v5302, %v5371
    %v5447 = vadd.f32 %v5303, %v5376
    %v5448 = vadd.f32 %v5304, %v5376
    %v5449 = vadd.f32 %v5305, %v5376
    %v5450 = vadd.f32 %v5306, %v5376
    %v5451 = vadd.f32 %v5307, %v5381
    %v5452 = vadd.f32 %v5308, %v5381
    %v5453 = vadd.f32 %v5309, %v5381
    %v5454 = vadd.f32 %v5310, %v5381
    %v5455 = vadd.f32 %v5311, %v5386
    %v5456 = vadd.f32 %v5312, %v5386
    %v5457 = vadd.f32 %v5313, %v5386
    %v5458 = vadd.f32 %v5314, %v5386
    %v5459 = vadd.f32 %v5315, %v5391
    %v5460 = vadd.f32 %v5316, %v5391
    %v5461 = vadd.f32 %v5317, %v5391
    %v5462 = vadd.f32 %v5318, %v5391
    %v5463 = vadd.f32 %v5319, %v5396
    %v5464 = vadd.f32 %v5320, %v5396
    %v5465 = vadd.f32 %v5321, %v5396
    %v5466 = vadd.f32 %v5322, %v5396
    %v5467 = vadd.f32 %v5323, %v5401
    %v5468 = vadd.f32 %v5324, %v5401
    %v5469 = vadd.f32 %v5325, %v5401
    %v5470 = vadd.f32 %v5326, %v5401
    %v5471 = vadd.f32 %v5327, %v5406
    %v5472 = vadd.f32 %v5328, %v5406
    %v5473 = vadd.f32 %v5329, %v5406
    %v5474 = vadd.f32 %v5330, %v5406
    %v5475 = vadd.f32 %v5331, %v5411
    %v5476 = vadd.f32 %v5332, %v5411
    %v5477 = vadd.f32 %v5333, %v5411
    %v5478 = vadd.f32 %v5334, %v5411
    %v5479 = vadd.f32 %v5335, %v5416
    %v5480 = vadd.f32 %v5336, %v5416
    %v5481 = vadd.f32 %v5337, %v5416
    %v5482 = vadd.f32 %v5338, %v5416
    %v5483 = vadd.f32 %v5339, %v5421
    %v5484 = vadd.f32 %v5340, %v5421
    %v5485 = vadd.f32 %v5341, %v5421
    %v5486 = vadd.f32 %v5342, %v5421
    %v5487 = vtanh.pop %v5423
    %v5488 = vtanh.pop %v5424
    %v5489 = vtanh.pop %v5425
    %v5490 = vtanh.pop %v5426
    %v5491 = vtanh.pop %v5427
    %v5492 = vtanh.pop %v5428
    %v5493 = vtanh.pop %v5429
    %v5494 = vtanh.pop %v5430
    %v5495 = vtanh.pop %v5431
    %v5496 = vtanh.pop %v5432
    %v5497 = vtanh.pop %v5433
    %v5498 = vtanh.pop %v5434
    %v5499 = vtanh.pop %v5435
    %v5500 = vtanh.pop %v5436
    %v5501 = vtanh.pop %v5437
    %v5502 = vtanh.pop %v5438
    %v5503 = vtanh.pop %v5439
    %v5504 = vtanh.pop %v5440
    %v5505 = vtanh.pop %v5441
    %v5506 = vtanh.pop %v5442
    %v5507 = vtanh.pop %v5443
    %v5508 = vtanh.pop %v5444
    %v5509 = vtanh.pop %v5445
    %v5510 = vtanh.pop %v5446
    %v5511 = vtanh.pop %v5447
    %v5512 = vtanh.pop %v5448
    %v5513 = vtanh.pop %v5449
    %v5514 = vtanh.pop %v5450
    %v5515 = vtanh.pop %v5451
    %v5516 = vtanh.pop %v5452
    %v5517 = vtanh.pop %v5453
    %v5518 = vtanh.pop %v5454
    %v5519 = vtanh.pop %v5455
    %v5520 = vtanh.pop %v5456
    %v5521 = vtanh.pop %v5457
    %v5522 = vtanh.pop %v5458
    %v5523 = vtanh.pop %v5459
    %v5524 = vtanh.pop %v5460
    %v5525 = vtanh.pop %v5461
    %v5526 = vtanh.pop %v5462
    %v5527 = vtanh.pop %v5463
    %v5528 = vtanh.pop %v5464
    %v5529 = vtanh.pop %v5465
    %v5530 = vtanh.pop %v5466
    %v5531 = vtanh.pop %v5467
    %v5532 = vtanh.pop %v5468
    %v5533 = vtanh.pop %v5469
    %v5534 = vtanh.pop %v5470
    %v5535 = vtanh.pop %v5471
    %v5536 = vtanh.pop %v5472
    %v5537 = vtanh.pop %v5473
    %v5538 = vtanh.pop %v5474
    %v5539 = vtanh.pop %v5475
    %v5540 = vtanh.pop %v5476
    %v5541 = vtanh.pop %v5477
    %v5542 = vtanh.pop %v5478
    %v5543 = vtanh.pop %v5479
    %v5544 = vtanh.pop %v5480
    %v5545 = vtanh.pop %v5481
    %v5546 = vtanh.pop %v5482
    %v5547 = vtanh.pop %v5483
    %v5548 = vtanh.pop %v5484
    %v5549 = vtanh.pop %v5485
    %v5550 = vtanh.pop %v5486
    %5552 = vset.pattern.permute.xlu0 0
    %5553 = vperm.xlu0 %5552, %v5183
    %v5554 = vpop.permute.xlu0 %5553
    %5557 = vset.pattern.permute.xlu0 0
    %5558 = vperm.xlu0 %5557, %v5184
    %v5559 = vpop.permute.xlu0 %5558
    %5562 = vset.pattern.permute.xlu0 0
    %5563 = vperm.xlu0 %5562, %v5185
    %v5564 = vpop.permute.xlu0 %5563
    %5567 = vset.pattern.permute.xlu0 0
    %5568 = vperm.xlu0 %5567, %v5186
    %v5569 = vpop.permute.xlu0 %5568
    %5572 = vset.pattern.permute.xlu0 0
    %5573 = vperm.xlu0 %5572, %v5187
    %v5574 = vpop.permute.xlu0 %5573
    %5577 = vset.pattern.permute.xlu0 0
    %5578 = vperm.xlu0 %5577, %v5188
    %v5579 = vpop.permute.xlu0 %5578
    %5582 = vset.pattern.permute.xlu0 0
    %5583 = vperm.xlu0 %5582, %v5189
    %v5584 = vpop.permute.xlu0 %5583
    %5587 = vset.pattern.permute.xlu0 0
    %5588 = vperm.xlu0 %5587, %v5190
    %v5589 = vpop.permute.xlu0 %5588
    %5592 = vset.pattern.permute.xlu0 0
    %5593 = vperm.xlu0 %5592, %v5191
    %v5594 = vpop.permute.xlu0 %5593
    %5597 = vset.pattern.permute.xlu0 0
    %5598 = vperm.xlu0 %5597, %v5192
    %v5599 = vpop.permute.xlu0 %5598
    %5602 = vset.pattern.permute.xlu0 0
    %5603 = vperm.xlu0 %5602, %v5193
    %v5604 = vpop.permute.xlu0 %5603
    %5607 = vset.pattern.permute.xlu0 0
    %5608 = vperm.xlu0 %5607, %v5194
    %v5609 = vpop.permute.xlu0 %5608
    %5612 = vset.pattern.permute.xlu0 0
    %5613 = vperm.xlu0 %5612, %v5195
    %v5614 = vpop.permute.xlu0 %5613
    %5617 = vset.pattern.permute.xlu0 0
    %5618 = vperm.xlu0 %5617, %v5196
    %v5619 = vpop.permute.xlu0 %5618
    %5622 = vset.pattern.permute.xlu0 0
    %5623 = vperm.xlu0 %5622, %v5197
    %v5624 = vpop.permute.xlu0 %5623
    %5627 = vset.pattern.permute.xlu0 0
    %5628 = vperm.xlu0 %5627, %v5198
    %v5629 = vpop.permute.xlu0 %5628
    %v5631 = vmul.f32 %v5487, %v5554
    %v5632 = vmul.f32 %v5488, %v5554
    %v5633 = vmul.f32 %v5489, %v5554
    %v5634 = vmul.f32 %v5490, %v5554
    %v5635 = vmul.f32 %v5491, %v5559
    %v5636 = vmul.f32 %v5492, %v5559
    %v5637 = vmul.f32 %v5493, %v5559
    %v5638 = vmul.f32 %v5494, %v5559
    %v5639 = vmul.f32 %v5495, %v5564
    %v5640 = vmul.f32 %v5496, %v5564
    %v5641 = vmul.f32 %v5497, %v5564
    %v5642 = vmul.f32 %v5498, %v5564
    %v5643 = vmul.f32 %v5499, %v5569
    %v5644 = vmul.f32 %v5500, %v5569
    %v5645 = vmul.f32 %v5501, %v5569
    %v5646 = vmul.f32 %v5502, %v5569
    %v5647 = vmul.f32 %v5503, %v5574
    %v5648 = vmul.f32 %v5504, %v5574
    %v5649 = vmul.f32 %v5505, %v5574
    %v5650 = vmul.f32 %v5506, %v5574
    %v5651 = vmul.f32 %v5507, %v5579
    %v5652 = vmul.f32 %v5508, %v5579
    %v5653 = vmul.f32 %v5509, %v5579
    %v5654 = vmul.f32 %v5510, %v5579
    %v5655 = vmul.f32 %v5511, %v5584
    %v5656 = vmul.f32 %v5512, %v5584
    %v5657 = vmul.f32 %v5513, %v5584
    %v5658 = vmul.f32 %v5514, %v5584
    %v5659 = vmul.f32 %v5515, %v5589
    %v5660 = vmul.f32 %v5516, %v5589
    %v5661 = vmul.f32 %v5517, %v5589
    %v5662 = vmul.f32 %v5518, %v5589
    %v5663 = vmul.f32 %v5519, %v5594
    %v5664 = vmul.f32 %v5520, %v5594
    %v5665 = vmul.f32 %v5521, %v5594
    %v5666 = vmul.f32 %v5522, %v5594
    %v5667 = vmul.f32 %v5523, %v5599
    %v5668 = vmul.f32 %v5524, %v5599
    %v5669 = vmul.f32 %v5525, %v5599
    %v5670 = vmul.f32 %v5526, %v5599
    %v5671 = vmul.f32 %v5527, %v5604
    %v5672 = vmul.f32 %v5528, %v5604
    %v5673 = vmul.f32 %v5529, %v5604
    %v5674 = vmul.f32 %v5530, %v5604
    %v5675 = vmul.f32 %v5531, %v5609
    %v5676 = vmul.f32 %v5532, %v5609
    %v5677 = vmul.f32 %v5533, %v5609
    %v5678 = vmul.f32 %v5534, %v5609
    %v5679 = vmul.f32 %v5535, %v5614
    %v5680 = vmul.f32 %v5536, %v5614
    %v5681 = vmul.f32 %v5537, %v5614
    %v5682 = vmul.f32 %v5538, %v5614
    %v5683 = vmul.f32 %v5539, %v5619
    %v5684 = vmul.f32 %v5540, %v5619
    %v5685 = vmul.f32 %v5541, %v5619
    %v5686 = vmul.f32 %v5542, %v5619
    %v5687 = vmul.f32 %v5543, %v5624
    %v5688 = vmul.f32 %v5544, %v5624
    %v5689 = vmul.f32 %v5545, %v5624
    %v5690 = vmul.f32 %v5546, %v5624
    %v5691 = vmul.f32 %v5547, %v5629
    %v5692 = vmul.f32 %v5548, %v5629
    %v5693 = vmul.f32 %v5549, %v5629
    %v5694 = vmul.f32 %v5550, %v5629
    %v5695 = vadd.f32 %v5631, %v5635
    %v5696 = vadd.f32 %v5695, %v5639
    %v5697 = vadd.f32 %v5696, %v5643
    %v5698 = vadd.f32 %v5697, %v5647
    %v5699 = vadd.f32 %v5698, %v5651
    %v5700 = vadd.f32 %v5699, %v5655
    %v5701 = vadd.f32 %v5700, %v5659
    %v5702 = vadd.f32 %v5701, %v5663
    %v5703 = vadd.f32 %v5702, %v5667
    %v5704 = vadd.f32 %v5703, %v5671
    %v5705 = vadd.f32 %v5704, %v5675
    %v5706 = vadd.f32 %v5705, %v5679
    %v5707 = vadd.f32 %v5706, %v5683
    %v5708 = vadd.f32 %v5707, %v5687
    %v5709 = vadd.f32 %v5708, %v5691
    %v5710 = vrot.slane %v5709, 4
    %v5711 = vadd.f32 %v5709, %v5710
    %v5712 = vrot.slane %v5711, 2
    %v5713 = vadd.f32 %v5711, %v5712
    %v5714 = vrot.slane %v5713, 1
    %v5715 = vadd.f32 %v5713, %v5714
    %v5716 = vadd.f32 %v5632, %v5636
    %v5717 = vadd.f32 %v5716, %v5640
    %v5718 = vadd.f32 %v5717, %v5644
    %v5719 = vadd.f32 %v5718, %v5648
    %v5720 = vadd.f32 %v5719, %v5652
    %v5721 = vadd.f32 %v5720, %v5656
    %v5722 = vadd.f32 %v5721, %v5660
    %v5723 = vadd.f32 %v5722, %v5664
    %v5724 = vadd.f32 %v5723, %v5668
    %v5725 = vadd.f32 %v5724, %v5672
    %v5726 = vadd.f32 %v5725, %v5676
    %v5727 = vadd.f32 %v5726, %v5680
    %v5728 = vadd.f32 %v5727, %v5684
    %v5729 = vadd.f32 %v5728, %v5688
    %v5730 = vadd.f32 %v5729, %v5692
    %v5731 = vrot.slane %v5730, 4
    %v5732 = vadd.f32 %v5730, %v5731
    %v5733 = vrot.slane %v5732, 2
    %v5734 = vadd.f32 %v5732, %v5733
    %v5735 = vrot.slane %v5734, 1
    %v5736 = vadd.f32 %v5734, %v5735
    %v5737 = vadd.f32 %v5633, %v5637
    %v5738 = vadd.f32 %v5737, %v5641
    %v5739 = vadd.f32 %v5738, %v5645
    %v5740 = vadd.f32 %v5739, %v5649
    %v5741 = vadd.f32 %v5740, %v5653
    %v5742 = vadd.f32 %v5741, %v5657
    %v5743 = vadd.f32 %v5742, %v5661
    %v5744 = vadd.f32 %v5743, %v5665
    %v5745 = vadd.f32 %v5744, %v5669
    %v5746 = vadd.f32 %v5745, %v5673
    %v5747 = vadd.f32 %v5746, %v5677
    %v5748 = vadd.f32 %v5747, %v5681
    %v5749 = vadd.f32 %v5748, %v5685
    %v5750 = vadd.f32 %v5749, %v5689
    %v5751 = vadd.f32 %v5750, %v5693
    %v5752 = vrot.slane %v5751, 4
    %v5753 = vadd.f32 %v5751, %v5752
    %v5754 = vrot.slane %v5753, 2
    %v5755 = vadd.f32 %v5753, %v5754
    %v5756 = vrot.slane %v5755, 1
    %v5757 = vadd.f32 %v5755, %v5756
    %v5758 = vadd.f32 %v5634, %v5638
    %v5759 = vadd.f32 %v5758, %v5642
    %v5760 = vadd.f32 %v5759, %v5646
    %v5761 = vadd.f32 %v5760, %v5650
    %v5762 = vadd.f32 %v5761, %v5654
    %v5763 = vadd.f32 %v5762, %v5658
    %v5764 = vadd.f32 %v5763, %v5662
    %v5765 = vadd.f32 %v5764, %v5666
    %v5766 = vadd.f32 %v5765, %v5670
    %v5767 = vadd.f32 %v5766, %v5674
    %v5768 = vadd.f32 %v5767, %v5678
    %v5769 = vadd.f32 %v5768, %v5682
    %v5770 = vadd.f32 %v5769, %v5686
    %v5771 = vadd.f32 %v5770, %v5690
    %v5772 = vadd.f32 %v5771, %v5694
    %v5773 = vrot.slane %v5772, 4
    %v5774 = vadd.f32 %v5772, %v5773
    %v5775 = vrot.slane %v5774, 2
    %v5776 = vadd.f32 %v5774, %v5775
    %v5777 = vrot.slane %v5776, 1
    %v5778 = vadd.f32 %v5776, %v5777
    %v5779 = vadd.f32 %v5147, %v5715
    %v5780 = vadd.f32 %v5148, %v5736
    %v5781 = vadd.f32 %v5149, %v5757
    %v5782 = vadd.f32 %v5150, %v5778
    %v5783 = vld [vmem:[%s3 + $0x480] sm:$0xff]
    %v5784 = vld [vmem:[%s3 + $0x488] sm:$0xff]
    %v5785 = vld [vmem:[%s3 + $0x490] sm:$0xff]
    %v5786 = vld [vmem:[%s3 + $0x498] sm:$0xff]
    %v5787 = vld [vmem:[%s3 + $0x4a0] sm:$0xff]
    %v5788 = vld [vmem:[%s3 + $0x4a8] sm:$0xff]
    %v5789 = vld [vmem:[%s3 + $0x4b0] sm:$0xff]
    %v5790 = vld [vmem:[%s3 + $0x4b8] sm:$0xff]
    %v5791 = vld [vmem:[%s3 + $0x4c0] sm:$0xff]
    %v5792 = vld [vmem:[%s3 + $0x4c8] sm:$0xff]
    %v5793 = vld [vmem:[%s3 + $0x4d0] sm:$0xff]
    %v5794 = vld [vmem:[%s3 + $0x4d8] sm:$0xff]
    %v5795 = vld [vmem:[%s3 + $0x4e0] sm:$0xff]
    %v5796 = vld [vmem:[%s3 + $0x4e8] sm:$0xff]
    %v5797 = vld [vmem:[%s3 + $0x4f0] sm:$0xff]
    %v5798 = vld [vmem:[%s3 + $0x4f8] sm:$0xff]
    %v5799 = vld [vmem:[%s4 + $0x480] sm:$0xff]
    %v5800 = vld [vmem:[%s4 + $0x488] sm:$0xff]
    %v5801 = vld [vmem:[%s4 + $0x490] sm:$0xff]
    %v5802 = vld [vmem:[%s4 + $0x498] sm:$0xff]
    %v5803 = vld [vmem:[%s4 + $0x4a0] sm:$0xff]
    %v5804 = vld [vmem:[%s4 + $0x4a8] sm:$0xff]
    %v5805 = vld [vmem:[%s4 + $0x4b0] sm:$0xff]
    %v5806 = vld [vmem:[%s4 + $0x4b8] sm:$0xff]
    %v5807 = vld [vmem:[%s4 + $0x4c0] sm:$0xff]
    %v5808 = vld [vmem:[%s4 + $0x4c8] sm:$0xff]
    %v5809 = vld [vmem:[%s4 + $0x4d0] sm:$0xff]
    %v5810 = vld [vmem:[%s4 + $0x4d8] sm:$0xff]
    %v5811 = vld [vmem:[%s4 + $0x4e0] sm:$0xff]
    %v5812 = vld [vmem:[%s4 + $0x4e8] sm:$0xff]
    %v5813 = vld [vmem:[%s4 + $0x4f0] sm:$0xff]
    %v5814 = vld [vmem:[%s4 + $0x4f8] sm:$0xff]
    %v5815 = vld [vmem:[%s5 + $0x480] sm:$0xff]
    %v5816 = vld [vmem:[%s5 + $0x488] sm:$0xff]
    %v5817 = vld [vmem:[%s5 + $0x490] sm:$0xff]
    %v5818 = vld [vmem:[%s5 + $0x498] sm:$0xff]
    %v5819 = vld [vmem:[%s5 + $0x4a0] sm:$0xff]
    %v5820 = vld [vmem:[%s5 + $0x4a8] sm:$0xff]
    %v5821 = vld [vmem:[%s5 + $0x4b0] sm:$0xff]
    %v5822 = vld [vmem:[%s5 + $0x4b8] sm:$0xff]
    %v5823 = vld [vmem:[%s5 + $0x4c0] sm:$0xff]
    %v5824 = vld [vmem:[%s5 + $0x4c8] sm:$0xff]
    %v5825 = vld [vmem:[%s5 + $0x4d0] sm:$0xff]
    %v5826 = vld [vmem:[%s5 + $0x4d8] sm:$0xff]
    %v5827 = vld [vmem:[%s5 + $0x4e0] sm:$0xff]
    %v5828 = vld [vmem:[%s5 + $0x4e8] sm:$0xff]
    %v5829 = vld [vmem:[%s5 + $0x4f0] sm:$0xff]
    %v5830 = vld [vmem:[%s5 + $0x4f8] sm:$0xff]
    %5832 = vset.pattern.permute.xlu0 0
    %5833 = vperm.xlu0 %5832, %v5783
    %v5834 = vpop.permute.xlu0 %5833
    %5837 = vset.pattern.permute.xlu0 0
    %5838 = vperm.xlu0 %5837, %v5784
    %v5839 = vpop.permute.xlu0 %5838
    %5842 = vset.pattern.permute.xlu0 0
    %5843 = vperm.xlu0 %5842, %v5785
    %v5844 = vpop.permute.xlu0 %5843
    %5847 = vset.pattern.permute.xlu0 0
    %5848 = vperm.xlu0 %5847, %v5786
    %v5849 = vpop.permute.xlu0 %5848
    %5852 = vset.pattern.permute.xlu0 0
    %5853 = vperm.xlu0 %5852, %v5787
    %v5854 = vpop.permute.xlu0 %5853
    %5857 = vset.pattern.permute.xlu0 0
    %5858 = vperm.xlu0 %5857, %v5788
    %v5859 = vpop.permute.xlu0 %5858
    %5862 = vset.pattern.permute.xlu0 0
    %5863 = vperm.xlu0 %5862, %v5789
    %v5864 = vpop.permute.xlu0 %5863
    %5867 = vset.pattern.permute.xlu0 0
    %5868 = vperm.xlu0 %5867, %v5790
    %v5869 = vpop.permute.xlu0 %5868
    %5872 = vset.pattern.permute.xlu0 0
    %5873 = vperm.xlu0 %5872, %v5791
    %v5874 = vpop.permute.xlu0 %5873
    %5877 = vset.pattern.permute.xlu0 0
    %5878 = vperm.xlu0 %5877, %v5792
    %v5879 = vpop.permute.xlu0 %5878
    %5882 = vset.pattern.permute.xlu0 0
    %5883 = vperm.xlu0 %5882, %v5793
    %v5884 = vpop.permute.xlu0 %5883
    %5887 = vset.pattern.permute.xlu0 0
    %5888 = vperm.xlu0 %5887, %v5794
    %v5889 = vpop.permute.xlu0 %5888
    %5892 = vset.pattern.permute.xlu0 0
    %5893 = vperm.xlu0 %5892, %v5795
    %v5894 = vpop.permute.xlu0 %5893
    %5897 = vset.pattern.permute.xlu0 0
    %5898 = vperm.xlu0 %5897, %v5796
    %v5899 = vpop.permute.xlu0 %5898
    %5902 = vset.pattern.permute.xlu0 0
    %5903 = vperm.xlu0 %5902, %v5797
    %v5904 = vpop.permute.xlu0 %5903
    %5907 = vset.pattern.permute.xlu0 0
    %5908 = vperm.xlu0 %5907, %v5798
    %v5909 = vpop.permute.xlu0 %5908
    %v5911 = vmul.f32 %v5834, %v91
    %v5912 = vmul.f32 %v5834, %v92
    %v5913 = vmul.f32 %v5834, %v93
    %v5914 = vmul.f32 %v5834, %v94
    %v5915 = vmul.f32 %v5839, %v91
    %v5916 = vmul.f32 %v5839, %v92
    %v5917 = vmul.f32 %v5839, %v93
    %v5918 = vmul.f32 %v5839, %v94
    %v5919 = vmul.f32 %v5844, %v91
    %v5920 = vmul.f32 %v5844, %v92
    %v5921 = vmul.f32 %v5844, %v93
    %v5922 = vmul.f32 %v5844, %v94
    %v5923 = vmul.f32 %v5849, %v91
    %v5924 = vmul.f32 %v5849, %v92
    %v5925 = vmul.f32 %v5849, %v93
    %v5926 = vmul.f32 %v5849, %v94
    %v5927 = vmul.f32 %v5854, %v91
    %v5928 = vmul.f32 %v5854, %v92
    %v5929 = vmul.f32 %v5854, %v93
    %v5930 = vmul.f32 %v5854, %v94
    %v5931 = vmul.f32 %v5859, %v91
    %v5932 = vmul.f32 %v5859, %v92
    %v5933 = vmul.f32 %v5859, %v93
    %v5934 = vmul.f32 %v5859, %v94
    %v5935 = vmul.f32 %v5864, %v91
    %v5936 = vmul.f32 %v5864, %v92
    %v5937 = vmul.f32 %v5864, %v93
    %v5938 = vmul.f32 %v5864, %v94
    %v5939 = vmul.f32 %v5869, %v91
    %v5940 = vmul.f32 %v5869, %v92
    %v5941 = vmul.f32 %v5869, %v93
    %v5942 = vmul.f32 %v5869, %v94
    %v5943 = vmul.f32 %v5874, %v91
    %v5944 = vmul.f32 %v5874, %v92
    %v5945 = vmul.f32 %v5874, %v93
    %v5946 = vmul.f32 %v5874, %v94
    %v5947 = vmul.f32 %v5879, %v91
    %v5948 = vmul.f32 %v5879, %v92
    %v5949 = vmul.f32 %v5879, %v93
    %v5950 = vmul.f32 %v5879, %v94
    %v5951 = vmul.f32 %v5884, %v91
    %v5952 = vmul.f32 %v5884, %v92
    %v5953 = vmul.f32 %v5884, %v93
    %v5954 = vmul.f32 %v5884, %v94
    %v5955 = vmul.f32 %v5889, %v91
    %v5956 = vmul.f32 %v5889, %v92
    %v5957 = vmul.f32 %v5889, %v93
    %v5958 = vmul.f32 %v5889, %v94
    %v5959 = vmul.f32 %v5894, %v91
    %v5960 = vmul.f32 %v5894, %v92
    %v5961 = vmul.f32 %v5894, %v93
    %v5962 = vmul.f32 %v5894, %v94
    %v5963 = vmul.f32 %v5899, %v91
    %v5964 = vmul.f32 %v5899, %v92
    %v5965 = vmul.f32 %v5899, %v93
    %v5966 = vmul.f32 %v5899, %v94
    %v5967 = vmul.f32 %v5904, %v91
    %v5968 = vmul.f32 %v5904, %v92
    %v5969 = vmul.f32 %v5904, %v93
    %v5970 = vmul.f32 %v5904, %v94
    %v5971 = vmul.f32 %v5909, %v91
    %v5972 = vmul.f32 %v5909, %v92
    %v5973 = vmul.f32 %v5909, %v93
    %v5974 = vmul.f32 %v5909, %v94
    %5976 = vset.pattern.permute.xlu0 0
    %5977 = vperm.xlu0 %5976, %v5799
    %v5978 = vpop.permute.xlu0 %5977
    %5981 = vset.pattern.permute.xlu0 0
    %5982 = vperm.xlu0 %5981, %v5800
    %v5983 = vpop.permute.xlu0 %5982
    %5986 = vset.pattern.permute.xlu0 0
    %5987 = vperm.xlu0 %5986, %v5801
    %v5988 = vpop.permute.xlu0 %5987
    %5991 = vset.pattern.permute.xlu0 0
    %5992 = vperm.xlu0 %5991, %v5802
    %v5993 = vpop.permute.xlu0 %5992
    %5996 = vset.pattern.permute.xlu0 0
    %5997 = vperm.xlu0 %5996, %v5803
    %v5998 = vpop.permute.xlu0 %5997
    %6001 = vset.pattern.permute.xlu0 0
    %6002 = vperm.xlu0 %6001, %v5804
    %v6003 = vpop.permute.xlu0 %6002
    %6006 = vset.pattern.permute.xlu0 0
    %6007 = vperm.xlu0 %6006, %v5805
    %v6008 = vpop.permute.xlu0 %6007
    %6011 = vset.pattern.permute.xlu0 0
    %6012 = vperm.xlu0 %6011, %v5806
    %v6013 = vpop.permute.xlu0 %6012
    %6016 = vset.pattern.permute.xlu0 0
    %6017 = vperm.xlu0 %6016, %v5807
    %v6018 = vpop.permute.xlu0 %6017
    %6021 = vset.pattern.permute.xlu0 0
    %6022 = vperm.xlu0 %6021, %v5808
    %v6023 = vpop.permute.xlu0 %6022
    %6026 = vset.pattern.permute.xlu0 0
    %6027 = vperm.xlu0 %6026, %v5809
    %v6028 = vpop.permute.xlu0 %6027
    %6031 = vset.pattern.permute.xlu0 0
    %6032 = vperm.xlu0 %6031, %v5810
    %v6033 = vpop.permute.xlu0 %6032
    %6036 = vset.pattern.permute.xlu0 0
    %6037 = vperm.xlu0 %6036, %v5811
    %v6038 = vpop.permute.xlu0 %6037
    %6041 = vset.pattern.permute.xlu0 0
    %6042 = vperm.xlu0 %6041, %v5812
    %v6043 = vpop.permute.xlu0 %6042
    %6046 = vset.pattern.permute.xlu0 0
    %6047 = vperm.xlu0 %6046, %v5813
    %v6048 = vpop.permute.xlu0 %6047
    %6051 = vset.pattern.permute.xlu0 0
    %6052 = vperm.xlu0 %6051, %v5814
    %v6053 = vpop.permute.xlu0 %6052
    %v6055 = vadd.f32 %v5911, %v5978
    %v6056 = vadd.f32 %v5912, %v5978
    %v6057 = vadd.f32 %v5913, %v5978
    %v6058 = vadd.f32 %v5914, %v5978
    %v6059 = vadd.f32 %v5915, %v5983
    %v6060 = vadd.f32 %v5916, %v5983
    %v6061 = vadd.f32 %v5917, %v5983
    %v6062 = vadd.f32 %v5918, %v5983
    %v6063 = vadd.f32 %v5919, %v5988
    %v6064 = vadd.f32 %v5920, %v5988
    %v6065 = vadd.f32 %v5921, %v5988
    %v6066 = vadd.f32 %v5922, %v5988
    %v6067 = vadd.f32 %v5923, %v5993
    %v6068 = vadd.f32 %v5924, %v5993
    %v6069 = vadd.f32 %v5925, %v5993
    %v6070 = vadd.f32 %v5926, %v5993
    %v6071 = vadd.f32 %v5927, %v5998
    %v6072 = vadd.f32 %v5928, %v5998
    %v6073 = vadd.f32 %v5929, %v5998
    %v6074 = vadd.f32 %v5930, %v5998
    %v6075 = vadd.f32 %v5931, %v6003
    %v6076 = vadd.f32 %v5932, %v6003
    %v6077 = vadd.f32 %v5933, %v6003
    %v6078 = vadd.f32 %v5934, %v6003
    %v6079 = vadd.f32 %v5935, %v6008
    %v6080 = vadd.f32 %v5936, %v6008
    %v6081 = vadd.f32 %v5937, %v6008
    %v6082 = vadd.f32 %v5938, %v6008
    %v6083 = vadd.f32 %v5939, %v6013
    %v6084 = vadd.f32 %v5940, %v6013
    %v6085 = vadd.f32 %v5941, %v6013
    %v6086 = vadd.f32 %v5942, %v6013
    %v6087 = vadd.f32 %v5943, %v6018
    %v6088 = vadd.f32 %v5944, %v6018
    %v6089 = vadd.f32 %v5945, %v6018
    %v6090 = vadd.f32 %v5946, %v6018
    %v6091 = vadd.f32 %v5947, %v6023
    %v6092 = vadd.f32 %v5948, %v6023
    %v6093 = vadd.f32 %v5949, %v6023
    %v6094 = vadd.f32 %v5950, %v6023
    %v6095 = vadd.f32 %v5951, %v6028
    %v6096 = vadd.f32 %v5952, %v6028
    %v6097 = vadd.f32 %v5953, %v6028
    %v6098 = vadd.f32 %v5954, %v6028
    %v6099 = vadd.f32 %v5955, %v6033
    %v6100 = vadd.f32 %v5956, %v6033
    %v6101 = vadd.f32 %v5957, %v6033
    %v6102 = vadd.f32 %v5958, %v6033
    %v6103 = vadd.f32 %v5959, %v6038
    %v6104 = vadd.f32 %v5960, %v6038
    %v6105 = vadd.f32 %v5961, %v6038
    %v6106 = vadd.f32 %v5962, %v6038
    %v6107 = vadd.f32 %v5963, %v6043
    %v6108 = vadd.f32 %v5964, %v6043
    %v6109 = vadd.f32 %v5965, %v6043
    %v6110 = vadd.f32 %v5966, %v6043
    %v6111 = vadd.f32 %v5967, %v6048
    %v6112 = vadd.f32 %v5968, %v6048
    %v6113 = vadd.f32 %v5969, %v6048
    %v6114 = vadd.f32 %v5970, %v6048
    %v6115 = vadd.f32 %v5971, %v6053
    %v6116 = vadd.f32 %v5972, %v6053
    %v6117 = vadd.f32 %v5973, %v6053
    %v6118 = vadd.f32 %v5974, %v6053
    %v6119 = vtanh.pop %v6055
    %v6120 = vtanh.pop %v6056
    %v6121 = vtanh.pop %v6057
    %v6122 = vtanh.pop %v6058
    %v6123 = vtanh.pop %v6059
    %v6124 = vtanh.pop %v6060
    %v6125 = vtanh.pop %v6061
    %v6126 = vtanh.pop %v6062
    %v6127 = vtanh.pop %v6063
    %v6128 = vtanh.pop %v6064
    %v6129 = vtanh.pop %v6065
    %v6130 = vtanh.pop %v6066
    %v6131 = vtanh.pop %v6067
    %v6132 = vtanh.pop %v6068
    %v6133 = vtanh.pop %v6069
    %v6134 = vtanh.pop %v6070
    %v6135 = vtanh.pop %v6071
    %v6136 = vtanh.pop %v6072
    %v6137 = vtanh.pop %v6073
    %v6138 = vtanh.pop %v6074
    %v6139 = vtanh.pop %v6075
    %v6140 = vtanh.pop %v6076
    %v6141 = vtanh.pop %v6077
    %v6142 = vtanh.pop %v6078
    %v6143 = vtanh.pop %v6079
    %v6144 = vtanh.pop %v6080
    %v6145 = vtanh.pop %v6081
    %v6146 = vtanh.pop %v6082
    %v6147 = vtanh.pop %v6083
    %v6148 = vtanh.pop %v6084
    %v6149 = vtanh.pop %v6085
    %v6150 = vtanh.pop %v6086
    %v6151 = vtanh.pop %v6087
    %v6152 = vtanh.pop %v6088
    %v6153 = vtanh.pop %v6089
    %v6154 = vtanh.pop %v6090
    %v6155 = vtanh.pop %v6091
    %v6156 = vtanh.pop %v6092
    %v6157 = vtanh.pop %v6093
    %v6158 = vtanh.pop %v6094
    %v6159 = vtanh.pop %v6095
    %v6160 = vtanh.pop %v6096
    %v6161 = vtanh.pop %v6097
    %v6162 = vtanh.pop %v6098
    %v6163 = vtanh.pop %v6099
    %v6164 = vtanh.pop %v6100
    %v6165 = vtanh.pop %v6101
    %v6166 = vtanh.pop %v6102
    %v6167 = vtanh.pop %v6103
    %v6168 = vtanh.pop %v6104
    %v6169 = vtanh.pop %v6105
    %v6170 = vtanh.pop %v6106
    %v6171 = vtanh.pop %v6107
    %v6172 = vtanh.pop %v6108
    %v6173 = vtanh.pop %v6109
    %v6174 = vtanh.pop %v6110
    %v6175 = vtanh.pop %v6111
    %v6176 = vtanh.pop %v6112
    %v6177 = vtanh.pop %v6113
    %v6178 = vtanh.pop %v6114
    %v6179 = vtanh.pop %v6115
    %v6180 = vtanh.pop %v6116
    %v6181 = vtanh.pop %v6117
    %v6182 = vtanh.pop %v6118
    %6184 = vset.pattern.permute.xlu0 0
    %6185 = vperm.xlu0 %6184, %v5815
    %v6186 = vpop.permute.xlu0 %6185
    %6189 = vset.pattern.permute.xlu0 0
    %6190 = vperm.xlu0 %6189, %v5816
    %v6191 = vpop.permute.xlu0 %6190
    %6194 = vset.pattern.permute.xlu0 0
    %6195 = vperm.xlu0 %6194, %v5817
    %v6196 = vpop.permute.xlu0 %6195
    %6199 = vset.pattern.permute.xlu0 0
    %6200 = vperm.xlu0 %6199, %v5818
    %v6201 = vpop.permute.xlu0 %6200
    %6204 = vset.pattern.permute.xlu0 0
    %6205 = vperm.xlu0 %6204, %v5819
    %v6206 = vpop.permute.xlu0 %6205
    %6209 = vset.pattern.permute.xlu0 0
    %6210 = vperm.xlu0 %6209, %v5820
    %v6211 = vpop.permute.xlu0 %6210
    %6214 = vset.pattern.permute.xlu0 0
    %6215 = vperm.xlu0 %6214, %v5821
    %v6216 = vpop.permute.xlu0 %6215
    %6219 = vset.pattern.permute.xlu0 0
    %6220 = vperm.xlu0 %6219, %v5822
    %v6221 = vpop.permute.xlu0 %6220
    %6224 = vset.pattern.permute.xlu0 0
    %6225 = vperm.xlu0 %6224, %v5823
    %v6226 = vpop.permute.xlu0 %6225
    %6229 = vset.pattern.permute.xlu0 0
    %6230 = vperm.xlu0 %6229, %v5824
    %v6231 = vpop.permute.xlu0 %6230
    %6234 = vset.pattern.permute.xlu0 0
    %6235 = vperm.xlu0 %6234, %v5825
    %v6236 = vpop.permute.xlu0 %6235
    %6239 = vset.pattern.permute.xlu0 0
    %6240 = vperm.xlu0 %6239, %v5826
    %v6241 = vpop.permute.xlu0 %6240
    %6244 = vset.pattern.permute.xlu0 0
    %6245 = vperm.xlu0 %6244, %v5827
    %v6246 = vpop.permute.xlu0 %6245
    %6249 = vset.pattern.permute.xlu0 0
    %6250 = vperm.xlu0 %6249, %v5828
    %v6251 = vpop.permute.xlu0 %6250
    %6254 = vset.pattern.permute.xlu0 0
    %6255 = vperm.xlu0 %6254, %v5829
    %v6256 = vpop.permute.xlu0 %6255
    %6259 = vset.pattern.permute.xlu0 0
    %6260 = vperm.xlu0 %6259, %v5830
    %v6261 = vpop.permute.xlu0 %6260
    %v6263 = vmul.f32 %v6119, %v6186
    %v6264 = vmul.f32 %v6120, %v6186
    %v6265 = vmul.f32 %v6121, %v6186
    %v6266 = vmul.f32 %v6122, %v6186
    %v6267 = vmul.f32 %v6123, %v6191
    %v6268 = vmul.f32 %v6124, %v6191
    %v6269 = vmul.f32 %v6125, %v6191
    %v6270 = vmul.f32 %v6126, %v6191
    %v6271 = vmul.f32 %v6127, %v6196
    %v6272 = vmul.f32 %v6128, %v6196
    %v6273 = vmul.f32 %v6129, %v6196
    %v6274 = vmul.f32 %v6130, %v6196
    %v6275 = vmul.f32 %v6131, %v6201
    %v6276 = vmul.f32 %v6132, %v6201
    %v6277 = vmul.f32 %v6133, %v6201
    %v6278 = vmul.f32 %v6134, %v6201
    %v6279 = vmul.f32 %v6135, %v6206
    %v6280 = vmul.f32 %v6136, %v6206
    %v6281 = vmul.f32 %v6137, %v6206
    %v6282 = vmul.f32 %v6138, %v6206
    %v6283 = vmul.f32 %v6139, %v6211
    %v6284 = vmul.f32 %v6140, %v6211
    %v6285 = vmul.f32 %v6141, %v6211
    %v6286 = vmul.f32 %v6142, %v6211
    %v6287 = vmul.f32 %v6143, %v6216
    %v6288 = vmul.f32 %v6144, %v6216
    %v6289 = vmul.f32 %v6145, %v6216
    %v6290 = vmul.f32 %v6146, %v6216
    %v6291 = vmul.f32 %v6147, %v6221
    %v6292 = vmul.f32 %v6148, %v6221
    %v6293 = vmul.f32 %v6149, %v6221
    %v6294 = vmul.f32 %v6150, %v6221
    %v6295 = vmul.f32 %v6151, %v6226
    %v6296 = vmul.f32 %v6152, %v6226
    %v6297 = vmul.f32 %v6153, %v6226
    %v6298 = vmul.f32 %v6154, %v6226
    %v6299 = vmul.f32 %v6155, %v6231
    %v6300 = vmul.f32 %v6156, %v6231
    %v6301 = vmul.f32 %v6157, %v6231
    %v6302 = vmul.f32 %v6158, %v6231
    %v6303 = vmul.f32 %v6159, %v6236
    %v6304 = vmul.f32 %v6160, %v6236
    %v6305 = vmul.f32 %v6161, %v6236
    %v6306 = vmul.f32 %v6162, %v6236
    %v6307 = vmul.f32 %v6163, %v6241
    %v6308 = vmul.f32 %v6164, %v6241
    %v6309 = vmul.f32 %v6165, %v6241
    %v6310 = vmul.f32 %v6166, %v6241
    %v6311 = vmul.f32 %v6167, %v6246
    %v6312 = vmul.f32 %v6168, %v6246
    %v6313 = vmul.f32 %v6169, %v6246
    %v6314 = vmul.f32 %v6170, %v6246
    %v6315 = vmul.f32 %v6171, %v6251
    %v6316 = vmul.f32 %v6172, %v6251
    %v6317 = vmul.f32 %v6173, %v6251
    %v6318 = vmul.f32 %v6174, %v6251
    %v6319 = vmul.f32 %v6175, %v6256
    %v6320 = vmul.f32 %v6176, %v6256
    %v6321 = vmul.f32 %v6177, %v6256
    %v6322 = vmul.f32 %v6178, %v6256
    %v6323 = vmul.f32 %v6179, %v6261
    %v6324 = vmul.f32 %v6180, %v6261
    %v6325 = vmul.f32 %v6181, %v6261
    %v6326 = vmul.f32 %v6182, %v6261
    %v6327 = vadd.f32 %v6263, %v6267
    %v6328 = vadd.f32 %v6327, %v6271
    %v6329 = vadd.f32 %v6328, %v6275
    %v6330 = vadd.f32 %v6329, %v6279
    %v6331 = vadd.f32 %v6330, %v6283
    %v6332 = vadd.f32 %v6331, %v6287
    %v6333 = vadd.f32 %v6332, %v6291
    %v6334 = vadd.f32 %v6333, %v6295
    %v6335 = vadd.f32 %v6334, %v6299
    %v6336 = vadd.f32 %v6335, %v6303
    %v6337 = vadd.f32 %v6336, %v6307
    %v6338 = vadd.f32 %v6337, %v6311
    %v6339 = vadd.f32 %v6338, %v6315
    %v6340 = vadd.f32 %v6339, %v6319
    %v6341 = vadd.f32 %v6340, %v6323
    %v6342 = vrot.slane %v6341, 4
    %v6343 = vadd.f32 %v6341, %v6342
    %v6344 = vrot.slane %v6343, 2
    %v6345 = vadd.f32 %v6343, %v6344
    %v6346 = vrot.slane %v6345, 1
    %v6347 = vadd.f32 %v6345, %v6346
    %v6348 = vadd.f32 %v6264, %v6268
    %v6349 = vadd.f32 %v6348, %v6272
    %v6350 = vadd.f32 %v6349, %v6276
    %v6351 = vadd.f32 %v6350, %v6280
    %v6352 = vadd.f32 %v6351, %v6284
    %v6353 = vadd.f32 %v6352, %v6288
    %v6354 = vadd.f32 %v6353, %v6292
    %v6355 = vadd.f32 %v6354, %v6296
    %v6356 = vadd.f32 %v6355, %v6300
    %v6357 = vadd.f32 %v6356, %v6304
    %v6358 = vadd.f32 %v6357, %v6308
    %v6359 = vadd.f32 %v6358, %v6312
    %v6360 = vadd.f32 %v6359, %v6316
    %v6361 = vadd.f32 %v6360, %v6320
    %v6362 = vadd.f32 %v6361, %v6324
    %v6363 = vrot.slane %v6362, 4
    %v6364 = vadd.f32 %v6362, %v6363
    %v6365 = vrot.slane %v6364, 2
    %v6366 = vadd.f32 %v6364, %v6365
    %v6367 = vrot.slane %v6366, 1
    %v6368 = vadd.f32 %v6366, %v6367
    %v6369 = vadd.f32 %v6265, %v6269
    %v6370 = vadd.f32 %v6369, %v6273
    %v6371 = vadd.f32 %v6370, %v6277
    %v6372 = vadd.f32 %v6371, %v6281
    %v6373 = vadd.f32 %v6372, %v6285
    %v6374 = vadd.f32 %v6373, %v6289
    %v6375 = vadd.f32 %v6374, %v6293
    %v6376 = vadd.f32 %v6375, %v6297
    %v6377 = vadd.f32 %v6376, %v6301
    %v6378 = vadd.f32 %v6377, %v6305
    %v6379 = vadd.f32 %v6378, %v6309
    %v6380 = vadd.f32 %v6379, %v6313
    %v6381 = vadd.f32 %v6380, %v6317
    %v6382 = vadd.f32 %v6381, %v6321
    %v6383 = vadd.f32 %v6382, %v6325
    %v6384 = vrot.slane %v6383, 4
    %v6385 = vadd.f32 %v6383, %v6384
    %v6386 = vrot.slane %v6385, 2
    %v6387 = vadd.f32 %v6385, %v6386
    %v6388 = vrot.slane %v6387, 1
    %v6389 = vadd.f32 %v6387, %v6388
    %v6390 = vadd.f32 %v6266, %v6270
    %v6391 = vadd.f32 %v6390, %v6274
    %v6392 = vadd.f32 %v6391, %v6278
    %v6393 = vadd.f32 %v6392, %v6282
    %v6394 = vadd.f32 %v6393, %v6286
    %v6395 = vadd.f32 %v6394, %v6290
    %v6396 = vadd.f32 %v6395, %v6294
    %v6397 = vadd.f32 %v6396, %v6298
    %v6398 = vadd.f32 %v6397, %v6302
    %v6399 = vadd.f32 %v6398, %v6306
    %v6400 = vadd.f32 %v6399, %v6310
    %v6401 = vadd.f32 %v6400, %v6314
    %v6402 = vadd.f32 %v6401, %v6318
    %v6403 = vadd.f32 %v6402, %v6322
    %v6404 = vadd.f32 %v6403, %v6326
    %v6405 = vrot.slane %v6404, 4
    %v6406 = vadd.f32 %v6404, %v6405
    %v6407 = vrot.slane %v6406, 2
    %v6408 = vadd.f32 %v6406, %v6407
    %v6409 = vrot.slane %v6408, 1
    %v6410 = vadd.f32 %v6408, %v6409
    %v6411 = vadd.f32 %v5779, %v6347
    %v6412 = vadd.f32 %v5780, %v6368
    %v6413 = vadd.f32 %v5781, %v6389
    %v6414 = vadd.f32 %v5782, %v6410
    %v6415 = vld [vmem:[#allocation3] sm:$0x1]
    %6417 = vset.pattern.permute.xlu0 0
    %6418 = vperm.xlu0 %6417, %v6415
    %v6419 = vpop.permute.xlu0 %6418
    %v6421 = vlaneseq
    %v6422 = vshrl.u32 %v6421, 7
    %v6423 = vsub.s32 0, %v6422
    %v6424 = vrot.slane %v6419, %v6423
    %v6425 = vadd.f32 %v6411, %v6424
    %v6426 = vadd.f32 %v6412, %v6424
    %v6427 = vadd.f32 %v6413, %v6424
    %v6428 = vadd.f32 %v6414, %v6424
    %v6429 = vtanh.pop %v6425
    %v6430 = vtanh.pop %v6426
    %v6431 = vtanh.pop %v6427
    %v6432 = vtanh.pop %v6428
    %v6433 = vmul.f32 %v6429, 0.5
    %v6434 = vmul.f32 %v6430, 0.5
    %v6435 = vmul.f32 %v6431, 0.5
    %v6436 = vmul.f32 %v6432, 0.5
    %v6437 = vadd.f32 %v6433, 0.5
    %v6438 = vadd.f32 %v6434, 0.5
    %v6439 = vadd.f32 %v6435, 0.5
    %v6440 = vadd.f32 %v6436, 0.5
    %v6445 = vcombine.low %v6437, %v6438
    %v6446 = vcombine.low %v6439, %v6440
    %v6448 = vunpack.c.l.s4 1966171168
    %v6449 = vunpack.c.0.s8 %v6448
    %v6450 = vlaneseq
    %v6451 = vshrl.u32 %v6450, 7
    %v6452 = vsub.s32 %v6449, %v6451
    %v6453 = vrot.slane %v6445, %v6452
    %v6455 = vunpack.c.l.s4 1966171168
    %v6456 = vunpack.c.0.s8 %v6455
    %v6457 = vlaneseq
    %v6458 = vshrl.u32 %v6457, 7
    %v6459 = vsub.s32 %v6456, %v6458
    %v6460 = vrot.slane %v6446, %v6459
    %v6461 = vcombine.low %v6453, %v6460
    %v6463 = vunpack.c.l.s4 1966171168
    %v6464 = vunpack.c.0.s8 %v6463
    %v6465 = vlaneseq
    %v6466 = vshrl.u32 %v6465, 7
    %v6467 = vsub.s32 %v6464, %v6466
    %v6468 = vrot.slane %v6461, %v6467
    %v6470 = vlaneseq
    %vm6471 = vcmp.ge.s32.totalorder %v6470, 0
    %vm6472 = vcmp.lt.s32.totalorder %v6470, 512
    %vm6473 = vmand %vm6471, %vm6472
    %6474 = vst.msk [vmem:[#allocation4] sm:$0xf] %vm6473, %v6468
    // Predicated region
    $region30: #{tpu_custom_call.1} parent=1 // pred_check
      _
    $region31: #{tpu_custom_call.1} parent=1 // pred_check_branch
      %6476 = sbr.rel (0) target = $region33
    $region32: #{tpu_custom_call.1} parent=1 // pred_region
      %s6478 = ssub.s32 64, 64
      %6479 = vsyncadd [#allocation5], %s6478
      %s6481 = sshll.u32 [#allocation4], 4
      %s6482 = int_to_ptr.vmem [resolvable:$true] %s6481
      %6484 = dma.vmem_to_hbm [thread:$0]  %s6482, 64, %s7, [#allocation5]
    $region33: #{tpu_custom_call.1} parent=1 // pred_fallthru
      _
    // Predicated region
    $region34: #{tpu_custom_call.1} parent=1 // pred_check
      _
    $region35: #{tpu_custom_call.1} parent=1 // pred_check_branch
      %6486 = sbr.rel (0) target = $region37
    $region36: #{tpu_custom_call.1} parent=1 // pred_region
      %6487 = dma.done [#allocation5], 64
    $region37: #{tpu_custom_call.1} parent=1 // pred_fallthru
      _
    %6488 = vsyncpa [#allocation5], 1

</llo_original>
